<compile_context>
chip_gen: v5e
topology: v5e:2x2
jax: 0.10.0
libtpu: 0.0.40
codegen_flags: <defaults>
</compile_context>

<pallas_src>
import functools
import math

import jax
import jax.numpy as jnp
from jax.experimental import pallas as pl
from jax.experimental.pallas import tpu as pltpu

# ----------------------------- config (tiny synthetic BERT) -----------------
VOCAB = 128
HIDDEN = 32
N_LAYERS = 2
N_HEADS = 4
HEAD_DIM = HIDDEN // N_HEADS
INTERMEDIATE = 64
MAX_SEQ = 8
N_LABELS = 3
LN_EPS = 1e-12


# ----------------------------- small helpers --------------------------------
def _layernorm(x, g, b, eps):
    mu = jnp.mean(x, axis=-1, keepdims=True)
    xc = x - mu
    var = jnp.mean(xc * xc, axis=-1, keepdims=True)
    return xc * jax.lax.rsqrt(var + eps) * g + b


def _gelu(y):
    # TODO(synk): exact erf-GELU not used (no guaranteed Mosaic erf lowering).
    return 0.5 * y * (1.0 + jnp.tanh(0.7978845608028654 * (y + 0.044715 * y * y * y)))


# ----------------------------- the fused kernel ------------------------------
def _bert_stack_kernel(
    # inputs (constant-index, fetched once)
    emb_ref, mask_ref, emb_g_ref, emb_b_ref,
    # per-layer stacked weights (index_map = layer id)
    qkv_w_ref, qkv_b_ref, ao_w_ref, ao_b_ref, ln1_g_ref, ln1_b_ref,
    ff1_w_ref, ff1_b_ref, ff2_w_ref, ff2_b_ref, ln2_g_ref, ln2_b_ref,
    # head weights + labels
    pool_w_ref, pool_b_ref, cls_w_ref, cls_b_ref, labels_ref,
    # outputs
    loss_ref, pred_ref,
    # scratch
    act_ref,
    *, batch, seq, n_heads, head_dim, hidden, n_labels, eps,
):
    layer = pl.program_id(0)
    scale = 1.0 / math.sqrt(head_dim)

    # ---- grid step 0: embedding LayerNorm initializes the carried activation
    @pl.when(layer == 0)
    def _():
        act_ref[...] = _layernorm(emb_ref[...], emb_g_ref[...], emb_b_ref[...], eps)

    x = act_ref[...]                                            # (M, H) f32, resident

    # ---- fused QKV projection: one bf16 MXU matmul, f32 accumulation --------
    qkv = jnp.dot(x.astype(jnp.bfloat16), qkv_w_ref[0],
                  preferred_element_type=jnp.float32) + qkv_b_ref[0]   # (M, 3H)
    qkv_bf = qkv.astype(jnp.bfloat16)                           # single hoisted cast

    # ---- attention (head merge folded into out-projection; no lane concats) -
    row_blocks = []
    for b in range(batch):                                      # static unroll (B tiny)
        row = slice(b * seq, (b + 1) * seq)
        mask_b = jnp.broadcast_to(mask_ref[b:b + 1, :], (seq, seq))   # hoisted
        acc_b = None
        for h in range(n_heads):                                # static unroll (NH tiny)
            c0 = h * head_dim
            q_bh = qkv_bf[row, c0:c0 + head_dim]                            # (S, Dh)
            k_bh = qkv_bf[row, hidden + c0:hidden + c0 + head_dim]
            v_bh = qkv_bf[row, 2 * hidden + c0:2 * hidden + c0 + head_dim]
            s = jax.lax.dot_general(q_bh, k_bh, (((1,), (1,)), ((), ())),
                                    preferred_element_type=jnp.float32)
            s = s * scale + mask_b
            s = s - jnp.max(s, axis=-1, keepdims=True)
            p = jnp.exp(s)
            # exact division on the loss-bearing path (correctness feedback);
            # use pl.reciprocal(..., approx=True) for inference-only kernels.
            p = p / jnp.sum(p, axis=-1, keepdims=True)
            ctx = jnp.dot(p.astype(jnp.bfloat16), v_bh,
                          preferred_element_type=jnp.float32)               # (S, Dh)
            wo_h = ao_w_ref[0, h, :, :]                                     # (Dh, H) bf16
            term = jnp.dot(ctx.astype(jnp.bfloat16), wo_h,
                           preferred_element_type=jnp.float32)              # (S, H)
            acc_b = term if acc_b is None else acc_b + term
        row_blocks.append(acc_b)
    attn = jnp.concatenate(row_blocks, axis=0) + ao_b_ref[0]                # (M, H)

    # ---- residual + LN, FFN (gelu), residual + LN (f32 elementwise) ---------
    h1 = _layernorm(attn + x, ln1_g_ref[0], ln1_b_ref[0], eps)
    inter = jnp.dot(h1.astype(jnp.bfloat16), ff1_w_ref[0],
                    preferred_element_type=jnp.float32) + ff1_b_ref[0]
    inter = _gelu(inter)
    ff = jnp.dot(inter.astype(jnp.bfloat16), ff2_w_ref[0],
                 preferred_element_type=jnp.float32) + ff2_b_ref[0]
    x_new = _layernorm(ff + h1, ln2_g_ref[0], ln2_b_ref[0], eps)
    act_ref[...] = x_new                                        # carry to next layer

    # ---- last grid step: pooler + classifier + cross-entropy + argmax -------
    @pl.when(layer == pl.num_programs(0) - 1)
    def _():
        cls_tok = jnp.concatenate(
            [x_new[b * seq:b * seq + 1, :] for b in range(batch)], axis=0)  # (B, H)
        pooled = jnp.tanh(
            jnp.dot(cls_tok.astype(jnp.bfloat16), pool_w_ref[...],
                    preferred_element_type=jnp.float32) + pool_b_ref[...])
        logits = jnp.dot(pooled.astype(jnp.bfloat16), cls_w_ref[...],
                         preferred_element_type=jnp.float32) + cls_b_ref[...]  # (B, L)

        # mean cross-entropy -> scalar in SMEM (labels read from SMEM scalars)
        mx = jnp.max(logits, axis=-1, keepdims=True)
        z = logits - mx
        lse = jnp.log(jnp.sum(jnp.exp(z), axis=-1, keepdims=True))
        logp = z - lse                                                      # (B, L)
        lab_iota = jax.lax.broadcasted_iota(jnp.int32, (1, n_labels), 1)
        total = 0.0
        for b in range(batch):
            onehot = (lab_iota == labels_ref[b]).astype(jnp.float32)
            total = total + (-jnp.sum(onehot * logp[b:b + 1, :]))
        loss_ref[0] = total / batch

        # argmax (first maximal index), keepdim=True
        idx = jax.lax.broadcasted_iota(jnp.int32, (batch, n_labels), 1)
        is_max = logits == jnp.max(logits, axis=-1, keepdims=True)
        pred = jnp.min(jnp.where(is_max, idx, n_labels), axis=-1, keepdims=True)
        pred_ref[...] = pred.astype(jnp.int32)


def bert_forward_pallas(stacked, emb, add_mask, labels):
    M, H = emb.shape
    B, S = add_mask.shape
    L, I, NL = N_LAYERS, INTERMEDIATE, N_LABELS

    def const_spec(shape):
        return pl.BlockSpec(shape, lambda l, _n=len(shape): (0,) * _n)

    def layer_spec(shape):                       # shape = (L, ...) stacked array
        blk = (1,) + tuple(shape[1:])
        return pl.BlockSpec(blk, lambda l, _n=len(shape): (l,) + (0,) * (_n - 1))

    kernel = functools.partial(
        _bert_stack_kernel,
        batch=B, seq=S, n_heads=N_HEADS, head_dim=HEAD_DIM,
        hidden=H, n_labels=NL, eps=LN_EPS,
    )

    in_specs = [
        const_spec((M, H)),                      # emb
        const_spec((B, S)),                      # additive attention mask
        const_spec((1, H)),                      # emb LN gamma
        const_spec((1, H)),                      # emb LN beta
        layer_spec((L, H, 3 * H)),               # qkv_w (bf16)
        layer_spec((L, 1, 3 * H)),               # qkv_b
        layer_spec((L, N_HEADS, HEAD_DIM, H)),   # ao_w, head-split (bf16)
        layer_spec((L, 1, H)),                   # ao_b
        layer_spec((L, 1, H)),                   # ln1_g
        layer_spec((L, 1, H)),                   # ln1_b
        layer_spec((L, H, I)),                   # ff1_w (bf16)
        layer_spec((L, 1, I)),                   # ff1_b
        layer_spec((L, I, H)),                   # ff2_w (bf16)
        layer_spec((L, 1, H)),                   # ff2_b
        layer_spec((L, 1, H)),                   # ln2_g
        layer_spec((L, 1, H)),                   # ln2_b
        const_spec((H, H)),                      # pool_w (bf16)
        const_spec((1, H)),                      # pool_b
        const_spec((H, NL)),                     # cls_w (bf16)
        const_spec((1, NL)),                     # cls_b
        pl.BlockSpec(memory_space=pltpu.MemorySpace.SMEM),   # labels (B,) int32
    ]
    out_specs = (
        pl.BlockSpec(memory_space=pltpu.MemorySpace.SMEM),   # scalar loss
        const_spec((B, 1)),                                  # predicted labels
    )

    loss, pred = pl.pallas_call(
        kernel,
        grid=(L,),
        in_specs=in_specs,
        out_specs=out_specs,
        out_shape=(
            jax.ShapeDtypeStruct((1,), jnp.float32),
            jax.ShapeDtypeStruct((B, 1), jnp.int32),
        ),
        scratch_shapes=[pltpu.VMEM((M, H), jnp.float32)],    # carried activation
        compiler_params=pltpu.CompilerParams(dimension_semantics=("arbitrary",)),
    )(
        emb, add_mask, stacked["emb_ln_g"], stacked["emb_ln_b"],
        stacked["qkv_w"], stacked["qkv_b"], stacked["ao_w"], stacked["ao_b"],
        stacked["ln1_g"], stacked["ln1_b"],
        stacked["ff1_w"], stacked["ff1_b"], stacked["ff2_w"], stacked["ff2_b"],
        stacked["ln2_g"], stacked["ln2_b"],
        stacked["pool_w"], stacked["pool_b"], stacked["cls_w"], stacked["cls_b"],
        labels,
    )
    return loss[0], pred


# ----------------------------- parameter init (deterministic) ---------------
def init_params(key):
    def nrm(k, shape, std=0.02):
        return jax.random.normal(k, shape, jnp.float32) * std

    H, I, L = HIDDEN, INTERMEDIATE, N_LAYERS
    keys = iter(jax.random.split(key, 3 + 6 * L + 2))

    params = {
        "word_emb": nrm(next(keys), (VOCAB, H)),
        "pos_emb": nrm(next(keys), (MAX_SEQ, H)),
        "type_emb": nrm(next(keys), (2, H)),
    }

    qkv_w, ao_w, ff1_w, ff2_w = [], [], [], []
    for _ in range(L):
        q = nrm(next(keys), (H, H))
        k = nrm(next(keys), (H, H))
        v = nrm(next(keys), (H, H))
        qkv_w.append(jnp.concatenate([q, k, v], axis=1))        # fused QKV (H, 3H)
        ao_w.append(nrm(next(keys), (H, H)))
        ff1_w.append(nrm(next(keys), (H, I)))
        ff2_w.append(nrm(next(keys), (I, H)))

    # Stacked-per-layer encoder weights; matmul weights stored in bf16
    # (halves HBM/VMEM weight traffic; MXU is bf16-native on v5e/v6e/v7x).
    params["enc"] = {
        "emb_ln_g": jnp.ones((1, H), jnp.float32),
        "emb_ln_b": jnp.zeros((1, H), jnp.float32),
        "qkv_w": jnp.stack(qkv_w).astype(jnp.bfloat16),                   # (L,H,3H)
        "qkv_b": jnp.zeros((L, 1, 3 * H), jnp.float32),
        "ao_w": jnp.stack(ao_w).reshape(L, N_HEADS, HEAD_DIM, H).astype(jnp.bfloat16),
        "ao_b": jnp.zeros((L, 1, H), jnp.float32),
        "ln1_g": jnp.ones((L, 1, H), jnp.float32),
        "ln1_b": jnp.zeros((L, 1, H), jnp.float32),
        "ff1_w": jnp.stack(ff1_w).astype(jnp.bfloat16),                   # (L,H,I)
        "ff1_b": jnp.zeros((L, 1, I), jnp.float32),
        "ff2_w": jnp.stack(ff2_w).astype(jnp.bfloat16),                   # (L,I,H)
        "ff2_b": jnp.zeros((L, 1, H), jnp.float32),
        "ln2_g": jnp.ones((L, 1, H), jnp.float32),
        "ln2_b": jnp.zeros((L, 1, H), jnp.float32),
        "pool_w": nrm(next(keys), (H, H)).astype(jnp.bfloat16),
        "pool_b": jnp.zeros((1, H), jnp.float32),
        "cls_w": nrm(next(keys), (H, N_LABELS)).astype(jnp.bfloat16),
        "cls_b": jnp.zeros((1, N_LABELS), jnp.float32),
    }
    return params


# ----------------------------- forward (BertLinear.forward) -----------------
def bert_linear_forward(params, input_ids, mask, label):
    B, S = input_ids.shape
    H = HIDDEN

    # embedding gathers / broadcast adds are glue in plain JAX; the embedding
    # LayerNorm is folded into grid step 0 of the fused kernel.
    word = jnp.take(params["word_emb"], input_ids, axis=0)       # (B,S,H)
    pos = params["pos_emb"][:S][None, :, :]                      # (1,S,H)
    typ = params["type_emb"][0][None, None, :]                   # token_type_ids = 0
    emb = (word + pos + typ).reshape(B * S, H)

    # HF-style additive attention mask: (1 - mask) * -10000
    add_mask = (1.0 - mask.astype(jnp.float32)) * -10000.0       # (B,S)

    loss, pre_label = bert_forward_pallas(
        params["enc"], emb, add_mask, label.astype(jnp.int32))
    return loss, pre_label


# ----------------------------- main ------------------------------------------
if __name__ == "__main__":
    key = jax.random.PRNGKey(0)
    k_par, k_ids, k_lbl = jax.random.split(key, 3)

    B, S = 2, MAX_SEQ
    params = init_params(k_par)
    input_ids = jax.random.randint(k_ids, (B, S), 0, VOCAB, dtype=jnp.int32)
    mask = jnp.ones((B, S), dtype=jnp.int32).at[1, S - 2:].set(0)   # pad 2 tokens
    label = jax.random.randint(k_lbl, (B,), 0, N_LABELS, dtype=jnp.int32)

    loss, pre_label = jax.jit(bert_linear_forward)(params, input_ids, mask, label)
    jax.block_until_ready((loss, pre_label))

    assert loss.shape == () and pre_label.shape == (B, 1)
    print("KERNEL_OK")
</pallas_src>

<mosaic_0001>
module attributes {stable_mosaic.version = 11 : i64} {
  func.func @_bert_stack_kernel(%arg0: i32, %arg1: memref<16x32xf32, #tpu.memory_space<vmem>>, %arg2: memref<2x8xf32, #tpu.memory_space<vmem>>, %arg3: memref<1x32xf32, #tpu.memory_space<vmem>>, %arg4: memref<1x32xf32, #tpu.memory_space<vmem>>, %arg5: memref<1x32x96xbf16, #tpu.memory_space<vmem>>, %arg6: memref<1x1x96xf32, #tpu.memory_space<vmem>>, %arg7: memref<1x4x8x32xbf16, #tpu.memory_space<vmem>>, %arg8: memref<1x1x32xf32, #tpu.memory_space<vmem>>, %arg9: memref<1x1x32xf32, #tpu.memory_space<vmem>>, %arg10: memref<1x1x32xf32, #tpu.memory_space<vmem>>, %arg11: memref<1x32x64xbf16, #tpu.memory_space<vmem>>, %arg12: memref<1x1x64xf32, #tpu.memory_space<vmem>>, %arg13: memref<1x64x32xbf16, #tpu.memory_space<vmem>>, %arg14: memref<1x1x32xf32, #tpu.memory_space<vmem>>, %arg15: memref<1x1x32xf32, #tpu.memory_space<vmem>>, %arg16: memref<1x1x32xf32, #tpu.memory_space<vmem>>, %arg17: memref<32x32xbf16, #tpu.memory_space<vmem>>, %arg18: memref<1x32xf32, #tpu.memory_space<vmem>>, %arg19: memref<32x3xbf16, #tpu.memory_space<vmem>>, %arg20: memref<1x3xf32, #tpu.memory_space<vmem>>, %arg21: memref<2xi32, #tpu.memory_space<smem>>, %arg22: memref<1xf32, #tpu.memory_space<smem>>, %arg23: memref<2x1xi32, #tpu.memory_space<vmem>>, %arg24: memref<16x32xf32, #tpu.memory_space<vmem>>) attributes {dimension_semantics = [#tpu.dimension_semantics<arbitrary>], iteration_bounds = array<i64: 2>, scalar_prefetch = 0 : i64, scratch_operands = 1 : i64, tpu.core_type = #tpu.core_type<tc>, window_params = [{pipeline_mode = #tpu.pipeline_mode<synchronous>, transform_indices = @transform_0, window_bounds = array<i64: 16, 32>}, {pipeline_mode = #tpu.pipeline_mode<synchronous>, transform_indices = @transform_1, window_bounds = array<i64: 2, 8>}, {pipeline_mode = #tpu.pipeline_mode<synchronous>, transform_indices = @transform_2, window_bounds = array<i64: 1, 32>}, {pipeline_mode = #tpu.pipeline_mode<synchronous>, transform_indices = @transform_3, window_bounds = array<i64: 1, 32>}, {transform_indices = @transform_4, window_bounds = array<i64: 1, 32, 96>}, {transform_indices = @transform_5, window_bounds = array<i64: 1, 1, 96>}, {transform_indices = @transform_6, window_bounds = array<i64: 1, 4, 8, 32>}, {transform_indices = @transform_7, window_bounds = array<i64: 1, 1, 32>}, {transform_indices = @transform_8, window_bounds = array<i64: 1, 1, 32>}, {transform_indices = @transform_9, window_bounds = array<i64: 1, 1, 32>}, {transform_indices = @transform_10, window_bounds = array<i64: 1, 32, 64>}, {transform_indices = @transform_11, window_bounds = array<i64: 1, 1, 64>}, {transform_indices = @transform_12, window_bounds = array<i64: 1, 64, 32>}, {transform_indices = @transform_13, window_bounds = array<i64: 1, 1, 32>}, {transform_indices = @transform_14, window_bounds = array<i64: 1, 1, 32>}, {transform_indices = @transform_15, window_bounds = array<i64: 1, 1, 32>}, {pipeline_mode = #tpu.pipeline_mode<synchronous>, transform_indices = @transform_16, window_bounds = array<i64: 32, 32>}, {pipeline_mode = #tpu.pipeline_mode<synchronous>, transform_indices = @transform_17, window_bounds = array<i64: 1, 32>}, {pipeline_mode = #tpu.pipeline_mode<synchronous>, transform_indices = @transform_18, window_bounds = array<i64: 32, 3>}, {pipeline_mode = #tpu.pipeline_mode<synchronous>, transform_indices = @transform_19, window_bounds = array<i64: 1, 3>}, {transform_indices = @transform_20, window_bounds = array<i64: 2>}, {transform_indices = @transform_21, window_bounds = array<i64: 1>}, {pipeline_mode = #tpu.pipeline_mode<synchronous>, transform_indices = @transform_22, window_bounds = array<i64: 2, 1>}]} {
    %c0_i32 = arith.constant 0 : i32
    %0 = arith.cmpi eq, %arg0, %c0_i32 : i32
    %1 = arith.extui %0 : i1 to i32
    %c0_i32_0 = arith.constant 0 : i32
    %2 = arith.cmpi ne, %1, %c0_i32_0 : i32
    scf.if %2 {
      %c0_135 = arith.constant 0 : index
      %c0_136 = arith.constant 0 : index
      %289 = vector.load %arg1[%c0_135, %c0_136] : memref<16x32xf32, #tpu.memory_space<vmem>>, vector<16x32xf32>
      %c0_137 = arith.constant 0 : index
      %c0_138 = arith.constant 0 : index
      %290 = vector.load %arg3[%c0_137, %c0_138] : memref<1x32xf32, #tpu.memory_space<vmem>>, vector<1x32xf32>
      %c0_139 = arith.constant 0 : index
      %c0_140 = arith.constant 0 : index
      %291 = vector.load %arg4[%c0_139, %c0_140] : memref<1x32xf32, #tpu.memory_space<vmem>>, vector<1x32xf32>
      %cst_141 = arith.constant dense<0.000000e+00> : vector<16xf32>
      %292 = vector.multi_reduction <add>, %289, %cst_141 [1] : vector<16x32xf32> to vector<16xf32>
      %293 = vector.shape_cast %292 : vector<16xf32> to vector<16x1xf32>
      %cst_142 = arith.constant 3.200000e+01 : f32
      %294 = vector.broadcast %cst_142 : f32 to vector<16x1xf32>
      %295 = arith.divf %293, %294 : vector<16x1xf32>
      %296 = vector.broadcast %295 : vector<16x1xf32> to vector<16x32xf32>
      %297 = arith.subf %289, %296 : vector<16x32xf32>
      %298 = arith.mulf %297, %297 : vector<16x32xf32>
      %cst_143 = arith.constant dense<0.000000e+00> : vector<16xf32>
      %299 = vector.multi_reduction <add>, %298, %cst_143 [1] : vector<16x32xf32> to vector<16xf32>
      %300 = vector.shape_cast %299 : vector<16xf32> to vector<16x1xf32>
      %cst_144 = arith.constant 3.200000e+01 : f32
      %301 = vector.broadcast %cst_144 : f32 to vector<16x1xf32>
      %302 = arith.divf %300, %301 : vector<16x1xf32>
      %cst_145 = arith.constant 9.99999996E-13 : f32
      %303 = vector.broadcast %cst_145 : f32 to vector<16x1xf32>
      %304 = arith.addf %302, %303 : vector<16x1xf32>
      %305 = math.rsqrt %304 : vector<16x1xf32>
      %306 = vector.broadcast %305 : vector<16x1xf32> to vector<16x32xf32>
      %307 = arith.mulf %297, %306 : vector<16x32xf32>
      %308 = vector.broadcast %290 : vector<1x32xf32> to vector<16x32xf32>
      %309 = arith.mulf %307, %308 : vector<16x32xf32>
      %310 = vector.broadcast %291 : vector<1x32xf32> to vector<16x32xf32>
      %311 = arith.addf %309, %310 : vector<16x32xf32>
      %c0_146 = arith.constant 0 : index
      %c0_147 = arith.constant 0 : index
      %312 = vector.load %arg24[%c0_146, %c0_147] : memref<16x32xf32, #tpu.memory_space<vmem>>, vector<16x32xf32>
      tpu.vector_store %arg24[%c0_146, %c0_147], %311 {strides = array<i32>} : memref<16x32xf32, #tpu.memory_space<vmem>>, vector<16x32xf32>,
    } else {
    }
    %c0 = arith.constant 0 : index
    %c0_1 = arith.constant 0 : index
    %3 = vector.load %arg24[%c0, %c0_1] : memref<16x32xf32, #tpu.memory_space<vmem>>, vector<16x32xf32>
    %4 = arith.truncf %3 : vector<16x32xf32> to vector<16x32xbf16>
    %c0_2 = arith.constant 0 : index
    %c0_3 = arith.constant 0 : index
    %c0_4 = arith.constant 0 : index
    %5 = vector.load %arg5[%c0_2, %c0_3, %c0_4] : memref<1x32x96xbf16, #tpu.memory_space<vmem>>, vector<1x32x96xbf16>
    %6 = vector.shape_cast %5 : vector<1x32x96xbf16> to vector<32x96xbf16>
    %cst = arith.constant dense<0.000000e+00> : vector<16x96xf32>
    %7 = tpu.matmul %4, %6, %cst {dimension_numbers = #tpu.dot_dimension_numbers<[1], [0], [0], [1], [0, 0, 1, 1], [], []>} : vector<16x32xbf16>, vector<32x96xbf16>, vector<16x96xf32> -> vector<16x96xf32>
    %c0_5 = arith.constant 0 : index
    %c0_6 = arith.constant 0 : index
    %c0_7 = arith.constant 0 : index
    %8 = vector.load %arg6[%c0_5, %c0_6, %c0_7] : memref<1x1x96xf32, #tpu.memory_space<vmem>>, vector<1x1x96xf32>
    %9 = vector.shape_cast %8 : vector<1x1x96xf32> to vector<1x96xf32>
    %10 = vector.broadcast %9 : vector<1x96xf32> to vector<16x96xf32>
    %11 = arith.addf %7, %10 : vector<16x96xf32>
    %12 = arith.truncf %11 : vector<16x96xf32> to vector<16x96xbf16>
    %c0_8 = arith.constant 0 : index
    %c0_9 = arith.constant 0 : index
    %13 = vector.load %arg2[%c0_8, %c0_9] : memref<2x8xf32, #tpu.memory_space<vmem>>, vector<1x8xf32>
    %14 = vector.shape_cast %13 : vector<1x8xf32> to vector<1x8xf32>
    %15 = vector.broadcast %14 : vector<1x8xf32> to vector<8x8xf32>
    %16 = vector.extract_strided_slice %12 {offsets = [0, 0], sizes = [8, 8], strides = [1, 1]} : vector<16x96xbf16> to vector<8x8xbf16>
    %17 = vector.extract_strided_slice %12 {offsets = [0, 32], sizes = [8, 8], strides = [1, 1]} : vector<16x96xbf16> to vector<8x8xbf16>
    %18 = vector.extract_strided_slice %12 {offsets = [0, 64], sizes = [8, 8], strides = [1, 1]} : vector<16x96xbf16> to vector<8x8xbf16>
    %cst_10 = arith.constant dense<0.000000e+00> : vector<8x8xf32>
    %19 = tpu.matmul %16, %17, %cst_10 {dimension_numbers = #tpu.dot_dimension_numbers<[1], [1], [0], [0], [0, 0, 1, 0], [], []>} : vector<8x8xbf16>, vector<8x8xbf16>, vector<8x8xf32> -> vector<8x8xf32>
    %cst_11 = arith.constant 0.353553385 : f32
    %20 = vector.broadcast %cst_11 : f32 to vector<8x8xf32>
    %21 = arith.mulf %19, %20 : vector<8x8xf32>
    %22 = arith.addf %21, %15 : vector<8x8xf32>
    %cst_12 = arith.constant dense<0xFF800000> : vector<8xf32>
    %23 = vector.multi_reduction <maximumf>, %22, %cst_12 [1] : vector<8x8xf32> to vector<8xf32>
    %24 = vector.shape_cast %23 : vector<8xf32> to vector<8x1xf32>
    %25 = vector.broadcast %24 : vector<8x1xf32> to vector<8x8xf32>
    %26 = arith.subf %22, %25 : vector<8x8xf32>
    %27 = math.exp %26 : vector<8x8xf32>
    %cst_13 = arith.constant dense<0.000000e+00> : vector<8xf32>
    %28 = vector.multi_reduction <add>, %27, %cst_13 [1] : vector<8x8xf32> to vector<8xf32>
    %29 = vector.shape_cast %28 : vector<8xf32> to vector<8x1xf32>
    %30 = vector.broadcast %29 : vector<8x1xf32> to vector<8x8xf32>
    %31 = arith.divf %27, %30 : vector<8x8xf32>
    %32 = arith.truncf %31 : vector<8x8xf32> to vector<8x8xbf16>
    %cst_14 = arith.constant dense<0.000000e+00> : vector<8x8xf32>
    %33 = tpu.matmul %32, %18, %cst_14 {dimension_numbers = #tpu.dot_dimension_numbers<[1], [0], [0], [1], [0, 0, 1, 1], [], []>} : vector<8x8xbf16>, vector<8x8xbf16>, vector<8x8xf32> -> vector<8x8xf32>
    %c0_15 = arith.constant 0 : index
    %c0_16 = arith.constant 0 : index
    %c0_17 = arith.constant 0 : index
    %c0_18 = arith.constant 0 : index
    %34 = vector.load %arg7[%c0_15, %c0_16, %c0_17, %c0_18] : memref<1x4x8x32xbf16, #tpu.memory_space<vmem>>, vector<1x1x8x32xbf16>
    %35 = vector.shape_cast %34 : vector<1x1x8x32xbf16> to vector<8x32xbf16>
    %36 = arith.truncf %33 : vector<8x8xf32> to vector<8x8xbf16>
    %cst_19 = arith.constant dense<0.000000e+00> : vector<8x32xf32>
    %37 = tpu.matmul %36, %35, %cst_19 {dimension_numbers = #tpu.dot_dimension_numbers<[1], [0], [0], [1], [0, 0, 1, 1], [], []>} : vector<8x8xbf16>, vector<8x32xbf16>, vector<8x32xf32> -> vector<8x32xf32>
    %38 = vector.extract_strided_slice %12 {offsets = [0, 8], sizes = [8, 8], strides = [1, 1]} : vector<16x96xbf16> to vector<8x8xbf16>
    %39 = vector.extract_strided_slice %12 {offsets = [0, 40], sizes = [8, 8], strides = [1, 1]} : vector<16x96xbf16> to vector<8x8xbf16>
    %40 = vector.extract_strided_slice %12 {offsets = [0, 72], sizes = [8, 8], strides = [1, 1]} : vector<16x96xbf16> to vector<8x8xbf16>
    %cst_20 = arith.constant dense<0.000000e+00> : vector<8x8xf32>
    %41 = tpu.matmul %38, %39, %cst_20 {dimension_numbers = #tpu.dot_dimension_numbers<[1], [1], [0], [0], [0, 0, 1, 0], [], []>} : vector<8x8xbf16>, vector<8x8xbf16>, vector<8x8xf32> -> vector<8x8xf32>
    %cst_21 = arith.constant 0.353553385 : f32
    %42 = vector.broadcast %cst_21 : f32 to vector<8x8xf32>
    %43 = arith.mulf %41, %42 : vector<8x8xf32>
    %44 = arith.addf %43, %15 : vector<8x8xf32>
    %cst_22 = arith.constant dense<0xFF800000> : vector<8xf32>
    %45 = vector.multi_reduction <maximumf>, %44, %cst_22 [1] : vector<8x8xf32> to vector<8xf32>
    %46 = vector.shape_cast %45 : vector<8xf32> to vector<8x1xf32>
    %47 = vector.broadcast %46 : vector<8x1xf32> to vector<8x8xf32>
    %48 = arith.subf %44, %47 : vector<8x8xf32>
    %49 = math.exp %48 : vector<8x8xf32>
    %cst_23 = arith.constant dense<0.000000e+00> : vector<8xf32>
    %50 = vector.multi_reduction <add>, %49, %cst_23 [1] : vector<8x8xf32> to vector<8xf32>
    %51 = vector.shape_cast %50 : vector<8xf32> to vector<8x1xf32>
    %52 = vector.broadcast %51 : vector<8x1xf32> to vector<8x8xf32>
    %53 = arith.divf %49, %52 : vector<8x8xf32>
    %54 = arith.truncf %53 : vector<8x8xf32> to vector<8x8xbf16>
    %cst_24 = arith.constant dense<0.000000e+00> : vector<8x8xf32>
    %55 = tpu.matmul %54, %40, %cst_24 {dimension_numbers = #tpu.dot_dimension_numbers<[1], [0], [0], [1], [0, 0, 1, 1], [], []>} : vector<8x8xbf16>, vector<8x8xbf16>, vector<8x8xf32> -> vector<8x8xf32>
    %c0_25 = arith.constant 0 : index
    %c1 = arith.constant 1 : index
    %c0_26 = arith.constant 0 : index
    %c0_27 = arith.constant 0 : index
    %56 = vector.load %arg7[%c0_25, %c1, %c0_26, %c0_27] : memref<1x4x8x32xbf16, #tpu.memory_space<vmem>>, vector<1x1x8x32xbf16>
    %57 = vector.shape_cast %56 : vector<1x1x8x32xbf16> to vector<8x32xbf16>
    %58 = arith.truncf %55 : vector<8x8xf32> to vector<8x8xbf16>
    %cst_28 = arith.constant dense<0.000000e+00> : vector<8x32xf32>
    %59 = tpu.matmul %58, %57, %cst_28 {dimension_numbers = #tpu.dot_dimension_numbers<[1], [0], [0], [1], [0, 0, 1, 1], [], []>} : vector<8x8xbf16>, vector<8x32xbf16>, vector<8x32xf32> -> vector<8x32xf32>
    %60 = arith.addf %37, %59 : vector<8x32xf32>
    %61 = vector.extract_strided_slice %12 {offsets = [0, 16], sizes = [8, 8], strides = [1, 1]} : vector<16x96xbf16> to vector<8x8xbf16>
    %62 = vector.extract_strided_slice %12 {offsets = [0, 48], sizes = [8, 8], strides = [1, 1]} : vector<16x96xbf16> to vector<8x8xbf16>
    %63 = vector.extract_strided_slice %12 {offsets = [0, 80], sizes = [8, 8], strides = [1, 1]} : vector<16x96xbf16> to vector<8x8xbf16>
    %cst_29 = arith.constant dense<0.000000e+00> : vector<8x8xf32>
    %64 = tpu.matmul %61, %62, %cst_29 {dimension_numbers = #tpu.dot_dimension_numbers<[1], [1], [0], [0], [0, 0, 1, 0], [], []>} : vector<8x8xbf16>, vector<8x8xbf16>, vector<8x8xf32> -> vector<8x8xf32>
    %cst_30 = arith.constant 0.353553385 : f32
    %65 = vector.broadcast %cst_30 : f32 to vector<8x8xf32>
    %66 = arith.mulf %64, %65 : vector<8x8xf32>
    %67 = arith.addf %66, %15 : vector<8x8xf32>
    %cst_31 = arith.constant dense<0xFF800000> : vector<8xf32>
    %68 = vector.multi_reduction <maximumf>, %67, %cst_31 [1] : vector<8x8xf32> to vector<8xf32>
    %69 = vector.shape_cast %68 : vector<8xf32> to vector<8x1xf32>
    %70 = vector.broadcast %69 : vector<8x1xf32> to vector<8x8xf32>
    %71 = arith.subf %67, %70 : vector<8x8xf32>
    %72 = math.exp %71 : vector<8x8xf32>
    %cst_32 = arith.constant dense<0.000000e+00> : vector<8xf32>
    %73 = vector.multi_reduction <add>, %72, %cst_32 [1] : vector<8x8xf32> to vector<8xf32>
    %74 = vector.shape_cast %73 : vector<8xf32> to vector<8x1xf32>
    %75 = vector.broadcast %74 : vector<8x1xf32> to vector<8x8xf32>
    %76 = arith.divf %72, %75 : vector<8x8xf32>
    %77 = arith.truncf %76 : vector<8x8xf32> to vector<8x8xbf16>
    %cst_33 = arith.constant dense<0.000000e+00> : vector<8x8xf32>
    %78 = tpu.matmul %77, %63, %cst_33 {dimension_numbers = #tpu.dot_dimension_numbers<[1], [0], [0], [1], [0, 0, 1, 1], [], []>} : vector<8x8xbf16>, vector<8x8xbf16>, vector<8x8xf32> -> vector<8x8xf32>
    %c0_34 = arith.constant 0 : index
    %c2 = arith.constant 2 : index
    %c0_35 = arith.constant 0 : index
    %c0_36 = arith.constant 0 : index
    %79 = vector.load %arg7[%c0_34, %c2, %c0_35, %c0_36] : memref<1x4x8x32xbf16, #tpu.memory_space<vmem>>, vector<1x1x8x32xbf16>
    %80 = vector.shape_cast %79 : vector<1x1x8x32xbf16> to vector<8x32xbf16>
    %81 = arith.truncf %78 : vector<8x8xf32> to vector<8x8xbf16>
    %cst_37 = arith.constant dense<0.000000e+00> : vector<8x32xf32>
    %82 = tpu.matmul %81, %80, %cst_37 {dimension_numbers = #tpu.dot_dimension_numbers<[1], [0], [0], [1], [0, 0, 1, 1], [], []>} : vector<8x8xbf16>, vector<8x32xbf16>, vector<8x32xf32> -> vector<8x32xf32>
    %83 = arith.addf %60, %82 : vector<8x32xf32>
    %84 = vector.extract_strided_slice %12 {offsets = [0, 24], sizes = [8, 8], strides = [1, 1]} : vector<16x96xbf16> to vector<8x8xbf16>
    %85 = vector.extract_strided_slice %12 {offsets = [0, 56], sizes = [8, 8], strides = [1, 1]} : vector<16x96xbf16> to vector<8x8xbf16>
    %86 = vector.extract_strided_slice %12 {offsets = [0, 88], sizes = [8, 8], strides = [1, 1]} : vector<16x96xbf16> to vector<8x8xbf16>
    %cst_38 = arith.constant dense<0.000000e+00> : vector<8x8xf32>
    %87 = tpu.matmul %84, %85, %cst_38 {dimension_numbers = #tpu.dot_dimension_numbers<[1], [1], [0], [0], [0, 0, 1, 0], [], []>} : vector<8x8xbf16>, vector<8x8xbf16>, vector<8x8xf32> -> vector<8x8xf32>
    %cst_39 = arith.constant 0.353553385 : f32
    %88 = vector.broadcast %cst_39 : f32 to vector<8x8xf32>
    %89 = arith.mulf %87, %88 : vector<8x8xf32>
    %90 = arith.addf %89, %15 : vector<8x8xf32>
    %cst_40 = arith.constant dense<0xFF800000> : vector<8xf32>
    %91 = vector.multi_reduction <maximumf>, %90, %cst_40 [1] : vector<8x8xf32> to vector<8xf32>
    %92 = vector.shape_cast %91 : vector<8xf32> to vector<8x1xf32>
    %93 = vector.broadcast %92 : vector<8x1xf32> to vector<8x8xf32>
    %94 = arith.subf %90, %93 : vector<8x8xf32>
    %95 = math.exp %94 : vector<8x8xf32>
    %cst_41 = arith.constant dense<0.000000e+00> : vector<8xf32>
    %96 = vector.multi_reduction <add>, %95, %cst_41 [1] : vector<8x8xf32> to vector<8xf32>
    %97 = vector.shape_cast %96 : vector<8xf32> to vector<8x1xf32>
    %98 = vector.broadcast %97 : vector<8x1xf32> to vector<8x8xf32>
    %99 = arith.divf %95, %98 : vector<8x8xf32>
    %100 = arith.truncf %99 : vector<8x8xf32> to vector<8x8xbf16>
    %cst_42 = arith.constant dense<0.000000e+00> : vector<8x8xf32>
    %101 = tpu.matmul %100, %86, %cst_42 {dimension_numbers = #tpu.dot_dimension_numbers<[1], [0], [0], [1], [0, 0, 1, 1], [], []>} : vector<8x8xbf16>, vector<8x8xbf16>, vector<8x8xf32> -> vector<8x8xf32>
    %c0_43 = arith.constant 0 : index
    %c3 = arith.constant 3 : index
    %c0_44 = arith.constant 0 : index
    %c0_45 = arith.constant 0 : index
    %102 = vector.load %arg7[%c0_43, %c3, %c0_44, %c0_45] : memref<1x4x8x32xbf16, #tpu.memory_space<vmem>>, vector<1x1x8x32xbf16>
    %103 = vector.shape_cast %102 : vector<1x1x8x32xbf16> to vector<8x32xbf16>
    %104 = arith.truncf %101 : vector<8x8xf32> to vector<8x8xbf16>
    %cst_46 = arith.constant dense<0.000000e+00> : vector<8x32xf32>
    %105 = tpu.matmul %104, %103, %cst_46 {dimension_numbers = #tpu.dot_dimension_numbers<[1], [0], [0], [1], [0, 0, 1, 1], [], []>} : vector<8x8xbf16>, vector<8x32xbf16>, vector<8x32xf32> -> vector<8x32xf32>
    %106 = arith.addf %83, %105 : vector<8x32xf32>
    %c1_47 = arith.constant 1 : index
    %c0_48 = arith.constant 0 : index
    %107 = vector.load %arg2[%c1_47, %c0_48] : memref<2x8xf32, #tpu.memory_space<vmem>>, vector<1x8xf32>
    %108 = vector.shape_cast %107 : vector<1x8xf32> to vector<1x8xf32>
    %109 = vector.broadcast %108 : vector<1x8xf32> to vector<8x8xf32>
    %110 = vector.extract_strided_slice %12 {offsets = [8, 0], sizes = [8, 8], strides = [1, 1]} : vector<16x96xbf16> to vector<8x8xbf16>
    %111 = vector.extract_strided_slice %12 {offsets = [8, 32], sizes = [8, 8], strides = [1, 1]} : vector<16x96xbf16> to vector<8x8xbf16>
    %112 = vector.extract_strided_slice %12 {offsets = [8, 64], sizes = [8, 8], strides = [1, 1]} : vector<16x96xbf16> to vector<8x8xbf16>
    %cst_49 = arith.constant dense<0.000000e+00> : vector<8x8xf32>
    %113 = tpu.matmul %110, %111, %cst_49 {dimension_numbers = #tpu.dot_dimension_numbers<[1], [1], [0], [0], [0, 0, 1, 0], [], []>} : vector<8x8xbf16>, vector<8x8xbf16>, vector<8x8xf32> -> vector<8x8xf32>
    %cst_50 = arith.constant 0.353553385 : f32
    %114 = vector.broadcast %cst_50 : f32 to vector<8x8xf32>
    %115 = arith.mulf %113, %114 : vector<8x8xf32>
    %116 = arith.addf %115, %109 : vector<8x8xf32>
    %cst_51 = arith.constant dense<0xFF800000> : vector<8xf32>
    %117 = vector.multi_reduction <maximumf>, %116, %cst_51 [1] : vector<8x8xf32> to vector<8xf32>
    %118 = vector.shape_cast %117 : vector<8xf32> to vector<8x1xf32>
    %119 = vector.broadcast %118 : vector<8x1xf32> to vector<8x8xf32>
    %120 = arith.subf %116, %119 : vector<8x8xf32>
    %121 = math.exp %120 : vector<8x8xf32>
    %cst_52 = arith.constant dense<0.000000e+00> : vector<8xf32>
    %122 = vector.multi_reduction <add>, %121, %cst_52 [1] : vector<8x8xf32> to vector<8xf32>
    %123 = vector.shape_cast %122 : vector<8xf32> to vector<8x1xf32>
    %124 = vector.broadcast %123 : vector<8x1xf32> to vector<8x8xf32>
    %125 = arith.divf %121, %124 : vector<8x8xf32>
    %126 = arith.truncf %125 : vector<8x8xf32> to vector<8x8xbf16>
    %cst_53 = arith.constant dense<0.000000e+00> : vector<8x8xf32>
    %127 = tpu.matmul %126, %112, %cst_53 {dimension_numbers = #tpu.dot_dimension_numbers<[1], [0], [0], [1], [0, 0, 1, 1], [], []>} : vector<8x8xbf16>, vector<8x8xbf16>, vector<8x8xf32> -> vector<8x8xf32>
    %c0_54 = arith.constant 0 : index
    %c0_55 = arith.constant 0 : index
    %c0_56 = arith.constant 0 : index
    %c0_57 = arith.constant 0 : index
    %128 = vector.load %arg7[%c0_54, %c0_55, %c0_56, %c0_57] : memref<1x4x8x32xbf16, #tpu.memory_space<vmem>>, vector<1x1x8x32xbf16>
    %129 = vector.shape_cast %128 : vector<1x1x8x32xbf16> to vector<8x32xbf16>
    %130 = arith.truncf %127 : vector<8x8xf32> to vector<8x8xbf16>
    %cst_58 = arith.constant dense<0.000000e+00> : vector<8x32xf32>
    %131 = tpu.matmul %130, %129, %cst_58 {dimension_numbers = #tpu.dot_dimension_numbers<[1], [0], [0], [1], [0, 0, 1, 1], [], []>} : vector<8x8xbf16>, vector<8x32xbf16>, vector<8x32xf32> -> vector<8x32xf32>
    %132 = vector.extract_strided_slice %12 {offsets = [8, 8], sizes = [8, 8], strides = [1, 1]} : vector<16x96xbf16> to vector<8x8xbf16>
    %133 = vector.extract_strided_slice %12 {offsets = [8, 40], sizes = [8, 8], strides = [1, 1]} : vector<16x96xbf16> to vector<8x8xbf16>
    %134 = vector.extract_strided_slice %12 {offsets = [8, 72], sizes = [8, 8], strides = [1, 1]} : vector<16x96xbf16> to vector<8x8xbf16>
    %cst_59 = arith.constant dense<0.000000e+00> : vector<8x8xf32>
    %135 = tpu.matmul %132, %133, %cst_59 {dimension_numbers = #tpu.dot_dimension_numbers<[1], [1], [0], [0], [0, 0, 1, 0], [], []>} : vector<8x8xbf16>, vector<8x8xbf16>, vector<8x8xf32> -> vector<8x8xf32>
    %cst_60 = arith.constant 0.353553385 : f32
    %136 = vector.broadcast %cst_60 : f32 to vector<8x8xf32>
    %137 = arith.mulf %135, %136 : vector<8x8xf32>
    %138 = arith.addf %137, %109 : vector<8x8xf32>
    %cst_61 = arith.constant dense<0xFF800000> : vector<8xf32>
    %139 = vector.multi_reduction <maximumf>, %138, %cst_61 [1] : vector<8x8xf32> to vector<8xf32>
    %140 = vector.shape_cast %139 : vector<8xf32> to vector<8x1xf32>
    %141 = vector.broadcast %140 : vector<8x1xf32> to vector<8x8xf32>
    %142 = arith.subf %138, %141 : vector<8x8xf32>
    %143 = math.exp %142 : vector<8x8xf32>
    %cst_62 = arith.constant dense<0.000000e+00> : vector<8xf32>
    %144 = vector.multi_reduction <add>, %143, %cst_62 [1] : vector<8x8xf32> to vector<8xf32>
    %145 = vector.shape_cast %144 : vector<8xf32> to vector<8x1xf32>
    %146 = vector.broadcast %145 : vector<8x1xf32> to vector<8x8xf32>
    %147 = arith.divf %143, %146 : vector<8x8xf32>
    %148 = arith.truncf %147 : vector<8x8xf32> to vector<8x8xbf16>
    %cst_63 = arith.constant dense<0.000000e+00> : vector<8x8xf32>
    %149 = tpu.matmul %148, %134, %cst_63 {dimension_numbers = #tpu.dot_dimension_numbers<[1], [0], [0], [1], [0, 0, 1, 1], [], []>} : vector<8x8xbf16>, vector<8x8xbf16>, vector<8x8xf32> -> vector<8x8xf32>
    %c0_64 = arith.constant 0 : index
    %c1_65 = arith.constant 1 : index
    %c0_66 = arith.constant 0 : index
    %c0_67 = arith.constant 0 : index
    %150 = vector.load %arg7[%c0_64, %c1_65, %c0_66, %c0_67] : memref<1x4x8x32xbf16, #tpu.memory_space<vmem>>, vector<1x1x8x32xbf16>
    %151 = vector.shape_cast %150 : vector<1x1x8x32xbf16> to vector<8x32xbf16>
    %152 = arith.truncf %149 : vector<8x8xf32> to vector<8x8xbf16>
    %cst_68 = arith.constant dense<0.000000e+00> : vector<8x32xf32>
    %153 = tpu.matmul %152, %151, %cst_68 {dimension_numbers = #tpu.dot_dimension_numbers<[1], [0], [0], [1], [0, 0, 1, 1], [], []>} : vector<8x8xbf16>, vector<8x32xbf16>, vector<8x32xf32> -> vector<8x32xf32>
    %154 = arith.addf %131, %153 : vector<8x32xf32>
    %155 = vector.extract_strided_slice %12 {offsets = [8, 16], sizes = [8, 8], strides = [1, 1]} : vector<16x96xbf16> to vector<8x8xbf16>
    %156 = vector.extract_strided_slice %12 {offsets = [8, 48], sizes = [8, 8], strides = [1, 1]} : vector<16x96xbf16> to vector<8x8xbf16>
    %157 = vector.extract_strided_slice %12 {offsets = [8, 80], sizes = [8, 8], strides = [1, 1]} : vector<16x96xbf16> to vector<8x8xbf16>
    %cst_69 = arith.constant dense<0.000000e+00> : vector<8x8xf32>
    %158 = tpu.matmul %155, %156, %cst_69 {dimension_numbers = #tpu.dot_dimension_numbers<[1], [1], [0], [0], [0, 0, 1, 0], [], []>} : vector<8x8xbf16>, vector<8x8xbf16>, vector<8x8xf32> -> vector<8x8xf32>
    %cst_70 = arith.constant 0.353553385 : f32
    %159 = vector.broadcast %cst_70 : f32 to vector<8x8xf32>
    %160 = arith.mulf %158, %159 : vector<8x8xf32>
    %161 = arith.addf %160, %109 : vector<8x8xf32>
    %cst_71 = arith.constant dense<0xFF800000> : vector<8xf32>
    %162 = vector.multi_reduction <maximumf>, %161, %cst_71 [1] : vector<8x8xf32> to vector<8xf32>
    %163 = vector.shape_cast %162 : vector<8xf32> to vector<8x1xf32>
    %164 = vector.broadcast %163 : vector<8x1xf32> to vector<8x8xf32>
    %165 = arith.subf %161, %164 : vector<8x8xf32>
    %166 = math.exp %165 : vector<8x8xf32>
    %cst_72 = arith.constant dense<0.000000e+00> : vector<8xf32>
    %167 = vector.multi_reduction <add>, %166, %cst_72 [1] : vector<8x8xf32> to vector<8xf32>
    %168 = vector.shape_cast %167 : vector<8xf32> to vector<8x1xf32>
    %169 = vector.broadcast %168 : vector<8x1xf32> to vector<8x8xf32>
    %170 = arith.divf %166, %169 : vector<8x8xf32>
    %171 = arith.truncf %170 : vector<8x8xf32> to vector<8x8xbf16>
    %cst_73 = arith.constant dense<0.000000e+00> : vector<8x8xf32>
    %172 = tpu.matmul %171, %157, %cst_73 {dimension_numbers = #tpu.dot_dimension_numbers<[1], [0], [0], [1], [0, 0, 1, 1], [], []>} : vector<8x8xbf16>, vector<8x8xbf16>, vector<8x8xf32> -> vector<8x8xf32>
    %c0_74 = arith.constant 0 : index
    %c2_75 = arith.constant 2 : index
    %c0_76 = arith.constant 0 : index
    %c0_77 = arith.constant 0 : index
    %173 = vector.load %arg7[%c0_74, %c2_75, %c0_76, %c0_77] : memref<1x4x8x32xbf16, #tpu.memory_space<vmem>>, vector<1x1x8x32xbf16>
    %174 = vector.shape_cast %173 : vector<1x1x8x32xbf16> to vector<8x32xbf16>
    %175 = arith.truncf %172 : vector<8x8xf32> to vector<8x8xbf16>
    %cst_78 = arith.constant dense<0.000000e+00> : vector<8x32xf32>
    %176 = tpu.matmul %175, %174, %cst_78 {dimension_numbers = #tpu.dot_dimension_numbers<[1], [0], [0], [1], [0, 0, 1, 1], [], []>} : vector<8x8xbf16>, vector<8x32xbf16>, vector<8x32xf32> -> vector<8x32xf32>
    %177 = arith.addf %154, %176 : vector<8x32xf32>
    %178 = vector.extract_strided_slice %12 {offsets = [8, 24], sizes = [8, 8], strides = [1, 1]} : vector<16x96xbf16> to vector<8x8xbf16>
    %179 = vector.extract_strided_slice %12 {offsets = [8, 56], sizes = [8, 8], strides = [1, 1]} : vector<16x96xbf16> to vector<8x8xbf16>
    %180 = vector.extract_strided_slice %12 {offsets = [8, 88], sizes = [8, 8], strides = [1, 1]} : vector<16x96xbf16> to vector<8x8xbf16>
    %cst_79 = arith.constant dense<0.000000e+00> : vector<8x8xf32>
    %181 = tpu.matmul %178, %179, %cst_79 {dimension_numbers = #tpu.dot_dimension_numbers<[1], [1], [0], [0], [0, 0, 1, 0], [], []>} : vector<8x8xbf16>, vector<8x8xbf16>, vector<8x8xf32> -> vector<8x8xf32>
    %cst_80 = arith.constant 0.353553385 : f32
    %182 = vector.broadcast %cst_80 : f32 to vector<8x8xf32>
    %183 = arith.mulf %181, %182 : vector<8x8xf32>
    %184 = arith.addf %183, %109 : vector<8x8xf32>
    %cst_81 = arith.constant dense<0xFF800000> : vector<8xf32>
    %185 = vector.multi_reduction <maximumf>, %184, %cst_81 [1] : vector<8x8xf32> to vector<8xf32>
    %186 = vector.shape_cast %185 : vector<8xf32> to vector<8x1xf32>
    %187 = vector.broadcast %186 : vector<8x1xf32> to vector<8x8xf32>
    %188 = arith.subf %184, %187 : vector<8x8xf32>
    %189 = math.exp %188 : vector<8x8xf32>
    %cst_82 = arith.constant dense<0.000000e+00> : vector<8xf32>
    %190 = vector.multi_reduction <add>, %189, %cst_82 [1] : vector<8x8xf32> to vector<8xf32>
    %191 = vector.shape_cast %190 : vector<8xf32> to vector<8x1xf32>
    %192 = vector.broadcast %191 : vector<8x1xf32> to vector<8x8xf32>
    %193 = arith.divf %189, %192 : vector<8x8xf32>
    %194 = arith.truncf %193 : vector<8x8xf32> to vector<8x8xbf16>
    %cst_83 = arith.constant dense<0.000000e+00> : vector<8x8xf32>
    %195 = tpu.matmul %194, %180, %cst_83 {dimension_numbers = #tpu.dot_dimension_numbers<[1], [0], [0], [1], [0, 0, 1, 1], [], []>} : vector<8x8xbf16>, vector<8x8xbf16>, vector<8x8xf32> -> vector<8x8xf32>
    %c0_84 = arith.constant 0 : index
    %c3_85 = arith.constant 3 : index
    %c0_86 = arith.constant 0 : index
    %c0_87 = arith.constant 0 : index
    %196 = vector.load %arg7[%c0_84, %c3_85, %c0_86, %c0_87] : memref<1x4x8x32xbf16, #tpu.memory_space<vmem>>, vector<1x1x8x32xbf16>
    %197 = vector.shape_cast %196 : vector<1x1x8x32xbf16> to vector<8x32xbf16>
    %198 = arith.truncf %195 : vector<8x8xf32> to vector<8x8xbf16>
    %cst_88 = arith.constant dense<0.000000e+00> : vector<8x32xf32>
    %199 = tpu.matmul %198, %197, %cst_88 {dimension_numbers = #tpu.dot_dimension_numbers<[1], [0], [0], [1], [0, 0, 1, 1], [], []>} : vector<8x8xbf16>, vector<8x32xbf16>, vector<8x32xf32> -> vector<8x32xf32>
    %200 = arith.addf %177, %199 : vector<8x32xf32>
    %201 = tpu.concatenate %106, %200 in 0 : vector<8x32xf32>, vector<8x32xf32> -> vector<16x32xf32>
    %c0_89 = arith.constant 0 : index
    %c0_90 = arith.constant 0 : index
    %c0_91 = arith.constant 0 : index
    %202 = vector.load %arg8[%c0_89, %c0_90, %c0_91] : memref<1x1x32xf32, #tpu.memory_space<vmem>>, vector<1x1x32xf32>
    %203 = vector.shape_cast %202 : vector<1x1x32xf32> to vector<1x32xf32>
    %204 = vector.broadcast %203 : vector<1x32xf32> to vector<16x32xf32>
    %205 = arith.addf %201, %204 : vector<16x32xf32>
    %206 = arith.addf %205, %3 : vector<16x32xf32>
    %c0_92 = arith.constant 0 : index
    %c0_93 = arith.constant 0 : index
    %c0_94 = arith.constant 0 : index
    %207 = vector.load %arg9[%c0_92, %c0_93, %c0_94] : memref<1x1x32xf32, #tpu.memory_space<vmem>>, vector<1x1x32xf32>
    %208 = vector.shape_cast %207 : vector<1x1x32xf32> to vector<1x32xf32>
    %c0_95 = arith.constant 0 : index
    %c0_96 = arith.constant 0 : index
    %c0_97 = arith.constant 0 : index
    %209 = vector.load %arg10[%c0_95, %c0_96, %c0_97] : memref<1x1x32xf32, #tpu.memory_space<vmem>>, vector<1x1x32xf32>
    %210 = vector.shape_cast %209 : vector<1x1x32xf32> to vector<1x32xf32>
    %cst_98 = arith.constant dense<0.000000e+00> : vector<16xf32>
    %211 = vector.multi_reduction <add>, %206, %cst_98 [1] : vector<16x32xf32> to vector<16xf32>
    %212 = vector.shape_cast %211 : vector<16xf32> to vector<16x1xf32>
    %cst_99 = arith.constant 3.200000e+01 : f32
    %213 = vector.broadcast %cst_99 : f32 to vector<16x1xf32>
    %214 = arith.divf %212, %213 : vector<16x1xf32>
    %215 = vector.broadcast %214 : vector<16x1xf32> to vector<16x32xf32>
    %216 = arith.subf %206, %215 : vector<16x32xf32>
    %217 = arith.mulf %216, %216 : vector<16x32xf32>
    %cst_100 = arith.constant dense<0.000000e+00> : vector<16xf32>
    %218 = vector.multi_reduction <add>, %217, %cst_100 [1] : vector<16x32xf32> to vector<16xf32>
    %219 = vector.shape_cast %218 : vector<16xf32> to vector<16x1xf32>
    %cst_101 = arith.constant 3.200000e+01 : f32
    %220 = vector.broadcast %cst_101 : f32 to vector<16x1xf32>
    %221 = arith.divf %219, %220 : vector<16x1xf32>
    %cst_102 = arith.constant 9.99999996E-13 : f32
    %222 = vector.broadcast %cst_102 : f32 to vector<16x1xf32>
    %223 = arith.addf %221, %222 : vector<16x1xf32>
    %224 = math.rsqrt %223 : vector<16x1xf32>
    %225 = vector.broadcast %224 : vector<16x1xf32> to vector<16x32xf32>
    %226 = arith.mulf %216, %225 : vector<16x32xf32>
    %227 = vector.broadcast %208 : vector<1x32xf32> to vector<16x32xf32>
    %228 = arith.mulf %226, %227 : vector<16x32xf32>
    %229 = vector.broadcast %210 : vector<1x32xf32> to vector<16x32xf32>
    %230 = arith.addf %228, %229 : vector<16x32xf32>
    %231 = arith.truncf %230 : vector<16x32xf32> to vector<16x32xbf16>
    %c0_103 = arith.constant 0 : index
    %c0_104 = arith.constant 0 : index
    %c0_105 = arith.constant 0 : index
    %232 = vector.load %arg11[%c0_103, %c0_104, %c0_105] : memref<1x32x64xbf16, #tpu.memory_space<vmem>>, vector<1x32x64xbf16>
    %233 = vector.shape_cast %232 : vector<1x32x64xbf16> to vector<32x64xbf16>
    %cst_106 = arith.constant dense<0.000000e+00> : vector<16x64xf32>
    %234 = tpu.matmul %231, %233, %cst_106 {dimension_numbers = #tpu.dot_dimension_numbers<[1], [0], [0], [1], [0, 0, 1, 1], [], []>} : vector<16x32xbf16>, vector<32x64xbf16>, vector<16x64xf32> -> vector<16x64xf32>
    %c0_107 = arith.constant 0 : index
    %c0_108 = arith.constant 0 : index
    %c0_109 = arith.constant 0 : index
    %235 = vector.load %arg12[%c0_107, %c0_108, %c0_109] : memref<1x1x64xf32, #tpu.memory_space<vmem>>, vector<1x1x64xf32>
    %236 = vector.shape_cast %235 : vector<1x1x64xf32> to vector<1x64xf32>
    %237 = vector.broadcast %236 : vector<1x64xf32> to vector<16x64xf32>
    %238 = arith.addf %234, %237 : vector<16x64xf32>
    %cst_110 = arith.constant 5.000000e-01 : f32
    %239 = vector.broadcast %cst_110 : f32 to vector<16x64xf32>
    %240 = arith.mulf %239, %238 : vector<16x64xf32>
    %cst_111 = arith.constant 4.471500e-02 : f32
    %241 = vector.broadcast %cst_111 : f32 to vector<16x64xf32>
    %242 = arith.mulf %241, %238 : vector<16x64xf32>
    %243 = arith.mulf %242, %238 : vector<16x64xf32>
    %244 = arith.mulf %243, %238 : vector<16x64xf32>
    %245 = arith.addf %238, %244 : vector<16x64xf32>
    %cst_112 = arith.constant 0.797884583 : f32
    %246 = vector.broadcast %cst_112 : f32 to vector<16x64xf32>
    %247 = arith.mulf %246, %245 : vector<16x64xf32>
    %248 = math.tanh %247 : vector<16x64xf32>
    %cst_113 = arith.constant 1.000000e+00 : f32
    %249 = vector.broadcast %cst_113 : f32 to vector<16x64xf32>
    %250 = arith.addf %249, %248 : vector<16x64xf32>
    %251 = arith.mulf %240, %250 : vector<16x64xf32>
    %252 = arith.truncf %251 : vector<16x64xf32> to vector<16x64xbf16>
    %c0_114 = arith.constant 0 : index
    %c0_115 = arith.constant 0 : index
    %c0_116 = arith.constant 0 : index
    %253 = vector.load %arg13[%c0_114, %c0_115, %c0_116] : memref<1x64x32xbf16, #tpu.memory_space<vmem>>, vector<1x64x32xbf16>
    %254 = vector.shape_cast %253 : vector<1x64x32xbf16> to vector<64x32xbf16>
    %cst_117 = arith.constant dense<0.000000e+00> : vector<16x32xf32>
    %255 = tpu.matmul %252, %254, %cst_117 {dimension_numbers = #tpu.dot_dimension_numbers<[1], [0], [0], [1], [0, 0, 1, 1], [], []>} : vector<16x64xbf16>, vector<64x32xbf16>, vector<16x32xf32> -> vector<16x32xf32>
    %c0_118 = arith.constant 0 : index
    %c0_119 = arith.constant 0 : index
    %c0_120 = arith.constant 0 : index
    %256 = vector.load %arg14[%c0_118, %c0_119, %c0_120] : memref<1x1x32xf32, #tpu.memory_space<vmem>>, vector<1x1x32xf32>
    %257 = vector.shape_cast %256 : vector<1x1x32xf32> to vector<1x32xf32>
    %258 = vector.broadcast %257 : vector<1x32xf32> to vector<16x32xf32>
    %259 = arith.addf %255, %258 : vector<16x32xf32>
    %260 = arith.addf %259, %230 : vector<16x32xf32>
    %c0_121 = arith.constant 0 : index
    %c0_122 = arith.constant 0 : index
    %c0_123 = arith.constant 0 : index
    %261 = vector.load %arg15[%c0_121, %c0_122, %c0_123] : memref<1x1x32xf32, #tpu.memory_space<vmem>>, vector<1x1x32xf32>
    %262 = vector.shape_cast %261 : vector<1x1x32xf32> to vector<1x32xf32>
    %c0_124 = arith.constant 0 : index
    %c0_125 = arith.constant 0 : index
    %c0_126 = arith.constant 0 : index
    %263 = vector.load %arg16[%c0_124, %c0_125, %c0_126] : memref<1x1x32xf32, #tpu.memory_space<vmem>>, vector<1x1x32xf32>
    %264 = vector.shape_cast %263 : vector<1x1x32xf32> to vector<1x32xf32>
    %cst_127 = arith.constant dense<0.000000e+00> : vector<16xf32>
    %265 = vector.multi_reduction <add>, %260, %cst_127 [1] : vector<16x32xf32> to vector<16xf32>
    %266 = vector.shape_cast %265 : vector<16xf32> to vector<16x1xf32>
    %cst_128 = arith.constant 3.200000e+01 : f32
    %267 = vector.broadcast %cst_128 : f32 to vector<16x1xf32>
    %268 = arith.divf %266, %267 : vector<16x1xf32>
    %269 = vector.broadcast %268 : vector<16x1xf32> to vector<16x32xf32>
    %270 = arith.subf %260, %269 : vector<16x32xf32>
    %271 = arith.mulf %270, %270 : vector<16x32xf32>
    %cst_129 = arith.constant dense<0.000000e+00> : vector<16xf32>
    %272 = vector.multi_reduction <add>, %271, %cst_129 [1] : vector<16x32xf32> to vector<16xf32>
    %273 = vector.shape_cast %272 : vector<16xf32> to vector<16x1xf32>
    %cst_130 = arith.constant 3.200000e+01 : f32
    %274 = vector.broadcast %cst_130 : f32 to vector<16x1xf32>
    %275 = arith.divf %273, %274 : vector<16x1xf32>
    %cst_131 = arith.constant 9.99999996E-13 : f32
    %276 = vector.broadcast %cst_131 : f32 to vector<16x1xf32>
    %277 = arith.addf %275, %276 : vector<16x1xf32>
    %278 = math.rsqrt %277 : vector<16x1xf32>
    %279 = vector.broadcast %278 : vector<16x1xf32> to vector<16x32xf32>
    %280 = arith.mulf %270, %279 : vector<16x32xf32>
    %281 = vector.broadcast %262 : vector<1x32xf32> to vector<16x32xf32>
    %282 = arith.mulf %280, %281 : vector<16x32xf32>
    %283 = vector.broadcast %264 : vector<1x32xf32> to vector<16x32xf32>
    %284 = arith.addf %282, %283 : vector<16x32xf32>
    %c0_132 = arith.constant 0 : index
    %c0_133 = arith.constant 0 : index
    %285 = vector.load %arg24[%c0_132, %c0_133] : memref<16x32xf32, #tpu.memory_space<vmem>>, vector<16x32xf32>
    tpu.vector_store %arg24[%c0_132, %c0_133], %284 {strides = array<i32>} : memref<16x32xf32, #tpu.memory_space<vmem>>, vector<16x32xf32>,
    %c1_i32 = arith.constant 1 : i32
    %286 = arith.cmpi eq, %arg0, %c1_i32 : i32
    %287 = arith.extui %286 : i1 to i32
    %c0_i32_134 = arith.constant 0 : i32
    %288 = arith.cmpi ne, %287, %c0_i32_134 : i32
    scf.if %288 {
      %289 = vector.extract_strided_slice %284 {offsets = [0, 0], sizes = [1, 32], strides = [1, 1]} : vector<16x32xf32> to vector<1x32xf32>
      %290 = vector.extract_strided_slice %284 {offsets = [8, 0], sizes = [1, 32], strides = [1, 1]} : vector<16x32xf32> to vector<1x32xf32>
      %291 = tpu.concatenate %289, %290 in 0 : vector<1x32xf32>, vector<1x32xf32> -> vector<2x32xf32>
      %292 = arith.truncf %291 : vector<2x32xf32> to vector<2x32xbf16>
      %c0_135 = arith.constant 0 : index
      %c0_136 = arith.constant 0 : index
      %293 = vector.load %arg17[%c0_135, %c0_136] : memref<32x32xbf16, #tpu.memory_space<vmem>>, vector<32x32xbf16>
      %cst_137 = arith.constant dense<0.000000e+00> : vector<2x32xf32>
      %294 = tpu.matmul %292, %293, %cst_137 {dimension_numbers = #tpu.dot_dimension_numbers<[1], [0], [0], [1], [0, 0, 1, 1], [], []>} : vector<2x32xbf16>, vector<32x32xbf16>, vector<2x32xf32> -> vector<2x32xf32>
      %c0_138 = arith.constant 0 : index
      %c0_139 = arith.constant 0 : index
      %295 = vector.load %arg18[%c0_138, %c0_139] : memref<1x32xf32, #tpu.memory_space<vmem>>, vector<1x32xf32>
      %296 = vector.broadcast %295 : vector<1x32xf32> to vector<2x32xf32>
      %297 = arith.addf %294, %296 : vector<2x32xf32>
      %298 = math.tanh %297 : vector<2x32xf32>
      %299 = arith.truncf %298 : vector<2x32xf32> to vector<2x32xbf16>
      %c0_140 = arith.constant 0 : index
      %c0_141 = arith.constant 0 : index
      %300 = vector.load %arg19[%c0_140, %c0_141] : memref<32x3xbf16, #tpu.memory_space<vmem>>, vector<32x3xbf16>
      %cst_142 = arith.constant dense<0.000000e+00> : vector<2x3xf32>
      %301 = tpu.matmul %299, %300, %cst_142 {dimension_numbers = #tpu.dot_dimension_numbers<[1], [0], [0], [1], [0, 0, 1, 1], [], []>} : vector<2x32xbf16>, vector<32x3xbf16>, vector<2x3xf32> -> vector<2x3xf32>
      %c0_143 = arith.constant 0 : index
      %c0_144 = arith.constant 0 : index
      %302 = vector.load %arg20[%c0_143, %c0_144] : memref<1x3xf32, #tpu.memory_space<vmem>>, vector<1x3xf32>
      %303 = vector.broadcast %302 : vector<1x3xf32> to vector<2x3xf32>
      %304 = arith.addf %301, %303 : vector<2x3xf32>
      %cst_145 = arith.constant dense<0xFF800000> : vector<2xf32>
      %305 = vector.multi_reduction <maximumf>, %304, %cst_145 [1] : vector<2x3xf32> to vector<2xf32>
      %306 = vector.shape_cast %305 : vector<2xf32> to vector<2x1xf32>
      %307 = vector.broadcast %306 : vector<2x1xf32> to vector<2x3xf32>
      %308 = arith.subf %304, %307 : vector<2x3xf32>
      %309 = math.exp %308 : vector<2x3xf32>
      %cst_146 = arith.constant dense<0.000000e+00> : vector<2xf32>
      %310 = vector.multi_reduction <add>, %309, %cst_146 [1] : vector<2x3xf32> to vector<2xf32>
      %311 = vector.shape_cast %310 : vector<2xf32> to vector<2x1xf32>
      %312 = math.log %311 : vector<2x1xf32>
      %313 = vector.broadcast %312 : vector<2x1xf32> to vector<2x3xf32>
      %314 = arith.subf %308, %313 : vector<2x3xf32>
      %315 = tpu.iota {dimensions = array<i32: 1>} : vector<1x3xi32>
      %c0_147 = arith.constant 0 : index
      %316 = memref.load %arg21[%c0_147] : memref<2xi32, #tpu.memory_space<smem>>
      %317 = vector.broadcast %316 : i32 to vector<1x3xi32>
      %318 = arith.cmpi eq, %315, %317 : vector<1x3xi32>
      %319 = arith.extui %318 : vector<1x3xi1> to vector<1x3xi32>
      %320 = arith.sitofp %319 : vector<1x3xi32> to vector<1x3xf32>
      %321 = vector.extract_strided_slice %314 {offsets = [0, 0], sizes = [1, 3], strides = [1, 1]} : vector<2x3xf32> to vector<1x3xf32>
      %322 = arith.mulf %320, %321 : vector<1x3xf32>
      %323 = vector.shape_cast %322 : vector<1x3xf32> to vector<1x1x3xf32>
      %cst_148 = arith.constant dense<0.000000e+00> : vector<1xf32>
      %324 = vector.multi_reduction <add>, %323, %cst_148 [1, 2] : vector<1x1x3xf32> to vector<1xf32>
      %325 = vector.shape_cast %324 : vector<1xf32> to vector<1x1x1xf32>
      %326 = vector.extract %325[0, 0, 0] : f32 from vector<1x1x1xf32>
      %cst_149 = arith.constant 0.000000e+00 : f32
      %327 = arith.subf %cst_149, %326 : f32
      %cst_150 = arith.constant 0.000000e+00 : f32
      %328 = arith.addf %cst_150, %327 : f32
      %c1_151 = arith.constant 1 : index
      %329 = memref.load %arg21[%c1_151] : memref<2xi32, #tpu.memory_space<smem>>
      %330 = vector.broadcast %329 : i32 to vector<1x3xi32>
      %331 = arith.cmpi eq, %315, %330 : vector<1x3xi32>
      %332 = arith.extui %331 : vector<1x3xi1> to vector<1x3xi32>
      %333 = arith.sitofp %332 : vector<1x3xi32> to vector<1x3xf32>
      %334 = vector.extract_strided_slice %314 {offsets = [1, 0], sizes = [1, 3], strides = [1, 1]} : vector<2x3xf32> to vector<1x3xf32>
      %335 = arith.mulf %333, %334 : vector<1x3xf32>
      %336 = vector.shape_cast %335 : vector<1x3xf32> to vector<1x1x3xf32>
      %cst_152 = arith.constant dense<0.000000e+00> : vector<1xf32>
      %337 = vector.multi_reduction <add>, %336, %cst_152 [1, 2] : vector<1x1x3xf32> to vector<1xf32>
      %338 = vector.shape_cast %337 : vector<1xf32> to vector<1x1x1xf32>
      %339 = vector.extract %338[0, 0, 0] : f32 from vector<1x1x1xf32>
      %cst_153 = arith.constant 0.000000e+00 : f32
      %340 = arith.subf %cst_153, %339 : f32
      %341 = arith.addf %328, %340 : f32
      %cst_154 = arith.constant 2.000000e+00 : f32
      %342 = arith.divf %341, %cst_154 : f32
      %c0_155 = arith.constant 0 : index
      %343 = memref.load %arg22[%c0_155] : memref<1xf32, #tpu.memory_space<smem>>
      memref.store %342, %arg22[%c0_155] : memref<1xf32, #tpu.memory_space<smem>>
      %344 = tpu.iota {dimensions = array<i32: 1>} : vector<2x3xi32>
      %cst_156 = arith.constant dense<0xFF800000> : vector<2xf32>
      %345 = vector.multi_reduction <maximumf>, %304, %cst_156 [1] : vector<2x3xf32> to vector<2xf32>
      %346 = vector.shape_cast %345 : vector<2xf32> to vector<2x1xf32>
      %347 = vector.broadcast %346 : vector<2x1xf32> to vector<2x3xf32>
      %348 = arith.cmpf oeq, %304, %347 : vector<2x3xf32>
      %c3_i32 = arith.constant 3 : i32
      %349 = vector.broadcast %c3_i32 : i32 to vector<2x3xi32>
      %350 = arith.select %348, %344, %349 : vector<2x3xi1>, vector<2x3xi32>
      %cst_157 = arith.constant dense<2147483647> : vector<2xi32>
      %351 = vector.multi_reduction <minsi>, %350, %cst_157 [1] : vector<2x3xi32> to vector<2xi32>
      %352 = vector.shape_cast %351 : vector<2xi32> to vector<2x1xi32>
      %c0_158 = arith.constant 0 : index
      %c0_159 = arith.constant 0 : index
      %353 = vector.load %arg23[%c0_158, %c0_159] : memref<2x1xi32, #tpu.memory_space<vmem>>, vector<2x1xi32>
      tpu.vector_store %arg23[%c0_158, %c0_159], %352 {strides = array<i32>} : memref<2x1xi32, #tpu.memory_space<vmem>>, vector<2x1xi32>,
    } else {
    }
    return
  }
  func.func @transform_0(%arg0: i32) -> (i32, i32) {
    %c0_i32 = arith.constant 0 : i32
    %c0_i32_0 = arith.constant 0 : i32
    %c0_i32_1 = arith.constant 0 : i32
    return %c0_i32, %c0_i32_0 : i32, i32
  }
  func.func @transform_1(%arg0: i32) -> (i32, i32) {
    %c0_i32 = arith.constant 0 : i32
    %c0_i32_0 = arith.constant 0 : i32
    %c0_i32_1 = arith.constant 0 : i32
    return %c0_i32, %c0_i32_0 : i32, i32
  }
  func.func @transform_2(%arg0: i32) -> (i32, i32) {
    %c0_i32 = arith.constant 0 : i32
    %c0_i32_0 = arith.constant 0 : i32
    %c0_i32_1 = arith.constant 0 : i32
    return %c0_i32, %c0_i32_0 : i32, i32
  }
  func.func @transform_3(%arg0: i32) -> (i32, i32) {
    %c0_i32 = arith.constant 0 : i32
    %c0_i32_0 = arith.constant 0 : i32
    %c0_i32_1 = arith.constant 0 : i32
    return %c0_i32, %c0_i32_0 : i32, i32
  }
  func.func @transform_4(%arg0: i32) -> (i32, i32, i32) {
    %c0_i32 = arith.constant 0 : i32
    %c0_i32_0 = arith.constant 0 : i32
    %c0_i32_1 = arith.constant 0 : i32
    return %arg0, %c0_i32, %c0_i32_0 : i32, i32, i32
  }
  func.func @transform_5(%arg0: i32) -> (i32, i32, i32) {
    %c0_i32 = arith.constant 0 : i32
    %c0_i32_0 = arith.constant 0 : i32
    %c0_i32_1 = arith.constant 0 : i32
    return %arg0, %c0_i32, %c0_i32_0 : i32, i32, i32
  }
  func.func @transform_6(%arg0: i32) -> (i32, i32, i32, i32) {
    %c0_i32 = arith.constant 0 : i32
    %c0_i32_0 = arith.constant 0 : i32
    %c0_i32_1 = arith.constant 0 : i32
    %c0_i32_2 = arith.constant 0 : i32
    return %arg0, %c0_i32, %c0_i32_0, %c0_i32_1 : i32, i32, i32, i32
  }
  func.func @transform_7(%arg0: i32) -> (i32, i32, i32) {
    %c0_i32 = arith.constant 0 : i32
    %c0_i32_0 = arith.constant 0 : i32
    %c0_i32_1 = arith.constant 0 : i32
    return %arg0, %c0_i32, %c0_i32_0 : i32, i32, i32
  }
  func.func @transform_8(%arg0: i32) -> (i32, i32, i32) {
    %c0_i32 = arith.constant 0 : i32
    %c0_i32_0 = arith.constant 0 : i32
    %c0_i32_1 = arith.constant 0 : i32
    return %arg0, %c0_i32, %c0_i32_0 : i32, i32, i32
  }
  func.func @transform_9(%arg0: i32) -> (i32, i32, i32) {
    %c0_i32 = arith.constant 0 : i32
    %c0_i32_0 = arith.constant 0 : i32
    %c0_i32_1 = arith.constant 0 : i32
    return %arg0, %c0_i32, %c0_i32_0 : i32, i32, i32
  }
  func.func @transform_10(%arg0: i32) -> (i32, i32, i32) {
    %c0_i32 = arith.constant 0 : i32
    %c0_i32_0 = arith.constant 0 : i32
    %c0_i32_1 = arith.constant 0 : i32
    return %arg0, %c0_i32, %c0_i32_0 : i32, i32, i32
  }
  func.func @transform_11(%arg0: i32) -> (i32, i32, i32) {
    %c0_i32 = arith.constant 0 : i32
    %c0_i32_0 = arith.constant 0 : i32
    %c0_i32_1 = arith.constant 0 : i32
    return %arg0, %c0_i32, %c0_i32_0 : i32, i32, i32
  }
  func.func @transform_12(%arg0: i32) -> (i32, i32, i32) {
    %c0_i32 = arith.constant 0 : i32
    %c0_i32_0 = arith.constant 0 : i32
    %c0_i32_1 = arith.constant 0 : i32
    return %arg0, %c0_i32, %c0_i32_0 : i32, i32, i32
  }
  func.func @transform_13(%arg0: i32) -> (i32, i32, i32) {
    %c0_i32 = arith.constant 0 : i32
    %c0_i32_0 = arith.constant 0 : i32
    %c0_i32_1 = arith.constant 0 : i32
    return %arg0, %c0_i32, %c0_i32_0 : i32, i32, i32
  }
  func.func @transform_14(%arg0: i32) -> (i32, i32, i32) {
    %c0_i32 = arith.constant 0 : i32
    %c0_i32_0 = arith.constant 0 : i32
    %c0_i32_1 = arith.constant 0 : i32
    return %arg0, %c0_i32, %c0_i32_0 : i32, i32, i32
  }
  func.func @transform_15(%arg0: i32) -> (i32, i32, i32) {
    %c0_i32 = arith.constant 0 : i32
    %c0_i32_0 = arith.constant 0 : i32
    %c0_i32_1 = arith.constant 0 : i32
    return %arg0, %c0_i32, %c0_i32_0 : i32, i32, i32
  }
  func.func @transform_16(%arg0: i32) -> (i32, i32) {
    %c0_i32 = arith.constant 0 : i32
    %c0_i32_0 = arith.constant 0 : i32
    %c0_i32_1 = arith.constant 0 : i32
    return %c0_i32, %c0_i32_0 : i32, i32
  }
  func.func @transform_17(%arg0: i32) -> (i32, i32) {
    %c0_i32 = arith.constant 0 : i32
    %c0_i32_0 = arith.constant 0 : i32
    %c0_i32_1 = arith.constant 0 : i32
    return %c0_i32, %c0_i32_0 : i32, i32
  }
  func.func @transform_18(%arg0: i32) -> (i32, i32) {
    %c0_i32 = arith.constant 0 : i32
    %c0_i32_0 = arith.constant 0 : i32
    %c0_i32_1 = arith.constant 0 : i32
    return %c0_i32, %c0_i32_0 : i32, i32
  }
  func.func @transform_19(%arg0: i32) -> (i32, i32) {
    %c0_i32 = arith.constant 0 : i32
    %c0_i32_0 = arith.constant 0 : i32
    %c0_i32_1 = arith.constant 0 : i32
    return %c0_i32, %c0_i32_0 : i32, i32
  }
  func.func @transform_20(%arg0: i32) -> i32 {
    %c0_i32 = arith.constant 0 : i32
    %c0_i32_0 = arith.constant 0 : i32
    return %c0_i32 : i32
  }
  func.func @transform_21(%arg0: i32) -> i32 {
    %c0_i32 = arith.constant 0 : i32
    %c0_i32_0 = arith.constant 0 : i32
    return %c0_i32 : i32
  }
  func.func @transform_22(%arg0: i32) -> (i32, i32) {
    %c0_i32 = arith.constant 0 : i32
    %c0_i32_0 = arith.constant 0 : i32
    %c0_i32_1 = arith.constant 0 : i32
    return %c0_i32, %c0_i32_0 : i32, i32
  }
}

</mosaic_0001>

<llo_original>
// kernel: bert_linear_forward.1
$region0: #{bert_linear_forward.1}
  #allocation0 [shape = 'u32[]', space=smem, size = 0x4, offset = 0x4, fixed_abs, tag = 'smem constant byte address 0x4 - core index']
  #allocation1 [shape = 'u32[72,128]{1,0:T(1,128)}', space=vmem, size = 0x9000, scoped, tag = 'internal scratch']
  #allocation2 [shape = 'f32[16,32]{1,0:T(8,128)}', space=vmem, size = 0x2000, scoped, tag = 'scratch operand']
  %s0 = inlined_call_operand.vmem [shape: f32[16,32], index: 0, kind: input, shape index: {}]
  %s1 = inlined_call_operand.vmem [shape: f32[2,8], index: 1, kind: input, shape index: {}]
  %s2 = inlined_call_operand.vmem [shape: f32[1,32], index: 2, kind: input, shape index: {}]
  %s3 = inlined_call_operand.vmem [shape: f32[1,32], index: 3, kind: input, shape index: {}]
  %s4 = inlined_call_operand.vmem [shape: bf16[2,32,96], index: 4, kind: input, shape index: {}]
  %s5 = inlined_call_operand.vmem [shape: f32[2,1,96], index: 5, kind: input, shape index: {}]
  %s6 = inlined_call_operand.vmem [shape: bf16[2,4,8,32], index: 6, kind: input, shape index: {}]
  %s7 = inlined_call_operand.vmem [shape: f32[2,1,32], index: 7, kind: input, shape index: {}]
  %s8 = inlined_call_operand.vmem [shape: f32[2,1,32], index: 8, kind: input, shape index: {}]
  %s9 = inlined_call_operand.vmem [shape: f32[2,1,32], index: 9, kind: input, shape index: {}]
  %s10 = inlined_call_operand.vmem [shape: bf16[2,32,64], index: 10, kind: input, shape index: {}]
  %s11 = inlined_call_operand.vmem [shape: f32[2,1,64], index: 11, kind: input, shape index: {}]
  %s12 = inlined_call_operand.vmem [shape: bf16[2,64,32], index: 12, kind: input, shape index: {}]
  %s13 = inlined_call_operand.vmem [shape: f32[2,1,32], index: 13, kind: input, shape index: {}]
  %s14 = inlined_call_operand.vmem [shape: f32[2,1,32], index: 14, kind: input, shape index: {}]
  %s15 = inlined_call_operand.vmem [shape: f32[2,1,32], index: 15, kind: input, shape index: {}]
  %s16 = inlined_call_operand.vmem [shape: bf16[32,32], index: 16, kind: input, shape index: {}]
  %s17 = inlined_call_operand.vmem [shape: f32[1,32], index: 17, kind: input, shape index: {}]
  %s18 = inlined_call_operand.vmem [shape: bf16[32,3], index: 18, kind: input, shape index: {}]
  %s19 = inlined_call_operand.vmem [shape: f32[1,3], index: 19, kind: input, shape index: {}]
  %s20 = inlined_call_operand.vmem [shape: s32[2], index: 20, kind: input, shape index: {}]
  %s21 = inlined_call_operand.hbm [shape: f32[1], index: 21, kind: output, shape index: {0}]
  %s22 = inlined_call_operand.vmem [shape: s32[2,1], index: 22, kind: output, shape index: {1}]
  %23 = xla_tuple %s21, %s22
  %s24 = sld [smem:[#allocation0]]
  $region137: #{bert_linear_forward.1} parent=0
    _
  %s26 = ssub.s32 1, %s24
  %s27 = scalar_select 0, %s26, %s24
  $region1: #{bert_linear_forward.1} parent=0
    #allocation3 [shape = 'u8[512]{0}', space=smem, size = 0x200, scoped, tag = 'input window, operand 20, single buffered']
    #allocation4 [shape = 's32[2]{0}', space=sflag, size = 0x8, scoped, tag = 'scoped memory for bert_linear_forward.1']
    #allocation5 [shape = 's32[2]{0}', space=sflag, size = 0x8, scoped, tag = 'scoped memory for bert_linear_forward.1']
    #allocation6 [shape = 'u8[512]{0}', space=smem, size = 0x200, scoped, tag = 'output window, operand 0, single buffered']
    %28 = vsyncpa [#allocation5], 0
    %29 = vsyncpa [#allocation4], 0
    loop: start=0, step=1, limit=4
    $region2: #{bert_linear_forward.1} parent=1 // loop_pre_header
      _
    $region3: #{bert_linear_forward.1} parent=1 // loop_header
      %s31 = sphi 0, %s35
      %p32 = scmp.ge.s32.totalorder %s31, 4
      %s39 = sphi 0, %s39
      %s41 = sphi 0, %s39
      %s42 = sphi 0, %s41
      %s56 = sphi 0, %s42
      %s60 = sphi 0, %s60
      %s62 = sphi 0, %s60
      %s63 = sphi 0, %s62
      %s77 = sphi 0, %s63
      %s81 = sphi 0, %s81
      %s83 = sphi 0, %s81
      %s84 = sphi 0, %s83
      %s98 = sphi 0, %s84
      %s102 = sphi 0, %s102
      %s104 = sphi 0, %s102
      %s105 = sphi 0, %s104
      %s119 = sphi 0, %s105
      %s125 = sphi 0, %s127
      %s128 = sphi 0, %s125
      %s129 = sphi 0, %s128
      %s145 = sphi 0, %s129
      %s151 = sphi 0, %s153
      %s154 = sphi 0, %s151
      %s155 = sphi 0, %s154
      %s171 = sphi 0, %s155
      %s177 = sphi 0, %s179
      %s180 = sphi 0, %s177
      %s181 = sphi 0, %s180
      %s197 = sphi 0, %s181
      %s203 = sphi 0, %s205
      %s206 = sphi 0, %s203
      %s207 = sphi 0, %s206
      %s223 = sphi 0, %s207
      %s229 = sphi 0, %s231
      %s232 = sphi 0, %s229
      %s233 = sphi 0, %s232
      %s249 = sphi 0, %s233
      %s255 = sphi 0, %s257
      %s258 = sphi 0, %s255
      %s259 = sphi 0, %s258
      %s275 = sphi 0, %s259
      %s281 = sphi 0, %s283
      %s284 = sphi 0, %s281
      %s285 = sphi 0, %s284
      %s301 = sphi 0, %s285
      %s307 = sphi 0, %s309
      %s310 = sphi 0, %s307
      %s311 = sphi 0, %s310
      %s327 = sphi 0, %s311
      %s333 = sphi 0, %s335
      %s336 = sphi 0, %s333
      %s337 = sphi 0, %s336
      %s353 = sphi 0, %s337
      %s359 = sphi 0, %s361
      %s362 = sphi 0, %s359
      %s363 = sphi 0, %s362
      %s379 = sphi 0, %s363
      %s385 = sphi 0, %s387
      %s388 = sphi 0, %s385
      %s389 = sphi 0, %s388
      %s405 = sphi 0, %s389
      %s411 = sphi 0, %s413
      %s414 = sphi 0, %s411
      %s415 = sphi 0, %s414
      %s431 = sphi 0, %s415
      %s435 = sphi 0, %s435
      %s437 = sphi 0, %s435
      %s438 = sphi 0, %s437
      %s452 = sphi 0, %s438
      %s456 = sphi 0, %s456
      %s458 = sphi 0, %s456
      %s459 = sphi 0, %s458
      %s473 = sphi 0, %s459
      %s477 = sphi 0, %s477
      %s479 = sphi 0, %s477
      %s480 = sphi 0, %s479
      %s494 = sphi 0, %s480
      %s498 = sphi 0, %s498
      %s500 = sphi 0, %s498
      %s501 = sphi 0, %s500
      %s515 = sphi 0, %s501
      %s519 = sphi 0, %s519
      %s521 = sphi 0, %s519
      %s522 = sphi 0, %s521
      %s536 = sphi 0, %s522
      %s540 = sphi 0, %s540
      %s542 = sphi 0, %s540
      %s543 = sphi 0, %s542
      %s557 = sphi 0, %s543
      %s561 = sphi 0, %s561
      %s563 = sphi 0, %s561
      %s564 = sphi 0, %s563
      %s578 = sphi 0, %s564
    $region4: #{bert_linear_forward.1} parent=1 // loop_header_branch
      %34 = sbr.rel (%p32) target = $region8
    $region5: #{bert_linear_forward.1} parent=1 // loop_body
      %s36 = ssub.s32 %s31, 1
      %s37 = ssub.s32 %s31, 2
      %s38 = sadd.s32 %s31, 1
      %s40 = sadd.s32 %s39, 1
      %p43 = scmp.eq.s32.totalorder %s31, 1
      %p44 = scmp.ne.s32.totalorder %s39, %s41
      %p45 = scmp.eq.s32.totalorder %s31, 0
      %p46 = por %p44, %p45
      %p47 = scmp.ne.s32.totalorder %s39, %s41
      %p48 = scmp.eq.s32.totalorder %s36, 1
      %p49 = por %p47, %p48
      %p50 = scmp.ne.s32.totalorder %s41, %s42
      %p51 = scmp.eq.s32.totalorder %s36, 0
      %p52 = por %p50, %p51
      %p53 = scmp.ne.s32.totalorder %s41, %s42
      %p54 = scmp.eq.s32.totalorder %s37, 1
      %p55 = por %p53, %p54
      %p57 = scmp.ne.s32.totalorder %s42, %s56
      %p58 = scmp.eq.s32.totalorder %s37, 0
      %p59 = por %p57, %p58
      %s61 = sadd.s32 %s60, 1
      %p64 = scmp.eq.s32.totalorder %s31, 1
      %p65 = scmp.ne.s32.totalorder %s60, %s62
      %p66 = scmp.eq.s32.totalorder %s31, 0
      %p67 = por %p65, %p66
      %p68 = scmp.ne.s32.totalorder %s60, %s62
      %p69 = scmp.eq.s32.totalorder %s36, 1
      %p70 = por %p68, %p69
      %p71 = scmp.ne.s32.totalorder %s62, %s63
      %p72 = scmp.eq.s32.totalorder %s36, 0
      %p73 = por %p71, %p72
      %p74 = scmp.ne.s32.totalorder %s62, %s63
      %p75 = scmp.eq.s32.totalorder %s37, 1
      %p76 = por %p74, %p75
      %p78 = scmp.ne.s32.totalorder %s63, %s77
      %p79 = scmp.eq.s32.totalorder %s37, 0
      %p80 = por %p78, %p79
      %s82 = sadd.s32 %s81, 1
      %p85 = scmp.eq.s32.totalorder %s31, 1
      %p86 = scmp.ne.s32.totalorder %s81, %s83
      %p87 = scmp.eq.s32.totalorder %s31, 0
      %p88 = por %p86, %p87
      %p89 = scmp.ne.s32.totalorder %s81, %s83
      %p90 = scmp.eq.s32.totalorder %s36, 1
      %p91 = por %p89, %p90
      %p92 = scmp.ne.s32.totalorder %s83, %s84
      %p93 = scmp.eq.s32.totalorder %s36, 0
      %p94 = por %p92, %p93
      %p95 = scmp.ne.s32.totalorder %s83, %s84
      %p96 = scmp.eq.s32.totalorder %s37, 1
      %p97 = por %p95, %p96
      %p99 = scmp.ne.s32.totalorder %s84, %s98
      %p100 = scmp.eq.s32.totalorder %s37, 0
      %p101 = por %p99, %p100
      %s103 = sadd.s32 %s102, 1
      %p106 = scmp.eq.s32.totalorder %s31, 1
      %p107 = scmp.ne.s32.totalorder %s102, %s104
      %p108 = scmp.eq.s32.totalorder %s31, 0
      %p109 = por %p107, %p108
      %p110 = scmp.ne.s32.totalorder %s102, %s104
      %p111 = scmp.eq.s32.totalorder %s36, 1
      %p112 = por %p110, %p111
      %p113 = scmp.ne.s32.totalorder %s104, %s105
      %p114 = scmp.eq.s32.totalorder %s36, 0
      %p115 = por %p113, %p114
      %p116 = scmp.ne.s32.totalorder %s104, %s105
      %p117 = scmp.eq.s32.totalorder %s37, 1
      %p118 = por %p116, %p117
      %p120 = scmp.ne.s32.totalorder %s105, %s119
      %p121 = scmp.eq.s32.totalorder %s37, 0
      %p122 = por %p120, %p121
      %s123 = ssub.s32 %s31, %s38
      %p124 = scmp.eq.s32.totalorder %s123, 0
      %s126 = sadd.s32 %s125, 1
      %s127 = scalar_select %p124, %s125, %s126
      %p130 = pneg %p124
      %p131 = scmp.eq.s32.totalorder %s31, 1
      %p132 = por %p130, %p131
      %p133 = scmp.ne.s32.totalorder %s125, %s128
      %p134 = scmp.eq.s32.totalorder %s31, 0
      %p135 = por %p133, %p134
      %p136 = scmp.ne.s32.totalorder %s125, %s128
      %p137 = scmp.eq.s32.totalorder %s36, 1
      %p138 = por %p136, %p137
      %p139 = scmp.ne.s32.totalorder %s128, %s129
      %p140 = scmp.eq.s32.totalorder %s36, 0
      %p141 = por %p139, %p140
      %p142 = scmp.ne.s32.totalorder %s128, %s129
      %p143 = scmp.eq.s32.totalorder %s37, 1
      %p144 = por %p142, %p143
      %p146 = scmp.ne.s32.totalorder %s129, %s145
      %p147 = scmp.eq.s32.totalorder %s37, 0
      %p148 = por %p146, %p147
      %s149 = ssub.s32 %s31, %s38
      %p150 = scmp.eq.s32.totalorder %s149, 0
      %s152 = sadd.s32 %s151, 1
      %s153 = scalar_select %p150, %s151, %s152
      %p156 = pneg %p150
      %p157 = scmp.eq.s32.totalorder %s31, 1
      %p158 = por %p156, %p157
      %p159 = scmp.ne.s32.totalorder %s151, %s154
      %p160 = scmp.eq.s32.totalorder %s31, 0
      %p161 = por %p159, %p160
      %p162 = scmp.ne.s32.totalorder %s151, %s154
      %p163 = scmp.eq.s32.totalorder %s36, 1
      %p164 = por %p162, %p163
      %p165 = scmp.ne.s32.totalorder %s154, %s155
      %p166 = scmp.eq.s32.totalorder %s36, 0
      %p167 = por %p165, %p166
      %p168 = scmp.ne.s32.totalorder %s154, %s155
      %p169 = scmp.eq.s32.totalorder %s37, 1
      %p170 = por %p168, %p169
      %p172 = scmp.ne.s32.totalorder %s155, %s171
      %p173 = scmp.eq.s32.totalorder %s37, 0
      %p174 = por %p172, %p173
      %s175 = ssub.s32 %s31, %s38
      %p176 = scmp.eq.s32.totalorder %s175, 0
      %s178 = sadd.s32 %s177, 1
      %s179 = scalar_select %p176, %s177, %s178
      %p182 = pneg %p176
      %p183 = scmp.eq.s32.totalorder %s31, 1
      %p184 = por %p182, %p183
      %p185 = scmp.ne.s32.totalorder %s177, %s180
      %p186 = scmp.eq.s32.totalorder %s31, 0
      %p187 = por %p185, %p186
      %p188 = scmp.ne.s32.totalorder %s177, %s180
      %p189 = scmp.eq.s32.totalorder %s36, 1
      %p190 = por %p188, %p189
      %p191 = scmp.ne.s32.totalorder %s180, %s181
      %p192 = scmp.eq.s32.totalorder %s36, 0
      %p193 = por %p191, %p192
      %p194 = scmp.ne.s32.totalorder %s180, %s181
      %p195 = scmp.eq.s32.totalorder %s37, 1
      %p196 = por %p194, %p195
      %p198 = scmp.ne.s32.totalorder %s181, %s197
      %p199 = scmp.eq.s32.totalorder %s37, 0
      %p200 = por %p198, %p199
      %s201 = ssub.s32 %s31, %s38
      %p202 = scmp.eq.s32.totalorder %s201, 0
      %s204 = sadd.s32 %s203, 1
      %s205 = scalar_select %p202, %s203, %s204
      %p208 = pneg %p202
      %p209 = scmp.eq.s32.totalorder %s31, 1
      %p210 = por %p208, %p209
      %p211 = scmp.ne.s32.totalorder %s203, %s206
      %p212 = scmp.eq.s32.totalorder %s31, 0
      %p213 = por %p211, %p212
      %p214 = scmp.ne.s32.totalorder %s203, %s206
      %p215 = scmp.eq.s32.totalorder %s36, 1
      %p216 = por %p214, %p215
      %p217 = scmp.ne.s32.totalorder %s206, %s207
      %p218 = scmp.eq.s32.totalorder %s36, 0
      %p219 = por %p217, %p218
      %p220 = scmp.ne.s32.totalorder %s206, %s207
      %p221 = scmp.eq.s32.totalorder %s37, 1
      %p222 = por %p220, %p221
      %p224 = scmp.ne.s32.totalorder %s207, %s223
      %p225 = scmp.eq.s32.totalorder %s37, 0
      %p226 = por %p224, %p225
      %s227 = ssub.s32 %s31, %s38
      %p228 = scmp.eq.s32.totalorder %s227, 0
      %s230 = sadd.s32 %s229, 1
      %s231 = scalar_select %p228, %s229, %s230
      %p234 = pneg %p228
      %p235 = scmp.eq.s32.totalorder %s31, 1
      %p236 = por %p234, %p235
      %p237 = scmp.ne.s32.totalorder %s229, %s232
      %p238 = scmp.eq.s32.totalorder %s31, 0
      %p239 = por %p237, %p238
      %p240 = scmp.ne.s32.totalorder %s229, %s232
      %p241 = scmp.eq.s32.totalorder %s36, 1
      %p242 = por %p240, %p241
      %p243 = scmp.ne.s32.totalorder %s232, %s233
      %p244 = scmp.eq.s32.totalorder %s36, 0
      %p245 = por %p243, %p244
      %p246 = scmp.ne.s32.totalorder %s232, %s233
      %p247 = scmp.eq.s32.totalorder %s37, 1
      %p248 = por %p246, %p247
      %p250 = scmp.ne.s32.totalorder %s233, %s249
      %p251 = scmp.eq.s32.totalorder %s37, 0
      %p252 = por %p250, %p251
      %s253 = ssub.s32 %s31, %s38
      %p254 = scmp.eq.s32.totalorder %s253, 0
      %s256 = sadd.s32 %s255, 1
      %s257 = scalar_select %p254, %s255, %s256
      %p260 = pneg %p254
      %p261 = scmp.eq.s32.totalorder %s31, 1
      %p262 = por %p260, %p261
      %p263 = scmp.ne.s32.totalorder %s255, %s258
      %p264 = scmp.eq.s32.totalorder %s31, 0
      %p265 = por %p263, %p264
      %p266 = scmp.ne.s32.totalorder %s255, %s258
      %p267 = scmp.eq.s32.totalorder %s36, 1
      %p268 = por %p266, %p267
      %p269 = scmp.ne.s32.totalorder %s258, %s259
      %p270 = scmp.eq.s32.totalorder %s36, 0
      %p271 = por %p269, %p270
      %p272 = scmp.ne.s32.totalorder %s258, %s259
      %p273 = scmp.eq.s32.totalorder %s37, 1
      %p274 = por %p272, %p273
      %p276 = scmp.ne.s32.totalorder %s259, %s275
      %p277 = scmp.eq.s32.totalorder %s37, 0
      %p278 = por %p276, %p277
      %s279 = ssub.s32 %s31, %s38
      %p280 = scmp.eq.s32.totalorder %s279, 0
      %s282 = sadd.s32 %s281, 1
      %s283 = scalar_select %p280, %s281, %s282
      %p286 = pneg %p280
      %p287 = scmp.eq.s32.totalorder %s31, 1
      %p288 = por %p286, %p287
      %p289 = scmp.ne.s32.totalorder %s281, %s284
      %p290 = scmp.eq.s32.totalorder %s31, 0
      %p291 = por %p289, %p290
      %p292 = scmp.ne.s32.totalorder %s281, %s284
      %p293 = scmp.eq.s32.totalorder %s36, 1
      %p294 = por %p292, %p293
      %p295 = scmp.ne.s32.totalorder %s284, %s285
      %p296 = scmp.eq.s32.totalorder %s36, 0
      %p297 = por %p295, %p296
      %p298 = scmp.ne.s32.totalorder %s284, %s285
      %p299 = scmp.eq.s32.totalorder %s37, 1
      %p300 = por %p298, %p299
      %p302 = scmp.ne.s32.totalorder %s285, %s301
      %p303 = scmp.eq.s32.totalorder %s37, 0
      %p304 = por %p302, %p303
      %s305 = ssub.s32 %s31, %s38
      %p306 = scmp.eq.s32.totalorder %s305, 0
      %s308 = sadd.s32 %s307, 1
      %s309 = scalar_select %p306, %s307, %s308
      %p312 = pneg %p306
      %p313 = scmp.eq.s32.totalorder %s31, 1
      %p314 = por %p312, %p313
      %p315 = scmp.ne.s32.totalorder %s307, %s310
      %p316 = scmp.eq.s32.totalorder %s31, 0
      %p317 = por %p315, %p316
      %p318 = scmp.ne.s32.totalorder %s307, %s310
      %p319 = scmp.eq.s32.totalorder %s36, 1
      %p320 = por %p318, %p319
      %p321 = scmp.ne.s32.totalorder %s310, %s311
      %p322 = scmp.eq.s32.totalorder %s36, 0
      %p323 = por %p321, %p322
      %p324 = scmp.ne.s32.totalorder %s310, %s311
      %p325 = scmp.eq.s32.totalorder %s37, 1
      %p326 = por %p324, %p325
      %p328 = scmp.ne.s32.totalorder %s311, %s327
      %p329 = scmp.eq.s32.totalorder %s37, 0
      %p330 = por %p328, %p329
      %s331 = ssub.s32 %s31, %s38
      %p332 = scmp.eq.s32.totalorder %s331, 0
      %s334 = sadd.s32 %s333, 1
      %s335 = scalar_select %p332, %s333, %s334
      %p338 = pneg %p332
      %p339 = scmp.eq.s32.totalorder %s31, 1
      %p340 = por %p338, %p339
      %p341 = scmp.ne.s32.totalorder %s333, %s336
      %p342 = scmp.eq.s32.totalorder %s31, 0
      %p343 = por %p341, %p342
      %p344 = scmp.ne.s32.totalorder %s333, %s336
      %p345 = scmp.eq.s32.totalorder %s36, 1
      %p346 = por %p344, %p345
      %p347 = scmp.ne.s32.totalorder %s336, %s337
      %p348 = scmp.eq.s32.totalorder %s36, 0
      %p349 = por %p347, %p348
      %p350 = scmp.ne.s32.totalorder %s336, %s337
      %p351 = scmp.eq.s32.totalorder %s37, 1
      %p352 = por %p350, %p351
      %p354 = scmp.ne.s32.totalorder %s337, %s353
      %p355 = scmp.eq.s32.totalorder %s37, 0
      %p356 = por %p354, %p355
      %s357 = ssub.s32 %s31, %s38
      %p358 = scmp.eq.s32.totalorder %s357, 0
      %s360 = sadd.s32 %s359, 1
      %s361 = scalar_select %p358, %s359, %s360
      %p364 = pneg %p358
      %p365 = scmp.eq.s32.totalorder %s31, 1
      %p366 = por %p364, %p365
      %p367 = scmp.ne.s32.totalorder %s359, %s362
      %p368 = scmp.eq.s32.totalorder %s31, 0
      %p369 = por %p367, %p368
      %p370 = scmp.ne.s32.totalorder %s359, %s362
      %p371 = scmp.eq.s32.totalorder %s36, 1
      %p372 = por %p370, %p371
      %p373 = scmp.ne.s32.totalorder %s362, %s363
      %p374 = scmp.eq.s32.totalorder %s36, 0
      %p375 = por %p373, %p374
      %p376 = scmp.ne.s32.totalorder %s362, %s363
      %p377 = scmp.eq.s32.totalorder %s37, 1
      %p378 = por %p376, %p377
      %p380 = scmp.ne.s32.totalorder %s363, %s379
      %p381 = scmp.eq.s32.totalorder %s37, 0
      %p382 = por %p380, %p381
      %s383 = ssub.s32 %s31, %s38
      %p384 = scmp.eq.s32.totalorder %s383, 0
      %s386 = sadd.s32 %s385, 1
      %s387 = scalar_select %p384, %s385, %s386
      %p390 = pneg %p384
      %p391 = scmp.eq.s32.totalorder %s31, 1
      %p392 = por %p390, %p391
      %p393 = scmp.ne.s32.totalorder %s385, %s388
      %p394 = scmp.eq.s32.totalorder %s31, 0
      %p395 = por %p393, %p394
      %p396 = scmp.ne.s32.totalorder %s385, %s388
      %p397 = scmp.eq.s32.totalorder %s36, 1
      %p398 = por %p396, %p397
      %p399 = scmp.ne.s32.totalorder %s388, %s389
      %p400 = scmp.eq.s32.totalorder %s36, 0
      %p401 = por %p399, %p400
      %p402 = scmp.ne.s32.totalorder %s388, %s389
      %p403 = scmp.eq.s32.totalorder %s37, 1
      %p404 = por %p402, %p403
      %p406 = scmp.ne.s32.totalorder %s389, %s405
      %p407 = scmp.eq.s32.totalorder %s37, 0
      %p408 = por %p406, %p407
      %s409 = ssub.s32 %s31, %s38
      %p410 = scmp.eq.s32.totalorder %s409, 0
      %s412 = sadd.s32 %s411, 1
      %s413 = scalar_select %p410, %s411, %s412
      %p416 = pneg %p410
      %p417 = scmp.eq.s32.totalorder %s31, 1
      %p418 = por %p416, %p417
      %p419 = scmp.ne.s32.totalorder %s411, %s414
      %p420 = scmp.eq.s32.totalorder %s31, 0
      %p421 = por %p419, %p420
      %p422 = scmp.ne.s32.totalorder %s411, %s414
      %p423 = scmp.eq.s32.totalorder %s36, 1
      %p424 = por %p422, %p423
      %p425 = scmp.ne.s32.totalorder %s414, %s415
      %p426 = scmp.eq.s32.totalorder %s36, 0
      %p427 = por %p425, %p426
      %p428 = scmp.ne.s32.totalorder %s414, %s415
      %p429 = scmp.eq.s32.totalorder %s37, 1
      %p430 = por %p428, %p429
      %p432 = scmp.ne.s32.totalorder %s415, %s431
      %p433 = scmp.eq.s32.totalorder %s37, 0
      %p434 = por %p432, %p433
      %s436 = sadd.s32 %s435, 1
      %p439 = scmp.eq.s32.totalorder %s31, 1
      %p440 = scmp.ne.s32.totalorder %s435, %s437
      %p441 = scmp.eq.s32.totalorder %s31, 0
      %p442 = por %p440, %p441
      %p443 = scmp.ne.s32.totalorder %s435, %s437
      %p444 = scmp.eq.s32.totalorder %s36, 1
      %p445 = por %p443, %p444
      %p446 = scmp.ne.s32.totalorder %s437, %s438
      %p447 = scmp.eq.s32.totalorder %s36, 0
      %p448 = por %p446, %p447
      %p449 = scmp.ne.s32.totalorder %s437, %s438
      %p450 = scmp.eq.s32.totalorder %s37, 1
      %p451 = por %p449, %p450
      %p453 = scmp.ne.s32.totalorder %s438, %s452
      %p454 = scmp.eq.s32.totalorder %s37, 0
      %p455 = por %p453, %p454
      %s457 = sadd.s32 %s456, 1
      %p460 = scmp.eq.s32.totalorder %s31, 1
      %p461 = scmp.ne.s32.totalorder %s456, %s458
      %p462 = scmp.eq.s32.totalorder %s31, 0
      %p463 = por %p461, %p462
      %p464 = scmp.ne.s32.totalorder %s456, %s458
      %p465 = scmp.eq.s32.totalorder %s36, 1
      %p466 = por %p464, %p465
      %p467 = scmp.ne.s32.totalorder %s458, %s459
      %p468 = scmp.eq.s32.totalorder %s36, 0
      %p469 = por %p467, %p468
      %p470 = scmp.ne.s32.totalorder %s458, %s459
      %p471 = scmp.eq.s32.totalorder %s37, 1
      %p472 = por %p470, %p471
      %p474 = scmp.ne.s32.totalorder %s459, %s473
      %p475 = scmp.eq.s32.totalorder %s37, 0
      %p476 = por %p474, %p475
      %s478 = sadd.s32 %s477, 1
      %p481 = scmp.eq.s32.totalorder %s31, 1
      %p482 = scmp.ne.s32.totalorder %s477, %s479
      %p483 = scmp.eq.s32.totalorder %s31, 0
      %p484 = por %p482, %p483
      %p485 = scmp.ne.s32.totalorder %s477, %s479
      %p486 = scmp.eq.s32.totalorder %s36, 1
      %p487 = por %p485, %p486
      %p488 = scmp.ne.s32.totalorder %s479, %s480
      %p489 = scmp.eq.s32.totalorder %s36, 0
      %p490 = por %p488, %p489
      %p491 = scmp.ne.s32.totalorder %s479, %s480
      %p492 = scmp.eq.s32.totalorder %s37, 1
      %p493 = por %p491, %p492
      %p495 = scmp.ne.s32.totalorder %s480, %s494
      %p496 = scmp.eq.s32.totalorder %s37, 0
      %p497 = por %p495, %p496
      %s499 = sadd.s32 %s498, 1
      %p502 = scmp.eq.s32.totalorder %s31, 1
      %p503 = scmp.ne.s32.totalorder %s498, %s500
      %p504 = scmp.eq.s32.totalorder %s31, 0
      %p505 = por %p503, %p504
      %p506 = scmp.ne.s32.totalorder %s498, %s500
      %p507 = scmp.eq.s32.totalorder %s36, 1
      %p508 = por %p506, %p507
      %p509 = scmp.ne.s32.totalorder %s500, %s501
      %p510 = scmp.eq.s32.totalorder %s36, 0
      %p511 = por %p509, %p510
      %p512 = scmp.ne.s32.totalorder %s500, %s501
      %p513 = scmp.eq.s32.totalorder %s37, 1
      %p514 = por %p512, %p513
      %p516 = scmp.ne.s32.totalorder %s501, %s515
      %p517 = scmp.eq.s32.totalorder %s37, 0
      %p518 = por %p516, %p517
      %s520 = sadd.s32 %s519, 1
      %p523 = scmp.eq.s32.totalorder %s31, 1
      %p524 = scmp.ne.s32.totalorder %s519, %s521
      %p525 = scmp.eq.s32.totalorder %s31, 0
      %p526 = por %p524, %p525
      %p527 = scmp.ne.s32.totalorder %s519, %s521
      %p528 = scmp.eq.s32.totalorder %s36, 1
      %p529 = por %p527, %p528
      %p530 = scmp.ne.s32.totalorder %s521, %s522
      %p531 = scmp.eq.s32.totalorder %s36, 0
      %p532 = por %p530, %p531
      %p533 = scmp.ne.s32.totalorder %s521, %s522
      %p534 = scmp.eq.s32.totalorder %s37, 1
      %p535 = por %p533, %p534
      %p537 = scmp.ne.s32.totalorder %s522, %s536
      %p538 = scmp.eq.s32.totalorder %s37, 0
      %p539 = por %p537, %p538
      %s541 = sadd.s32 %s540, 1
      %p544 = scmp.eq.s32.totalorder %s31, 1
      %p545 = scmp.ne.s32.totalorder %s540, %s542
      %p546 = scmp.eq.s32.totalorder %s31, 0
      %p547 = por %p545, %p546
      %p548 = scmp.ne.s32.totalorder %s540, %s542
      %p549 = scmp.eq.s32.totalorder %s36, 1
      %p550 = por %p548, %p549
      %p551 = scmp.ne.s32.totalorder %s542, %s543
      %p552 = scmp.eq.s32.totalorder %s36, 0
      %p553 = por %p551, %p552
      %p554 = scmp.ne.s32.totalorder %s542, %s543
      %p555 = scmp.eq.s32.totalorder %s37, 1
      %p556 = por %p554, %p555
      %p558 = scmp.ne.s32.totalorder %s543, %s557
      %p559 = scmp.eq.s32.totalorder %s37, 0
      %p560 = por %p558, %p559
      %s562 = sadd.s32 %s561, 1
      %p565 = scmp.eq.s32.totalorder %s31, 1
      %p566 = scmp.ne.s32.totalorder %s561, %s563
      %p567 = scmp.eq.s32.totalorder %s31, 0
      %p568 = por %p566, %p567
      %p569 = scmp.ne.s32.totalorder %s561, %s563
      %p570 = scmp.eq.s32.totalorder %s36, 1
      %p571 = por %p569, %p570
      %p572 = scmp.ne.s32.totalorder %s563, %s564
      %p573 = scmp.eq.s32.totalorder %s36, 0
      %p574 = por %p572, %p573
      %p575 = scmp.ne.s32.totalorder %s563, %s564
      %p576 = scmp.eq.s32.totalorder %s37, 1
      %p577 = por %p575, %p576
      %p579 = scmp.ne.s32.totalorder %s564, %s578
      %p580 = scmp.eq.s32.totalorder %s37, 0
      %p581 = por %p579, %p580
      %p582 = scmp.le.s32.totalorder 1, %s31
      %p583 = scmp.lt.s32.totalorder %s31, 3
      %p584 = pnand %p582, %p583
      %p585 = pneg %p584
      // Predicated region
      $region9: #{bert_linear_forward.1} parent=5 // pred_check
        _
      $region10: #{bert_linear_forward.1} parent=5 // pred_check_branch
        %587 = sbr.rel (%p584) target = $region12
      $region11: #{bert_linear_forward.1} parent=5 // pred_region
        %s588 = ssub.s32 %s31, 1
        // Predicated region
        $region13: #{bert_linear_forward.1} parent=11 // pred_check
          %p589 = pneg %p52
        $region14: #{bert_linear_forward.1} parent=11 // pred_check_branch
          %591 = sbr.rel (%p589) target = $region16
        $region15: #{bert_linear_forward.1} parent=11 // pred_region
          _
        $region16: #{bert_linear_forward.1} parent=11 // pred_fallthru
          _
        // Predicated region
        $region17: #{bert_linear_forward.1} parent=11 // pred_check
          %p592 = pneg %p73
        $region18: #{bert_linear_forward.1} parent=11 // pred_check_branch
          %594 = sbr.rel (%p592) target = $region20
        $region19: #{bert_linear_forward.1} parent=11 // pred_region
          _
        $region20: #{bert_linear_forward.1} parent=11 // pred_fallthru
          _
        // Predicated region
        $region21: #{bert_linear_forward.1} parent=11 // pred_check
          %p595 = pneg %p94
        $region22: #{bert_linear_forward.1} parent=11 // pred_check_branch
          %597 = sbr.rel (%p595) target = $region24
        $region23: #{bert_linear_forward.1} parent=11 // pred_region
          _
        $region24: #{bert_linear_forward.1} parent=11 // pred_fallthru
          _
        // Predicated region
        $region25: #{bert_linear_forward.1} parent=11 // pred_check
          %p598 = pneg %p115
        $region26: #{bert_linear_forward.1} parent=11 // pred_check_branch
          %600 = sbr.rel (%p598) target = $region28
        $region27: #{bert_linear_forward.1} parent=11 // pred_region
          _
        $region28: #{bert_linear_forward.1} parent=11 // pred_fallthru
          _
        // Predicated region
        $region29: #{bert_linear_forward.1} parent=11 // pred_check
          %p601 = pneg %p448
        $region30: #{bert_linear_forward.1} parent=11 // pred_check_branch
          %603 = sbr.rel (%p601) target = $region32
        $region31: #{bert_linear_forward.1} parent=11 // pred_region
          _
        $region32: #{bert_linear_forward.1} parent=11 // pred_fallthru
          _
        // Predicated region
        $region33: #{bert_linear_forward.1} parent=11 // pred_check
          %p604 = pneg %p469
        $region34: #{bert_linear_forward.1} parent=11 // pred_check_branch
          %606 = sbr.rel (%p604) target = $region36
        $region35: #{bert_linear_forward.1} parent=11 // pred_region
          _
        $region36: #{bert_linear_forward.1} parent=11 // pred_fallthru
          _
        // Predicated region
        $region37: #{bert_linear_forward.1} parent=11 // pred_check
          %p607 = pneg %p490
        $region38: #{bert_linear_forward.1} parent=11 // pred_check_branch
          %609 = sbr.rel (%p607) target = $region40
        $region39: #{bert_linear_forward.1} parent=11 // pred_region
          _
        $region40: #{bert_linear_forward.1} parent=11 // pred_fallthru
          _
        // Predicated region
        $region41: #{bert_linear_forward.1} parent=11 // pred_check
          %p610 = pneg %p511
        $region42: #{bert_linear_forward.1} parent=11 // pred_check_branch
          %612 = sbr.rel (%p610) target = $region44
        $region43: #{bert_linear_forward.1} parent=11 // pred_region
          _
        $region44: #{bert_linear_forward.1} parent=11 // pred_fallthru
          _
        // Predicated region
        $region45: #{bert_linear_forward.1} parent=11 // pred_check
          %p613 = pneg %p532
        $region46: #{bert_linear_forward.1} parent=11 // pred_check_branch
          %615 = sbr.rel (%p613) target = $region48
        $region47: #{bert_linear_forward.1} parent=11 // pred_region
          %617 = vsyncadd [#allocation5], 0
          %s619 = sshll.u32 %s20, 4
          %s620 = int_to_ptr.vmem [resolvable:$true] %s619
          %622 = dma.vmem_to_smem %s620, 16, [#allocation3], [#allocation5]
        $region48: #{bert_linear_forward.1} parent=11 // pred_fallthru
          _
      $region12: #{bert_linear_forward.1} parent=5 // pred_fallthru
        _
      %p623 = scmp.lt.s32.totalorder %s31, 2
      // Predicated region
      $region49: #{bert_linear_forward.1} parent=5 // pred_check
        %p624 = pneg %p623
      $region50: #{bert_linear_forward.1} parent=5 // pred_check_branch
        %626 = sbr.rel (%p624) target = $region52
      $region51: #{bert_linear_forward.1} parent=5 // pred_region
        // Predicated region
        $region53: #{bert_linear_forward.1} parent=51 // pred_check
          %p627 = pneg %p135
        $region54: #{bert_linear_forward.1} parent=51 // pred_check_branch
          %629 = sbr.rel (%p627) target = $region56
        $region55: #{bert_linear_forward.1} parent=51 // pred_region
          %p630 = scmp.lt.s32.totalorder %s31, 1
          %s631 = scalar_select %p630, %s31, 1
          %s632 = smul.addr %s631, 4
          %s633 = smul.addr %s632, 4
          %s634 = scalar_lea.vmem %s4, %s633
        $region56: #{bert_linear_forward.1} parent=51 // pred_fallthru
          _
        // Predicated region
        $region57: #{bert_linear_forward.1} parent=51 // pred_check
          %p635 = pneg %p161
        $region58: #{bert_linear_forward.1} parent=51 // pred_check_branch
          %637 = sbr.rel (%p635) target = $region60
        $region59: #{bert_linear_forward.1} parent=51 // pred_region
          %p638 = scmp.lt.s32.totalorder %s31, 1
          %s639 = scalar_select %p638, %s31, 1
          %s640 = scalar_lea.vmem %s5, %s639
        $region60: #{bert_linear_forward.1} parent=51 // pred_fallthru
          _
        // Predicated region
        $region61: #{bert_linear_forward.1} parent=51 // pred_check
          %p641 = pneg %p187
        $region62: #{bert_linear_forward.1} parent=51 // pred_check_branch
          %643 = sbr.rel (%p641) target = $region64
        $region63: #{bert_linear_forward.1} parent=51 // pred_region
          %p644 = scmp.lt.s32.totalorder %s31, 1
          %s645 = scalar_select %p644, %s31, 1
          %s646 = smul.addr %s645, 4
          %s647 = smul.addr %s646, 4
          %s648 = scalar_lea.vmem %s6, %s647
        $region64: #{bert_linear_forward.1} parent=51 // pred_fallthru
          _
        // Predicated region
        $region65: #{bert_linear_forward.1} parent=51 // pred_check
          %p649 = pneg %p213
        $region66: #{bert_linear_forward.1} parent=51 // pred_check_branch
          %651 = sbr.rel (%p649) target = $region68
        $region67: #{bert_linear_forward.1} parent=51 // pred_region
          %p652 = scmp.lt.s32.totalorder %s31, 1
          %s653 = scalar_select %p652, %s31, 1
          %s654 = scalar_lea.vmem %s7, %s653
        $region68: #{bert_linear_forward.1} parent=51 // pred_fallthru
          _
        // Predicated region
        $region69: #{bert_linear_forward.1} parent=51 // pred_check
          %p655 = pneg %p239
        $region70: #{bert_linear_forward.1} parent=51 // pred_check_branch
          %657 = sbr.rel (%p655) target = $region72
        $region71: #{bert_linear_forward.1} parent=51 // pred_region
          %p658 = scmp.lt.s32.totalorder %s31, 1
          %s659 = scalar_select %p658, %s31, 1
          %s660 = scalar_lea.vmem %s8, %s659
        $region72: #{bert_linear_forward.1} parent=51 // pred_fallthru
          _
        // Predicated region
        $region73: #{bert_linear_forward.1} parent=51 // pred_check
          %p661 = pneg %p265
        $region74: #{bert_linear_forward.1} parent=51 // pred_check_branch
          %663 = sbr.rel (%p661) target = $region76
        $region75: #{bert_linear_forward.1} parent=51 // pred_region
          %p664 = scmp.lt.s32.totalorder %s31, 1
          %s665 = scalar_select %p664, %s31, 1
          %s666 = scalar_lea.vmem %s9, %s665
        $region76: #{bert_linear_forward.1} parent=51 // pred_fallthru
          _
        // Predicated region
        $region77: #{bert_linear_forward.1} parent=51 // pred_check
          %p667 = pneg %p291
        $region78: #{bert_linear_forward.1} parent=51 // pred_check_branch
          %669 = sbr.rel (%p667) target = $region80
        $region79: #{bert_linear_forward.1} parent=51 // pred_region
          %p670 = scmp.lt.s32.totalorder %s31, 1
          %s671 = scalar_select %p670, %s31, 1
          %s672 = smul.addr %s671, 4
          %s673 = smul.addr %s672, 4
          %s674 = scalar_lea.vmem %s10, %s673
        $region80: #{bert_linear_forward.1} parent=51 // pred_fallthru
          _
        // Predicated region
        $region81: #{bert_linear_forward.1} parent=51 // pred_check
          %p675 = pneg %p317
        $region82: #{bert_linear_forward.1} parent=51 // pred_check_branch
          %677 = sbr.rel (%p675) target = $region84
        $region83: #{bert_linear_forward.1} parent=51 // pred_region
          %p678 = scmp.lt.s32.totalorder %s31, 1
          %s679 = scalar_select %p678, %s31, 1
          %s680 = scalar_lea.vmem %s11, %s679
        $region84: #{bert_linear_forward.1} parent=51 // pred_fallthru
          _
        // Predicated region
        $region85: #{bert_linear_forward.1} parent=51 // pred_check
          %p681 = pneg %p343
        $region86: #{bert_linear_forward.1} parent=51 // pred_check_branch
          %683 = sbr.rel (%p681) target = $region88
        $region87: #{bert_linear_forward.1} parent=51 // pred_region
          %p684 = scmp.lt.s32.totalorder %s31, 1
          %s685 = scalar_select %p684, %s31, 1
          %s686 = smul.addr %s685, 8
          %s687 = smul.addr %s686, 4
          %s688 = scalar_lea.vmem %s12, %s687
        $region88: #{bert_linear_forward.1} parent=51 // pred_fallthru
          _
        // Predicated region
        $region89: #{bert_linear_forward.1} parent=51 // pred_check
          %p689 = pneg %p369
        $region90: #{bert_linear_forward.1} parent=51 // pred_check_branch
          %691 = sbr.rel (%p689) target = $region92
        $region91: #{bert_linear_forward.1} parent=51 // pred_region
          %p692 = scmp.lt.s32.totalorder %s31, 1
          %s693 = scalar_select %p692, %s31, 1
          %s694 = scalar_lea.vmem %s13, %s693
        $region92: #{bert_linear_forward.1} parent=51 // pred_fallthru
          _
        // Predicated region
        $region93: #{bert_linear_forward.1} parent=51 // pred_check
          %p695 = pneg %p395
        $region94: #{bert_linear_forward.1} parent=51 // pred_check_branch
          %697 = sbr.rel (%p695) target = $region96
        $region95: #{bert_linear_forward.1} parent=51 // pred_region
          %p698 = scmp.lt.s32.totalorder %s31, 1
          %s699 = scalar_select %p698, %s31, 1
          %s700 = scalar_lea.vmem %s14, %s699
        $region96: #{bert_linear_forward.1} parent=51 // pred_fallthru
          _
        // Predicated region
        $region97: #{bert_linear_forward.1} parent=51 // pred_check
          %p701 = pneg %p421
        $region98: #{bert_linear_forward.1} parent=51 // pred_check_branch
          %703 = sbr.rel (%p701) target = $region100
        $region99: #{bert_linear_forward.1} parent=51 // pred_region
          %p704 = scmp.lt.s32.totalorder %s31, 1
          %s705 = scalar_select %p704, %s31, 1
          %s706 = scalar_lea.vmem %s15, %s705
        $region100: #{bert_linear_forward.1} parent=51 // pred_fallthru
          _
      $region52: #{bert_linear_forward.1} parent=5 // pred_fallthru
        _
      %p707 = scmp.le.s32.totalorder 1, %s31
      %p708 = scmp.lt.s32.totalorder %s31, 3
      %p709 = pnand %p707, %p708
      %p710 = pneg %p709
      // Predicated region
      $region101: #{bert_linear_forward.1} parent=5 // pred_check
        _
      $region102: #{bert_linear_forward.1} parent=5 // pred_check_branch
        %712 = sbr.rel (%p709) target = $region104
      $region103: #{bert_linear_forward.1} parent=5 // pred_region
        %s713 = ssub.s32 %s31, 1
        // Predicated region
        $region105: #{bert_linear_forward.1} parent=103 // pred_check
          %p714 = pneg %p532
        $region106: #{bert_linear_forward.1} parent=103 // pred_check_branch
          %716 = sbr.rel (%p714) target = $region108
        $region107: #{bert_linear_forward.1} parent=103 // pred_region
          %718 = dma.done [#allocation5], 16
        $region108: #{bert_linear_forward.1} parent=103 // pred_fallthru
          _
        %719 = sfence
        %p720 = pneg %p52
        %p721 = pneg %p49
        %p722 = pneg %p73
        %p723 = pneg %p70
        %p724 = pneg %p94
        %p725 = pneg %p91
        %p726 = pneg %p115
        %p727 = pneg %p112
        %p728 = scmp.lt.s32.totalorder %s36, 1
        %s729 = scalar_select %p728, %s36, 1
        %s730 = smul.addr %s729, 4
        %s731 = smul.addr %s730, 4
        %s732 = scalar_lea.vmem %s4, %s731
        %p733 = pneg %p141
        %p734 = pneg %p138
        %p735 = scmp.lt.s32.totalorder %s36, 1
        %s736 = scalar_select %p735, %s36, 1
        %s737 = scalar_lea.vmem %s5, %s736
        %p738 = pneg %p167
        %p739 = pneg %p164
        %p740 = scmp.lt.s32.totalorder %s36, 1
        %s741 = scalar_select %p740, %s36, 1
        %s742 = smul.addr %s741, 4
        %s743 = smul.addr %s742, 4
        %s744 = scalar_lea.vmem %s6, %s743
        %p745 = pneg %p193
        %p746 = pneg %p190
        %p747 = scmp.lt.s32.totalorder %s36, 1
        %s748 = scalar_select %p747, %s36, 1
        %s749 = scalar_lea.vmem %s7, %s748
        %p750 = pneg %p219
        %p751 = pneg %p216
        %p752 = scmp.lt.s32.totalorder %s36, 1
        %s753 = scalar_select %p752, %s36, 1
        %s754 = scalar_lea.vmem %s8, %s753
        %p755 = pneg %p245
        %p756 = pneg %p242
        %p757 = scmp.lt.s32.totalorder %s36, 1
        %s758 = scalar_select %p757, %s36, 1
        %s759 = scalar_lea.vmem %s9, %s758
        %p760 = pneg %p271
        %p761 = pneg %p268
        %p762 = scmp.lt.s32.totalorder %s36, 1
        %s763 = scalar_select %p762, %s36, 1
        %s764 = smul.addr %s763, 4
        %s765 = smul.addr %s764, 4
        %s766 = scalar_lea.vmem %s10, %s765
        %p767 = pneg %p297
        %p768 = pneg %p294
        %p769 = scmp.lt.s32.totalorder %s36, 1
        %s770 = scalar_select %p769, %s36, 1
        %s771 = scalar_lea.vmem %s11, %s770
        %p772 = pneg %p323
        %p773 = pneg %p320
        %p774 = scmp.lt.s32.totalorder %s36, 1
        %s775 = scalar_select %p774, %s36, 1
        %s776 = smul.addr %s775, 8
        %s777 = smul.addr %s776, 4
        %s778 = scalar_lea.vmem %s12, %s777
        %p779 = pneg %p349
        %p780 = pneg %p346
        %p781 = scmp.lt.s32.totalorder %s36, 1
        %s782 = scalar_select %p781, %s36, 1
        %s783 = scalar_lea.vmem %s13, %s782
        %p784 = pneg %p375
        %p785 = pneg %p372
        %p786 = scmp.lt.s32.totalorder %s36, 1
        %s787 = scalar_select %p786, %s36, 1
        %s788 = scalar_lea.vmem %s14, %s787
        %p789 = pneg %p401
        %p790 = pneg %p398
        %p791 = scmp.lt.s32.totalorder %s36, 1
        %s792 = scalar_select %p791, %s36, 1
        %s793 = scalar_lea.vmem %s15, %s792
        %p794 = pneg %p427
        %p795 = pneg %p424
        %p796 = pneg %p448
        %p797 = pneg %p445
        %p798 = pneg %p469
        %p799 = pneg %p466
        %p800 = pneg %p490
        %p801 = pneg %p487
        %p802 = pneg %p511
        %p803 = pneg %p508
        %p804 = pneg %p532
        %p805 = pneg %p529
        %p806 = pneg %p553
        %p807 = pneg %p550
        %p808 = pneg %p574
        %p809 = pneg %p571
        %p810 = scmp.lt.s32.totalorder %s36, 1
        %s811 = scalar_select %p810, %s36, 1
        %s812 = smul.addr %s811, 4
        %s813 = smul.addr %s812, 4
        %s814 = scalar_lea.vmem %s4, %s813
        %p815 = scmp.lt.s32.totalorder %s36, 1
        %s816 = scalar_select %p815, %s36, 1
        %s817 = scalar_lea.vmem %s5, %s816
        %p818 = scmp.lt.s32.totalorder %s36, 1
        %s819 = scalar_select %p818, %s36, 1
        %s820 = smul.addr %s819, 4
        %s821 = smul.addr %s820, 4
        %s822 = scalar_lea.vmem %s6, %s821
        %p823 = scmp.lt.s32.totalorder %s36, 1
        %s824 = scalar_select %p823, %s36, 1
        %s825 = scalar_lea.vmem %s7, %s824
        %p826 = scmp.lt.s32.totalorder %s36, 1
        %s827 = scalar_select %p826, %s36, 1
        %s828 = scalar_lea.vmem %s8, %s827
        %p829 = scmp.lt.s32.totalorder %s36, 1
        %s830 = scalar_select %p829, %s36, 1
        %s831 = scalar_lea.vmem %s9, %s830
        %p832 = scmp.lt.s32.totalorder %s36, 1
        %s833 = scalar_select %p832, %s36, 1
        %s834 = smul.addr %s833, 4
        %s835 = smul.addr %s834, 4
        %s836 = scalar_lea.vmem %s10, %s835
        %p837 = scmp.lt.s32.totalorder %s36, 1
        %s838 = scalar_select %p837, %s36, 1
        %s839 = scalar_lea.vmem %s11, %s838
        %p840 = scmp.lt.s32.totalorder %s36, 1
        %s841 = scalar_select %p840, %s36, 1
        %s842 = smul.addr %s841, 8
        %s843 = smul.addr %s842, 4
        %s844 = scalar_lea.vmem %s12, %s843
        %p845 = scmp.lt.s32.totalorder %s36, 1
        %s846 = scalar_select %p845, %s36, 1
        %s847 = scalar_lea.vmem %s13, %s846
        %p848 = scmp.lt.s32.totalorder %s36, 1
        %s849 = scalar_select %p848, %s36, 1
        %s850 = scalar_lea.vmem %s14, %s849
        %p851 = scmp.lt.s32.totalorder %s36, 1
        %s852 = scalar_select %p851, %s36, 1
        %s853 = scalar_lea.vmem %s15, %s852
        %p855 = scmp.eq.s32.totalorder %s36, 0
        // Predicated region
        $region109: #{bert_linear_forward.1} parent=103 // pred_check
          %p856 = pneg %p855
        $region110: #{bert_linear_forward.1} parent=103 // pred_check_branch
          %858 = sbr.rel (%p856) target = $region112
        $region111: #{bert_linear_forward.1} parent=103 // pred_region
          %v859 = vld [vmem:[%s0] sm:$0xff]
          %v860 = vld [vmem:[%s0 + $0x8] sm:$0xff]
          %v861 = vld [vmem:[%s2] sm:$0x1]
          %v862 = vld [vmem:[%s3] sm:$0x1]
          %vm863 = vcmask 261120
          %v864 = vsel %vm863, %v859, 0.0
          %865 = vadd.xlane.f32.xlu0 %v864
          %v866 = vpop.xlane.xlu0 %865
          %v867 = vsel %vm863, %v860, 0.0
          %868 = vadd.xlane.f32.xlu0 %v867
          %v869 = vpop.xlane.xlu0 %868
          %v870 = vrcp.pop 32.0
          %v871 = vmul.f32 32.0, %v870
          %v872 = vsub.f32 1.0, %v871
          %v873 = vmul.f32 %v870, %v872
          %v874 = vadd.f32 %v870, %v873
          %vm875 = vweird.f32 %v870
          %v876 = vsel %vm875, %v870, %v874
          %v877 = vmul.f32 %v866, %v876
          %v878 = vmul.f32 %v869, %v876
          %v879 = vsub.f32 %v859, %v877
          %v880 = vsub.f32 %v860, %v878
          %v881 = vmul.f32 %v879, %v879
          %v882 = vmul.f32 %v880, %v880
          %v883 = vsel %vm863, %v881, 0.0
          %884 = vadd.xlane.f32.xlu0 %v883
          %v885 = vpop.xlane.xlu0 %884
          %v886 = vsel %vm863, %v882, 0.0
          %887 = vadd.xlane.f32.xlu0 %v886
          %v888 = vpop.xlane.xlu0 %887
          %v889 = vmul.f32 %v885, %v876
          %v890 = vmul.f32 %v888, %v876
          %v891 = vadd.f32 %v889, 1e-12
          %v892 = vadd.f32 %v890, 1e-12
          %v893 = vrsqrt.pop %v891
          %v894 = vmul.f32 %v893, %v891
          %v895 = vmul.f32 %v894, %v893
          %v896 = vmul.f32 0.5, %v895
          %v897 = vsub.f32 1.5, %v896
          %v898 = vmul.f32 %v893, %v897
          %vm899 = vweird.f32 %v891
          %vm900 = vweird.f32 %v893
          %vm901 = vmor %vm899, %vm900
          %v902 = vsel %vm901, %v893, %v898
          %v903 = vrsqrt.pop %v892
          %v904 = vmul.f32 %v903, %v892
          %v905 = vmul.f32 %v904, %v903
          %v906 = vmul.f32 0.5, %v905
          %v907 = vsub.f32 1.5, %v906
          %v908 = vmul.f32 %v903, %v907
          %vm909 = vweird.f32 %v892
          %vm910 = vweird.f32 %v903
          %vm911 = vmor %vm909, %vm910
          %v912 = vsel %vm911, %v903, %v908
          %v913 = vmul.f32 %v879, %v902
          %v914 = vmul.f32 %v880, %v912
          %v916 = vperm.slane %v861, 0
          %v918 = vmul.f32 %v913, %v916
          %v919 = vmul.f32 %v914, %v916
          %v921 = vperm.slane %v862, 0
          %v923 = vadd.f32 %v918, %v921
          %v924 = vadd.f32 %v919, %v921
          %925 = vst.msk [vmem:[#allocation2] sm:$0xff] %vm863, %v923
          %926 = vst.msk [vmem:[#allocation2 + $0x8] sm:$0xff] %vm863, %v924
        $region112: #{bert_linear_forward.1} parent=103 // pred_fallthru
          _
        %v927 = vld [vmem:[#allocation2] sm:$0xff]
        %v928 = vld [vmem:[#allocation2 + $0x8] sm:$0xff]
        %v929 = vpack.c.bf16 %v928, %v927
        %v930 = vld [vmem:[%s814] sm:$0xf]
        %v931 = vld [vmem:[%s814 + $0x4] sm:$0xf]
        %v932 = vld [vmem:[%s814 + $0x8] sm:$0xf]
        %v933 = vld [vmem:[%s814 + $0xc] sm:$0xf]
        %v934 = vld [vmem:[%s817] sm:$0x1]
        %v936 = vperm.slane %v934, 0
        %v942 = vunpack.c.l.b16 %v930
        %v943 = vunpack.c.l.b16 %v931
        %v944 = vunpack.c.l.b16 %v932
        %v945 = vunpack.c.l.b16 %v933
        %v946 = vpack.c.b16 %v943, %v942
        %v947 = vpack.c.b16 %v945, %v944
        %vm950 = vcmask 261120
        %v952 = vsel %vm950, %v929, 0
        %954 = vmatpush.bf16.msra.mxu0 0
        %955 = vmatpush.bf16.msra.mxu0 0
        %956 = vmatpush.bf16.msra.mxu0 0
        %957 = vmatpush.bf16.msra.mxu0 0
        %958 = vmatpush.bf16.msra.mxu0 0
        %959 = vmatpush.bf16.msra.mxu0 0
        %960 = vmatpush.bf16.msra.mxu0 %v947
        %961 = vmatpush.bf16.msra.mxu0 %v946
        %962 = vmatmul.bf16.gmra.mxu0 %v952
        %v963 = vpop.f32.mrf.mxu0
        %v964 = vadd.f32 %v936, %v963
        %v965 = vpop.f32.mrf.mxu0
        %v966 = vadd.f32 %v936, %v965
        %967 = vdwg.mxu0
        %v968 = vpack.c.bf16 %v964, %v964
        %v969 = vpack.c.bf16 %v966, %v966
        %v970 = vld [vmem:[%s1] sm:$0x1]
        %v971 = vperm.slane %v970, 0
        %v973 = vunpack.c.l.b16 %v968
        %v974 = vpack.c.b16 %v973, %v973
        %975 = vrot.lane.b32.xlu0 %v974, 96
        %v976 = vpop.permute.xlu0 %975
        %vm977 = vcmask 64512
        %v979 = vsel %vm977, %v968, 0
        %v982 = vsel %vm977, %v976, 0
        %984 = vmatpush.bf16.xpose.msra.mxu0 0
        %985 = vmatpush.bf16.xpose.msra.mxu0 0
        %986 = vmatpush.bf16.xpose.msra.mxu0 0
        %987 = vmatpush.bf16.xpose.msra.mxu0 0
        %988 = vmatpush.bf16.xpose.msra.mxu0 0
        %989 = vmatpush.bf16.xpose.msra.mxu0 0
        %990 = vmatpush.bf16.xpose.msra.mxu0 0
        %991 = vmatpush.bf16.xpose.msra.mxu0 %v982
        %992 = vmatmul.bf16.gmra.mxu0 %v979
        %v993 = vpop.f32.mrf.mxu0
        %v994 = vadd.f32 0.0, %v993
        %v995 = vpop.f32.mrf.mxu0
        %996 = vdwg.mxu0
        %v997 = vmul.f32 %v994, 0.35355338
        %v998 = vadd.f32 %v997, %v971
        %v999 = vsel %vm977, %v998, -inf
        %1000 = vmax.xlane.f32.xlu0 %v999
        %v1001 = vpop.xlane.xlu0 %1000
        %v1002 = vsub.f32 %v998, %v1001
        %v1003 = vmul.f32 %v1002, 1.442695
        %v1004 = vpow.pop %v1003
        %v1005 = vsel %vm977, %v1004, 0.0
        %1006 = vadd.xlane.f32.xlu0 %v1005
        %v1007 = vpop.xlane.xlu0 %1006
        %v1008 = vrcp.pop %v1007
        %v1009 = vmul.f32 %v1007, %v1008
        %v1010 = vsub.f32 1.0, %v1009
        %v1011 = vmul.f32 %v1008, %v1010
        %v1012 = vadd.f32 %v1008, %v1011
        %vm1013 = vweird.f32 %v1007
        %vm1014 = vweird.f32 %v1008
        %vm1015 = vmor %vm1013, %vm1014
        %v1016 = vsel %vm1015, %v1008, %v1012
        %v1017 = vand.u32 2147483647, %v1007
        %vm1018 = vcmp.eq.f32.partialorder %v1017, 8.507059e+37
        %v1019 = vand.u32 %v1007, 2147483648
        %v1020 = vor.u32 1.1754944e-38, %v1019
        %v1021 = vsel %vm1018, %v1020, %v1016
        %v1022 = vmul.f32 %v1004, %v1021
        %v1023 = vpack.c.bf16 %v1022, %v1022
        %1024 = vrot.lane.b32.xlu0 %v974, 64
        %v1025 = vpop.permute.xlu0 %1024
        %v1027 = vsel %vm977, %v1023, 0
        %vm1029 = vcmask 1043456
        %v1031 = vsel %vm1029, %v1025, 0
        %1033 = vmatpush.bf16.msra.mxu0 0
        %1034 = vmatpush.bf16.msra.mxu0 0
        %1035 = vmatpush.bf16.msra.mxu0 0
        %1036 = vmatpush.bf16.msra.mxu0 0
        %1037 = vmatpush.bf16.msra.mxu0 0
        %1038 = vmatpush.bf16.msra.mxu0 0
        %1039 = vmatpush.bf16.msra.mxu0 0
        %1040 = vmatpush.bf16.msra.mxu0 %v1031
        %1041 = vmatmul.bf16.gmra.mxu0 %v1027
        %v1042 = vpop.f32.mrf.mxu0
        %v1043 = vadd.f32 0.0, %v1042
        %v1044 = vpop.f32.mrf.mxu0
        %1045 = vdwg.mxu0
        %v1046 = vld [vmem:[%s822] sm:$0xf]
        %v1047 = vpack.c.bf16 %v1043, %v1043
        %1048 = vrot.lane.b32.xlu0 %v974, 120
        %v1049 = vpop.permute.xlu0 %1048
        %1050 = vrot.lane.b32.xlu0 %v974, 88
        %v1051 = vpop.permute.xlu0 %1050
        %v1053 = vsel %vm977, %v1049, 0
        %v1056 = vsel %vm977, %v1051, 0
        %1058 = vmatpush.bf16.xpose.msra.mxu0 0
        %1059 = vmatpush.bf16.xpose.msra.mxu0 0
        %1060 = vmatpush.bf16.xpose.msra.mxu0 0
        %1061 = vmatpush.bf16.xpose.msra.mxu0 0
        %1062 = vmatpush.bf16.xpose.msra.mxu0 0
        %1063 = vmatpush.bf16.xpose.msra.mxu0 0
        %1064 = vmatpush.bf16.xpose.msra.mxu0 0
        %1065 = vmatpush.bf16.xpose.msra.mxu0 %v1056
        %1066 = vmatmul.bf16.gmra.mxu0 %v1053
        %v1067 = vpop.f32.mrf.mxu0
        %v1068 = vadd.f32 0.0, %v1067
        %v1069 = vpop.f32.mrf.mxu0
        %1070 = vdwg.mxu0
        %v1071 = vmul.f32 %v1068, 0.35355338
        %v1072 = vadd.f32 %v1071, %v971
        %v1073 = vsel %vm977, %v1072, -inf
        %1074 = vmax.xlane.f32.xlu0 %v1073
        %v1075 = vpop.xlane.xlu0 %1074
        %v1076 = vsub.f32 %v1072, %v1075
        %v1077 = vmul.f32 %v1076, 1.442695
        %v1078 = vpow.pop %v1077
        %v1079 = vsel %vm977, %v1078, 0.0
        %1080 = vadd.xlane.f32.xlu0 %v1079
        %v1081 = vpop.xlane.xlu0 %1080
        %v1082 = vrcp.pop %v1081
        %v1083 = vmul.f32 %v1081, %v1082
        %v1084 = vsub.f32 1.0, %v1083
        %v1085 = vmul.f32 %v1082, %v1084
        %v1086 = vadd.f32 %v1082, %v1085
        %vm1087 = vweird.f32 %v1081
        %vm1088 = vweird.f32 %v1082
        %vm1089 = vmor %vm1087, %vm1088
        %v1090 = vsel %vm1089, %v1082, %v1086
        %v1091 = vand.u32 2147483647, %v1081
        %vm1092 = vcmp.eq.f32.partialorder %v1091, 8.507059e+37
        %v1093 = vand.u32 %v1081, 2147483648
        %v1094 = vor.u32 1.1754944e-38, %v1093
        %v1095 = vsel %vm1092, %v1094, %v1090
        %v1096 = vmul.f32 %v1078, %v1095
        %v1097 = vpack.c.bf16 %v1096, %v1096
        %1098 = vrot.lane.b32.xlu0 %v974, 56
        %v1099 = vpop.permute.xlu0 %1098
        %v1101 = vsel %vm977, %v1097, 0
        %v1104 = vsel %vm1029, %v1099, 0
        %1106 = vmatpush.bf16.msra.mxu0 0
        %1107 = vmatpush.bf16.msra.mxu0 0
        %1108 = vmatpush.bf16.msra.mxu0 0
        %1109 = vmatpush.bf16.msra.mxu0 0
        %1110 = vmatpush.bf16.msra.mxu0 0
        %1111 = vmatpush.bf16.msra.mxu0 0
        %1112 = vmatpush.bf16.msra.mxu0 0
        %1113 = vmatpush.bf16.msra.mxu0 %v1104
        %1114 = vmatmul.bf16.gmra.mxu0 %v1101
        %v1115 = vpop.f32.mrf.mxu0
        %v1116 = vadd.f32 0.0, %v1115
        %v1117 = vpop.f32.mrf.mxu0
        %1118 = vdwg.mxu0
        %s1119 = scalar_lea.vmem %s822, 4
        %v1120 = vld [vmem:[%s1119] sm:$0xf]
        %v1121 = vpack.c.bf16 %v1116, %v1116
        %v1123 = vsel %vm977, %v1121, 0
        %v1126 = vsel %vm1029, %v1120, 0
        %1128 = vmatpush.bf16.msra.mxu0 0
        %1129 = vmatpush.bf16.msra.mxu0 0
        %1130 = vmatpush.bf16.msra.mxu0 0
        %1131 = vmatpush.bf16.msra.mxu0 0
        %1132 = vmatpush.bf16.msra.mxu0 0
        %1133 = vmatpush.bf16.msra.mxu0 0
        %1134 = vmatpush.bf16.msra.mxu0 0
        %1135 = vmatpush.bf16.msra.mxu0 %v1126
        %1136 = vmatmul.bf16.gmra.mxu0 %v1123
        %v1137 = vpop.f32.mrf.mxu0
        %v1138 = vadd.f32 0.0, %v1137
        %v1139 = vpop.f32.mrf.mxu0
        %1140 = vdwg.mxu0
        %v1142 = vsel %vm977, %v1047, 0
        %v1145 = vsel %vm1029, %v1046, 0
        %1147 = vmatpush.bf16.msra.mxu0 0
        %1148 = vmatpush.bf16.msra.mxu0 0
        %1149 = vmatpush.bf16.msra.mxu0 0
        %1150 = vmatpush.bf16.msra.mxu0 0
        %1151 = vmatpush.bf16.msra.mxu0 0
        %1152 = vmatpush.bf16.msra.mxu0 0
        %1153 = vmatpush.bf16.msra.mxu0 0
        %1154 = vmatpush.bf16.msra.mxu0 %v1145
        %1155 = vmatmul.bf16.gmra.mxu0 %v1142
        %v1156 = vpop.f32.mrf.mxu0
        %v1157 = vadd.f32 %v1138, %v1156
        %v1158 = vpop.f32.mrf.mxu0
        %1159 = vdwg.mxu0
        %1160 = vrot.lane.b32.xlu0 %v974, 112
        %v1161 = vpop.permute.xlu0 %1160
        %1162 = vrot.lane.b32.xlu0 %v974, 80
        %v1163 = vpop.permute.xlu0 %1162
        %v1165 = vsel %vm977, %v1161, 0
        %v1168 = vsel %vm977, %v1163, 0
        %1170 = vmatpush.bf16.xpose.msra.mxu0 0
        %1171 = vmatpush.bf16.xpose.msra.mxu0 0
        %1172 = vmatpush.bf16.xpose.msra.mxu0 0
        %1173 = vmatpush.bf16.xpose.msra.mxu0 0
        %1174 = vmatpush.bf16.xpose.msra.mxu0 0
        %1175 = vmatpush.bf16.xpose.msra.mxu0 0
        %1176 = vmatpush.bf16.xpose.msra.mxu0 0
        %1177 = vmatpush.bf16.xpose.msra.mxu0 %v1168
        %1178 = vmatmul.bf16.gmra.mxu0 %v1165
        %v1179 = vpop.f32.mrf.mxu0
        %v1180 = vadd.f32 0.0, %v1179
        %v1181 = vpop.f32.mrf.mxu0
        %1182 = vdwg.mxu0
        %v1183 = vmul.f32 %v1180, 0.35355338
        %v1184 = vadd.f32 %v1183, %v971
        %v1185 = vsel %vm977, %v1184, -inf
        %1186 = vmax.xlane.f32.xlu0 %v1185
        %v1187 = vpop.xlane.xlu0 %1186
        %v1188 = vsub.f32 %v1184, %v1187
        %v1189 = vmul.f32 %v1188, 1.442695
        %v1190 = vpow.pop %v1189
        %v1191 = vsel %vm977, %v1190, 0.0
        %1192 = vadd.xlane.f32.xlu0 %v1191
        %v1193 = vpop.xlane.xlu0 %1192
        %v1194 = vrcp.pop %v1193
        %v1195 = vmul.f32 %v1193, %v1194
        %v1196 = vsub.f32 1.0, %v1195
        %v1197 = vmul.f32 %v1194, %v1196
        %v1198 = vadd.f32 %v1194, %v1197
        %vm1199 = vweird.f32 %v1193
        %vm1200 = vweird.f32 %v1194
        %vm1201 = vmor %vm1199, %vm1200
        %v1202 = vsel %vm1201, %v1194, %v1198
        %v1203 = vand.u32 2147483647, %v1193
        %vm1204 = vcmp.eq.f32.partialorder %v1203, 8.507059e+37
        %v1205 = vand.u32 %v1193, 2147483648
        %v1206 = vor.u32 1.1754944e-38, %v1205
        %v1207 = vsel %vm1204, %v1206, %v1202
        %v1208 = vmul.f32 %v1190, %v1207
        %v1209 = vpack.c.bf16 %v1208, %v1208
        %1210 = vrot.lane.b32.xlu0 %v974, 48
        %v1211 = vpop.permute.xlu0 %1210
        %v1213 = vsel %vm977, %v1209, 0
        %v1216 = vsel %vm1029, %v1211, 0
        %1218 = vmatpush.bf16.msra.mxu0 0
        %1219 = vmatpush.bf16.msra.mxu0 0
        %1220 = vmatpush.bf16.msra.mxu0 0
        %1221 = vmatpush.bf16.msra.mxu0 0
        %1222 = vmatpush.bf16.msra.mxu0 0
        %1223 = vmatpush.bf16.msra.mxu0 0
        %1224 = vmatpush.bf16.msra.mxu0 0
        %1225 = vmatpush.bf16.msra.mxu0 %v1216
        %1226 = vmatmul.bf16.gmra.mxu0 %v1213
        %v1227 = vpop.f32.mrf.mxu0
        %v1228 = vadd.f32 0.0, %v1227
        %v1229 = vpop.f32.mrf.mxu0
        %1230 = vdwg.mxu0
        %s1231 = scalar_lea.vmem %s822, 8
        %v1232 = vld [vmem:[%s1231] sm:$0xf]
        %v1233 = vpack.c.bf16 %v1228, %v1228
        %v1235 = vsel %vm977, %v1233, 0
        %v1238 = vsel %vm1029, %v1232, 0
        %1240 = vmatpush.bf16.msra.mxu0 0
        %1241 = vmatpush.bf16.msra.mxu0 0
        %1242 = vmatpush.bf16.msra.mxu0 0
        %1243 = vmatpush.bf16.msra.mxu0 0
        %1244 = vmatpush.bf16.msra.mxu0 0
        %1245 = vmatpush.bf16.msra.mxu0 0
        %1246 = vmatpush.bf16.msra.mxu0 0
        %1247 = vmatpush.bf16.msra.mxu0 %v1238
        %1248 = vmatmul.bf16.gmra.mxu0 %v1235
        %v1249 = vpop.f32.mrf.mxu0
        %v1250 = vadd.f32 0.0, %v1249
        %v1251 = vpop.f32.mrf.mxu0
        %1252 = vdwg.mxu0
        %v1253 = vadd.f32 %v1157, %v1250
        %1254 = vrot.lane.b32.xlu0 %v974, 104
        %v1255 = vpop.permute.xlu0 %1254
        %1256 = vrot.lane.b32.xlu0 %v974, 72
        %v1257 = vpop.permute.xlu0 %1256
        %v1259 = vsel %vm977, %v1255, 0
        %v1262 = vsel %vm977, %v1257, 0
        %1264 = vmatpush.bf16.xpose.msra.mxu0 0
        %1265 = vmatpush.bf16.xpose.msra.mxu0 0
        %1266 = vmatpush.bf16.xpose.msra.mxu0 0
        %1267 = vmatpush.bf16.xpose.msra.mxu0 0
        %1268 = vmatpush.bf16.xpose.msra.mxu0 0
        %1269 = vmatpush.bf16.xpose.msra.mxu0 0
        %1270 = vmatpush.bf16.xpose.msra.mxu0 0
        %1271 = vmatpush.bf16.xpose.msra.mxu0 %v1262
        %1272 = vmatmul.bf16.gmra.mxu0 %v1259
        %v1273 = vpop.f32.mrf.mxu0
        %v1274 = vadd.f32 0.0, %v1273
        %v1275 = vpop.f32.mrf.mxu0
        %1276 = vdwg.mxu0
        %v1277 = vmul.f32 %v1274, 0.35355338
        %v1278 = vadd.f32 %v1277, %v971
        %v1279 = vsel %vm977, %v1278, -inf
        %1280 = vmax.xlane.f32.xlu0 %v1279
        %v1281 = vpop.xlane.xlu0 %1280
        %v1282 = vsub.f32 %v1278, %v1281
        %v1283 = vmul.f32 %v1282, 1.442695
        %v1284 = vpow.pop %v1283
        %v1285 = vsel %vm977, %v1284, 0.0
        %1286 = vadd.xlane.f32.xlu0 %v1285
        %v1287 = vpop.xlane.xlu0 %1286
        %v1288 = vrcp.pop %v1287
        %v1289 = vmul.f32 %v1287, %v1288
        %v1290 = vsub.f32 1.0, %v1289
        %v1291 = vmul.f32 %v1288, %v1290
        %v1292 = vadd.f32 %v1288, %v1291
        %vm1293 = vweird.f32 %v1287
        %vm1294 = vweird.f32 %v1288
        %vm1295 = vmor %vm1293, %vm1294
        %v1296 = vsel %vm1295, %v1288, %v1292
        %v1297 = vand.u32 2147483647, %v1287
        %vm1298 = vcmp.eq.f32.partialorder %v1297, 8.507059e+37
        %v1299 = vand.u32 %v1287, 2147483648
        %v1300 = vor.u32 1.1754944e-38, %v1299
        %v1301 = vsel %vm1298, %v1300, %v1296
        %v1302 = vmul.f32 %v1284, %v1301
        %v1303 = vpack.c.bf16 %v1302, %v1302
        %1304 = vrot.lane.b32.xlu0 %v974, 40
        %v1305 = vpop.permute.xlu0 %1304
        %v1307 = vsel %vm977, %v1303, 0
        %v1310 = vsel %vm1029, %v1305, 0
        %1312 = vmatpush.bf16.msra.mxu0 0
        %1313 = vmatpush.bf16.msra.mxu0 0
        %1314 = vmatpush.bf16.msra.mxu0 0
        %1315 = vmatpush.bf16.msra.mxu0 0
        %1316 = vmatpush.bf16.msra.mxu0 0
        %1317 = vmatpush.bf16.msra.mxu0 0
        %1318 = vmatpush.bf16.msra.mxu0 0
        %1319 = vmatpush.bf16.msra.mxu0 %v1310
        %1320 = vmatmul.bf16.gmra.mxu0 %v1307
        %v1321 = vpop.f32.mrf.mxu0
        %v1322 = vadd.f32 0.0, %v1321
        %v1323 = vpop.f32.mrf.mxu0
        %1324 = vdwg.mxu0
        %s1325 = scalar_lea.vmem %s822, 12
        %v1326 = vld [vmem:[%s1325] sm:$0xf]
        %v1327 = vpack.c.bf16 %v1322, %v1322
        %v1329 = vsel %vm977, %v1327, 0
        %v1332 = vsel %vm1029, %v1326, 0
        %1334 = vmatpush.bf16.msra.mxu0 0
        %1335 = vmatpush.bf16.msra.mxu0 0
        %1336 = vmatpush.bf16.msra.mxu0 0
        %1337 = vmatpush.bf16.msra.mxu0 0
        %1338 = vmatpush.bf16.msra.mxu0 0
        %1339 = vmatpush.bf16.msra.mxu0 0
        %1340 = vmatpush.bf16.msra.mxu0 0
        %1341 = vmatpush.bf16.msra.mxu0 %v1332
        %1342 = vmatmul.bf16.gmra.mxu0 %v1329
        %v1343 = vpop.f32.mrf.mxu0
        %v1344 = vadd.f32 0.0, %v1343
        %v1345 = vpop.f32.mrf.mxu0
        %1346 = vdwg.mxu0
        %v1347 = vadd.f32 %v1253, %v1344
        %v1348 = vld [vmem:[%s1 + $0x1] sm:$0x1]
        %v1349 = vperm.slane %v1348, 0
        %v1351 = vunpack.c.l.b16 %v969
        %v1352 = vpack.c.b16 %v1351, %v1351
        %1353 = vrot.lane.b32.xlu0 %v1352, 96
        %v1354 = vpop.permute.xlu0 %1353
        %v1356 = vsel %vm977, %v969, 0
        %v1359 = vsel %vm977, %v1354, 0
        %1361 = vmatpush.bf16.xpose.msra.mxu0 0
        %1362 = vmatpush.bf16.xpose.msra.mxu0 0
        %1363 = vmatpush.bf16.xpose.msra.mxu0 0
        %1364 = vmatpush.bf16.xpose.msra.mxu0 0
        %1365 = vmatpush.bf16.xpose.msra.mxu0 0
        %1366 = vmatpush.bf16.xpose.msra.mxu0 0
        %1367 = vmatpush.bf16.xpose.msra.mxu0 0
        %1368 = vmatpush.bf16.xpose.msra.mxu0 %v1359
        %1369 = vmatmul.bf16.gmra.mxu0 %v1356
        %v1370 = vpop.f32.mrf.mxu0
        %v1371 = vadd.f32 0.0, %v1370
        %v1372 = vpop.f32.mrf.mxu0
        %1373 = vdwg.mxu0
        %v1374 = vmul.f32 %v1371, 0.35355338
        %v1375 = vadd.f32 %v1374, %v1349
        %v1376 = vsel %vm977, %v1375, -inf
        %1377 = vmax.xlane.f32.xlu0 %v1376
        %v1378 = vpop.xlane.xlu0 %1377
        %v1379 = vsub.f32 %v1375, %v1378
        %v1380 = vmul.f32 %v1379, 1.442695
        %v1381 = vpow.pop %v1380
        %v1382 = vsel %vm977, %v1381, 0.0
        %1383 = vadd.xlane.f32.xlu0 %v1382
        %v1384 = vpop.xlane.xlu0 %1383
        %v1385 = vrcp.pop %v1384
        %v1386 = vmul.f32 %v1384, %v1385
        %v1387 = vsub.f32 1.0, %v1386
        %v1388 = vmul.f32 %v1385, %v1387
        %v1389 = vadd.f32 %v1385, %v1388
        %vm1390 = vweird.f32 %v1384
        %vm1391 = vweird.f32 %v1385
        %vm1392 = vmor %vm1390, %vm1391
        %v1393 = vsel %vm1392, %v1385, %v1389
        %v1394 = vand.u32 2147483647, %v1384
        %vm1395 = vcmp.eq.f32.partialorder %v1394, 8.507059e+37
        %v1396 = vand.u32 %v1384, 2147483648
        %v1397 = vor.u32 1.1754944e-38, %v1396
        %v1398 = vsel %vm1395, %v1397, %v1393
        %v1399 = vmul.f32 %v1381, %v1398
        %v1400 = vpack.c.bf16 %v1399, %v1399
        %1401 = vrot.lane.b32.xlu0 %v1352, 64
        %v1402 = vpop.permute.xlu0 %1401
        %v1404 = vsel %vm977, %v1400, 0
        %v1407 = vsel %vm1029, %v1402, 0
        %1409 = vmatpush.bf16.msra.mxu0 0
        %1410 = vmatpush.bf16.msra.mxu0 0
        %1411 = vmatpush.bf16.msra.mxu0 0
        %1412 = vmatpush.bf16.msra.mxu0 0
        %1413 = vmatpush.bf16.msra.mxu0 0
        %1414 = vmatpush.bf16.msra.mxu0 0
        %1415 = vmatpush.bf16.msra.mxu0 0
        %1416 = vmatpush.bf16.msra.mxu0 %v1407
        %1417 = vmatmul.bf16.gmra.mxu0 %v1404
        %v1418 = vpop.f32.mrf.mxu0
        %v1419 = vadd.f32 0.0, %v1418
        %v1420 = vpop.f32.mrf.mxu0
        %1421 = vdwg.mxu0
        %v1422 = vpack.c.bf16 %v1419, %v1419
        %1423 = vrot.lane.b32.xlu0 %v1352, 120
        %v1424 = vpop.permute.xlu0 %1423
        %1425 = vrot.lane.b32.xlu0 %v1352, 88
        %v1426 = vpop.permute.xlu0 %1425
        %v1428 = vsel %vm977, %v1424, 0
        %v1431 = vsel %vm977, %v1426, 0
        %1433 = vmatpush.bf16.xpose.msra.mxu0 0
        %1434 = vmatpush.bf16.xpose.msra.mxu0 0
        %1435 = vmatpush.bf16.xpose.msra.mxu0 0
        %1436 = vmatpush.bf16.xpose.msra.mxu0 0
        %1437 = vmatpush.bf16.xpose.msra.mxu0 0
        %1438 = vmatpush.bf16.xpose.msra.mxu0 0
        %1439 = vmatpush.bf16.xpose.msra.mxu0 0
        %1440 = vmatpush.bf16.xpose.msra.mxu0 %v1431
        %1441 = vmatmul.bf16.gmra.mxu0 %v1428
        %v1442 = vpop.f32.mrf.mxu0
        %v1443 = vadd.f32 0.0, %v1442
        %v1444 = vpop.f32.mrf.mxu0
        %1445 = vdwg.mxu0
        %v1446 = vmul.f32 %v1443, 0.35355338
        %v1447 = vadd.f32 %v1446, %v1349
        %v1448 = vsel %vm977, %v1447, -inf
        %1449 = vmax.xlane.f32.xlu0 %v1448
        %v1450 = vpop.xlane.xlu0 %1449
        %v1451 = vsub.f32 %v1447, %v1450
        %v1452 = vmul.f32 %v1451, 1.442695
        %v1453 = vpow.pop %v1452
        %v1454 = vsel %vm977, %v1453, 0.0
        %1455 = vadd.xlane.f32.xlu0 %v1454
        %v1456 = vpop.xlane.xlu0 %1455
        %v1457 = vrcp.pop %v1456
        %v1458 = vmul.f32 %v1456, %v1457
        %v1459 = vsub.f32 1.0, %v1458
        %v1460 = vmul.f32 %v1457, %v1459
        %v1461 = vadd.f32 %v1457, %v1460
        %vm1462 = vweird.f32 %v1456
        %vm1463 = vweird.f32 %v1457
        %vm1464 = vmor %vm1462, %vm1463
        %v1465 = vsel %vm1464, %v1457, %v1461
        %v1466 = vand.u32 2147483647, %v1456
        %vm1467 = vcmp.eq.f32.partialorder %v1466, 8.507059e+37
        %v1468 = vand.u32 %v1456, 2147483648
        %v1469 = vor.u32 1.1754944e-38, %v1468
        %v1470 = vsel %vm1467, %v1469, %v1465
        %v1471 = vmul.f32 %v1453, %v1470
        %v1472 = vpack.c.bf16 %v1471, %v1471
        %1473 = vrot.lane.b32.xlu0 %v1352, 56
        %v1474 = vpop.permute.xlu0 %1473
        %v1476 = vsel %vm977, %v1472, 0
        %v1479 = vsel %vm1029, %v1474, 0
        %1481 = vmatpush.bf16.msra.mxu0 0
        %1482 = vmatpush.bf16.msra.mxu0 0
        %1483 = vmatpush.bf16.msra.mxu0 0
        %1484 = vmatpush.bf16.msra.mxu0 0
        %1485 = vmatpush.bf16.msra.mxu0 0
        %1486 = vmatpush.bf16.msra.mxu0 0
        %1487 = vmatpush.bf16.msra.mxu0 0
        %1488 = vmatpush.bf16.msra.mxu0 %v1479
        %1489 = vmatmul.bf16.gmra.mxu0 %v1476
        %v1490 = vpop.f32.mrf.mxu0
        %v1491 = vadd.f32 0.0, %v1490
        %v1492 = vpop.f32.mrf.mxu0
        %1493 = vdwg.mxu0
        %v1494 = vpack.c.bf16 %v1491, %v1491
        %v1496 = vsel %vm977, %v1494, 0
        %1498 = vmatpush.bf16.msra.mxu0 0
        %1499 = vmatpush.bf16.msra.mxu0 0
        %1500 = vmatpush.bf16.msra.mxu0 0
        %1501 = vmatpush.bf16.msra.mxu0 0
        %1502 = vmatpush.bf16.msra.mxu0 0
        %1503 = vmatpush.bf16.msra.mxu0 0
        %1504 = vmatpush.bf16.msra.mxu0 0
        %1505 = vmatpush.bf16.msra.mxu0 %v1126
        %1506 = vmatmul.bf16.gmra.mxu0 %v1496
        %v1507 = vpop.f32.mrf.mxu0
        %v1508 = vadd.f32 0.0, %v1507
        %v1509 = vpop.f32.mrf.mxu0
        %1510 = vdwg.mxu0
        %v1512 = vsel %vm977, %v1422, 0
        %1514 = vmatpush.bf16.msra.mxu0 0
        %1515 = vmatpush.bf16.msra.mxu0 0
        %1516 = vmatpush.bf16.msra.mxu0 0
        %1517 = vmatpush.bf16.msra.mxu0 0
        %1518 = vmatpush.bf16.msra.mxu0 0
        %1519 = vmatpush.bf16.msra.mxu0 0
        %1520 = vmatpush.bf16.msra.mxu0 0
        %1521 = vmatpush.bf16.msra.mxu0 %v1145
        %1522 = vmatmul.bf16.gmra.mxu0 %v1512
        %v1523 = vpop.f32.mrf.mxu0
        %v1524 = vadd.f32 %v1508, %v1523
        %v1525 = vpop.f32.mrf.mxu0
        %1526 = vdwg.mxu0
        %1527 = vrot.lane.b32.xlu0 %v1352, 112
        %v1528 = vpop.permute.xlu0 %1527
        %1529 = vrot.lane.b32.xlu0 %v1352, 80
        %v1530 = vpop.permute.xlu0 %1529
        %v1532 = vsel %vm977, %v1528, 0
        %v1535 = vsel %vm977, %v1530, 0
        %1537 = vmatpush.bf16.xpose.msra.mxu0 0
        %1538 = vmatpush.bf16.xpose.msra.mxu0 0
        %1539 = vmatpush.bf16.xpose.msra.mxu0 0
        %1540 = vmatpush.bf16.xpose.msra.mxu0 0
        %1541 = vmatpush.bf16.xpose.msra.mxu0 0
        %1542 = vmatpush.bf16.xpose.msra.mxu0 0
        %1543 = vmatpush.bf16.xpose.msra.mxu0 0
        %1544 = vmatpush.bf16.xpose.msra.mxu0 %v1535
        %1545 = vmatmul.bf16.gmra.mxu0 %v1532
        %v1546 = vpop.f32.mrf.mxu0
        %v1547 = vadd.f32 0.0, %v1546
        %v1548 = vpop.f32.mrf.mxu0
        %1549 = vdwg.mxu0
        %v1550 = vmul.f32 %v1547, 0.35355338
        %v1551 = vadd.f32 %v1550, %v1349
        %v1552 = vsel %vm977, %v1551, -inf
        %1553 = vmax.xlane.f32.xlu0 %v1552
        %v1554 = vpop.xlane.xlu0 %1553
        %v1555 = vsub.f32 %v1551, %v1554
        %v1556 = vmul.f32 %v1555, 1.442695
        %v1557 = vpow.pop %v1556
        %v1558 = vsel %vm977, %v1557, 0.0
        %1559 = vadd.xlane.f32.xlu0 %v1558
        %v1560 = vpop.xlane.xlu0 %1559
        %v1561 = vrcp.pop %v1560
        %v1562 = vmul.f32 %v1560, %v1561
        %v1563 = vsub.f32 1.0, %v1562
        %v1564 = vmul.f32 %v1561, %v1563
        %v1565 = vadd.f32 %v1561, %v1564
        %vm1566 = vweird.f32 %v1560
        %vm1567 = vweird.f32 %v1561
        %vm1568 = vmor %vm1566, %vm1567
        %v1569 = vsel %vm1568, %v1561, %v1565
        %v1570 = vand.u32 2147483647, %v1560
        %vm1571 = vcmp.eq.f32.partialorder %v1570, 8.507059e+37
        %v1572 = vand.u32 %v1560, 2147483648
        %v1573 = vor.u32 1.1754944e-38, %v1572
        %v1574 = vsel %vm1571, %v1573, %v1569
        %v1575 = vmul.f32 %v1557, %v1574
        %v1576 = vpack.c.bf16 %v1575, %v1575
        %1577 = vrot.lane.b32.xlu0 %v1352, 48
        %v1578 = vpop.permute.xlu0 %1577
        %v1580 = vsel %vm977, %v1576, 0
        %v1583 = vsel %vm1029, %v1578, 0
        %1585 = vmatpush.bf16.msra.mxu0 0
        %1586 = vmatpush.bf16.msra.mxu0 0
        %1587 = vmatpush.bf16.msra.mxu0 0
        %1588 = vmatpush.bf16.msra.mxu0 0
        %1589 = vmatpush.bf16.msra.mxu0 0
        %1590 = vmatpush.bf16.msra.mxu0 0
        %1591 = vmatpush.bf16.msra.mxu0 0
        %1592 = vmatpush.bf16.msra.mxu0 %v1583
        %1593 = vmatmul.bf16.gmra.mxu0 %v1580
        %v1594 = vpop.f32.mrf.mxu0
        %v1595 = vadd.f32 0.0, %v1594
        %v1596 = vpop.f32.mrf.mxu0
        %1597 = vdwg.mxu0
        %v1598 = vpack.c.bf16 %v1595, %v1595
        %v1600 = vsel %vm977, %v1598, 0
        %1602 = vmatpush.bf16.msra.mxu0 0
        %1603 = vmatpush.bf16.msra.mxu0 0
        %1604 = vmatpush.bf16.msra.mxu0 0
        %1605 = vmatpush.bf16.msra.mxu0 0
        %1606 = vmatpush.bf16.msra.mxu0 0
        %1607 = vmatpush.bf16.msra.mxu0 0
        %1608 = vmatpush.bf16.msra.mxu0 0
        %1609 = vmatpush.bf16.msra.mxu0 %v1238
        %1610 = vmatmul.bf16.gmra.mxu0 %v1600
        %v1611 = vpop.f32.mrf.mxu0
        %v1612 = vadd.f32 0.0, %v1611
        %v1613 = vpop.f32.mrf.mxu0
        %1614 = vdwg.mxu0
        %v1615 = vadd.f32 %v1524, %v1612
        %1616 = vrot.lane.b32.xlu0 %v1352, 104
        %v1617 = vpop.permute.xlu0 %1616
        %1618 = vrot.lane.b32.xlu0 %v1352, 72
        %v1619 = vpop.permute.xlu0 %1618
        %v1621 = vsel %vm977, %v1617, 0
        %v1624 = vsel %vm977, %v1619, 0
        %1626 = vmatpush.bf16.xpose.msra.mxu0 0
        %1627 = vmatpush.bf16.xpose.msra.mxu0 0
        %1628 = vmatpush.bf16.xpose.msra.mxu0 0
        %1629 = vmatpush.bf16.xpose.msra.mxu0 0
        %1630 = vmatpush.bf16.xpose.msra.mxu0 0
        %1631 = vmatpush.bf16.xpose.msra.mxu0 0
        %1632 = vmatpush.bf16.xpose.msra.mxu0 0
        %1633 = vmatpush.bf16.xpose.msra.mxu0 %v1624
        %1634 = vmatmul.bf16.gmra.mxu0 %v1621
        %v1635 = vpop.f32.mrf.mxu0
        %v1636 = vadd.f32 0.0, %v1635
        %v1637 = vpop.f32.mrf.mxu0
        %1638 = vdwg.mxu0
        %v1639 = vmul.f32 %v1636, 0.35355338
        %v1640 = vadd.f32 %v1639, %v1349
        %v1641 = vsel %vm977, %v1640, -inf
        %1642 = vmax.xlane.f32.xlu0 %v1641
        %v1643 = vpop.xlane.xlu0 %1642
        %v1644 = vsub.f32 %v1640, %v1643
        %v1645 = vmul.f32 %v1644, 1.442695
        %v1646 = vpow.pop %v1645
        %v1647 = vsel %vm977, %v1646, 0.0
        %1648 = vadd.xlane.f32.xlu0 %v1647
        %v1649 = vpop.xlane.xlu0 %1648
        %v1650 = vrcp.pop %v1649
        %v1651 = vmul.f32 %v1649, %v1650
        %v1652 = vsub.f32 1.0, %v1651
        %v1653 = vmul.f32 %v1650, %v1652
        %v1654 = vadd.f32 %v1650, %v1653
        %vm1655 = vweird.f32 %v1649
        %vm1656 = vweird.f32 %v1650
        %vm1657 = vmor %vm1655, %vm1656
        %v1658 = vsel %vm1657, %v1650, %v1654
        %v1659 = vand.u32 2147483647, %v1649
        %vm1660 = vcmp.eq.f32.partialorder %v1659, 8.507059e+37
        %v1661 = vand.u32 %v1649, 2147483648
        %v1662 = vor.u32 1.1754944e-38, %v1661
        %v1663 = vsel %vm1660, %v1662, %v1658
        %v1664 = vmul.f32 %v1646, %v1663
        %v1665 = vpack.c.bf16 %v1664, %v1664
        %1666 = vrot.lane.b32.xlu0 %v1352, 40
        %v1667 = vpop.permute.xlu0 %1666
        %v1669 = vsel %vm977, %v1665, 0
        %v1672 = vsel %vm1029, %v1667, 0
        %1674 = vmatpush.bf16.msra.mxu0 0
        %1675 = vmatpush.bf16.msra.mxu0 0
        %1676 = vmatpush.bf16.msra.mxu0 0
        %1677 = vmatpush.bf16.msra.mxu0 0
        %1678 = vmatpush.bf16.msra.mxu0 0
        %1679 = vmatpush.bf16.msra.mxu0 0
        %1680 = vmatpush.bf16.msra.mxu0 0
        %1681 = vmatpush.bf16.msra.mxu0 %v1672
        %1682 = vmatmul.bf16.gmra.mxu0 %v1669
        %v1683 = vpop.f32.mrf.mxu0
        %v1684 = vadd.f32 0.0, %v1683
        %v1685 = vpop.f32.mrf.mxu0
        %1686 = vdwg.mxu0
        %v1687 = vpack.c.bf16 %v1684, %v1684
        %v1689 = vsel %vm977, %v1687, 0
        %1691 = vmatpush.bf16.msra.mxu0 0
        %1692 = vmatpush.bf16.msra.mxu0 0
        %1693 = vmatpush.bf16.msra.mxu0 0
        %1694 = vmatpush.bf16.msra.mxu0 0
        %1695 = vmatpush.bf16.msra.mxu0 0
        %1696 = vmatpush.bf16.msra.mxu0 0
        %1697 = vmatpush.bf16.msra.mxu0 0
        %1698 = vmatpush.bf16.msra.mxu0 %v1332
        %1699 = vmatmul.bf16.gmra.mxu0 %v1689
        %v1700 = vpop.f32.mrf.mxu0
        %v1701 = vadd.f32 0.0, %v1700
        %v1702 = vpop.f32.mrf.mxu0
        %1703 = vdwg.mxu0
        %v1704 = vadd.f32 %v1615, %v1701
        %v1705 = vld [vmem:[%s825] sm:$0x1]
        %v1707 = vperm.slane %v1705, 0
        %v1709 = vadd.f32 %v1347, %v1707
        %v1710 = vadd.f32 %v1704, %v1707
        %v1711 = vadd.f32 %v1709, %v927
        %v1712 = vadd.f32 %v1710, %v928
        %v1713 = vld [vmem:[%s828] sm:$0x1]
        %v1714 = vld [vmem:[%s831] sm:$0x1]
        %v1715 = vsel %vm950, %v1711, 0.0
        %1716 = vadd.xlane.f32.xlu0 %v1715
        %v1717 = vpop.xlane.xlu0 %1716
        %v1718 = vsel %vm950, %v1712, 0.0
        %1719 = vadd.xlane.f32.xlu0 %v1718
        %v1720 = vpop.xlane.xlu0 %1719
        %v1721 = vrcp.pop 32.0
        %v1722 = vmul.f32 32.0, %v1721
        %v1723 = vsub.f32 1.0, %v1722
        %v1724 = vmul.f32 %v1721, %v1723
        %v1725 = vadd.f32 %v1721, %v1724
        %vm1726 = vweird.f32 %v1721
        %v1727 = vsel %vm1726, %v1721, %v1725
        %v1728 = vmul.f32 %v1717, %v1727
        %v1729 = vmul.f32 %v1720, %v1727
        %v1730 = vsub.f32 %v1711, %v1728
        %v1731 = vsub.f32 %v1712, %v1729
        %v1732 = vmul.f32 %v1730, %v1730
        %v1733 = vmul.f32 %v1731, %v1731
        %v1734 = vsel %vm950, %v1732, 0.0
        %1735 = vadd.xlane.f32.xlu0 %v1734
        %v1736 = vpop.xlane.xlu0 %1735
        %v1737 = vsel %vm950, %v1733, 0.0
        %1738 = vadd.xlane.f32.xlu0 %v1737
        %v1739 = vpop.xlane.xlu0 %1738
        %v1740 = vmul.f32 %v1736, %v1727
        %v1741 = vmul.f32 %v1739, %v1727
        %v1742 = vadd.f32 %v1740, 1e-12
        %v1743 = vadd.f32 %v1741, 1e-12
        %v1744 = vrsqrt.pop %v1742
        %v1745 = vmul.f32 %v1744, %v1742
        %v1746 = vmul.f32 %v1745, %v1744
        %v1747 = vmul.f32 0.5, %v1746
        %v1748 = vsub.f32 1.5, %v1747
        %v1749 = vmul.f32 %v1744, %v1748
        %vm1750 = vweird.f32 %v1742
        %vm1751 = vweird.f32 %v1744
        %vm1752 = vmor %vm1750, %vm1751
        %v1753 = vsel %vm1752, %v1744, %v1749
        %v1754 = vrsqrt.pop %v1743
        %v1755 = vmul.f32 %v1754, %v1743
        %v1756 = vmul.f32 %v1755, %v1754
        %v1757 = vmul.f32 0.5, %v1756
        %v1758 = vsub.f32 1.5, %v1757
        %v1759 = vmul.f32 %v1754, %v1758
        %vm1760 = vweird.f32 %v1743
        %vm1761 = vweird.f32 %v1754
        %vm1762 = vmor %vm1760, %vm1761
        %v1763 = vsel %vm1762, %v1754, %v1759
        %v1764 = vmul.f32 %v1730, %v1753
        %v1765 = vmul.f32 %v1731, %v1763
        %v1767 = vperm.slane %v1713, 0
        %v1769 = vmul.f32 %v1764, %v1767
        %v1770 = vmul.f32 %v1765, %v1767
        %v1772 = vperm.slane %v1714, 0
        %v1774 = vadd.f32 %v1769, %v1772
        %v1775 = vadd.f32 %v1770, %v1772
        %v1776 = vpack.c.bf16 %v1775, %v1774
        %v1777 = vld [vmem:[%s836] sm:$0xf]
        %v1778 = vld [vmem:[%s836 + $0x4] sm:$0xf]
        %v1779 = vld [vmem:[%s836 + $0x8] sm:$0xf]
        %v1780 = vld [vmem:[%s836 + $0xc] sm:$0xf]
        %v1781 = vld [vmem:[%s839] sm:$0x1]
        %v1783 = vperm.slane %v1781, 0
        %v1789 = vunpack.c.l.b16 %v1777
        %v1790 = vunpack.c.l.b16 %v1778
        %v1791 = vunpack.c.l.b16 %v1779
        %v1792 = vunpack.c.l.b16 %v1780
        %v1793 = vpack.c.b16 %v1790, %v1789
        %v1794 = vpack.c.b16 %v1792, %v1791
        %v1798 = vsel %vm950, %v1776, 0
        %1800 = vmatpush.bf16.msra.mxu0 0
        %1801 = vmatpush.bf16.msra.mxu0 0
        %1802 = vmatpush.bf16.msra.mxu0 0
        %1803 = vmatpush.bf16.msra.mxu0 0
        %1804 = vmatpush.bf16.msra.mxu0 0
        %1805 = vmatpush.bf16.msra.mxu0 0
        %1806 = vmatpush.bf16.msra.mxu0 %v1794
        %1807 = vmatpush.bf16.msra.mxu0 %v1793
        %1808 = vmatmul.bf16.gmra.mxu0 %v1798
        %v1809 = vpop.f32.mrf.mxu0
        %v1810 = vadd.f32 %v1783, %v1809
        %v1811 = vpop.f32.mrf.mxu0
        %v1812 = vadd.f32 %v1783, %v1811
        %1813 = vdwg.mxu0
        %v1814 = vmul.f32 %v1810, 0.5
        %v1815 = vmul.f32 %v1812, 0.5
        %v1816 = vmul.f32 %v1810, 0.044715
        %v1817 = vmul.f32 %v1812, 0.044715
        %v1818 = vmul.f32 %v1816, %v1810
        %v1819 = vmul.f32 %v1817, %v1812
        %v1820 = vmul.f32 %v1818, %v1810
        %v1821 = vmul.f32 %v1819, %v1812
        %v1822 = vadd.f32 %v1810, %v1820
        %v1823 = vadd.f32 %v1812, %v1821
        %v1824 = vmul.f32 %v1822, 0.7978846
        %v1825 = vmul.f32 %v1823, 0.7978846
        %v1826 = vtanh.pop %v1824
        %v1827 = vtanh.pop %v1825
        %v1828 = vadd.f32 %v1826, 1.0
        %v1829 = vadd.f32 %v1827, 1.0
        %v1830 = vmul.f32 %v1814, %v1828
        %v1831 = vmul.f32 %v1815, %v1829
        %v1832 = vpack.c.bf16 %v1831, %v1830
        %v1833 = vld [vmem:[%s844] sm:$0xf]
        %v1834 = vld [vmem:[%s844 + $0x4] sm:$0xf]
        %v1835 = vld [vmem:[%s844 + $0x8] sm:$0xf]
        %v1836 = vld [vmem:[%s844 + $0xc] sm:$0xf]
        %v1837 = vld [vmem:[%s844 + $0x10] sm:$0xf]
        %v1838 = vld [vmem:[%s844 + $0x14] sm:$0xf]
        %v1839 = vld [vmem:[%s844 + $0x18] sm:$0xf]
        %v1840 = vld [vmem:[%s844 + $0x1c] sm:$0xf]
        %v1841 = vld [vmem:[%s847] sm:$0x1]
        %v1843 = vperm.slane %v1841, 0
        %v1853 = vunpack.c.l.b16 %v1833
        %v1854 = vunpack.c.l.b16 %v1834
        %v1855 = vunpack.c.l.b16 %v1835
        %v1856 = vunpack.c.l.b16 %v1836
        %v1857 = vunpack.c.l.b16 %v1837
        %v1858 = vunpack.c.l.b16 %v1838
        %v1859 = vunpack.c.l.b16 %v1839
        %v1860 = vunpack.c.l.b16 %v1840
        %v1861 = vpack.c.b16 %v1854, %v1853
        %v1862 = vpack.c.b16 %v1856, %v1855
        %v1863 = vpack.c.b16 %v1858, %v1857
        %v1864 = vpack.c.b16 %v1860, %v1859
        %vm1869 = vcmask 523264
        %v1871 = vsel %vm1869, %v1832, 0
        %1873 = vmatpush.bf16.msra.mxu0 0
        %1874 = vmatpush.bf16.msra.mxu0 0
        %1875 = vmatpush.bf16.msra.mxu0 0
        %1876 = vmatpush.bf16.msra.mxu0 0
        %1877 = vmatpush.bf16.msra.mxu0 %v1864
        %1878 = vmatpush.bf16.msra.mxu0 %v1863
        %1879 = vmatpush.bf16.msra.mxu0 %v1862
        %1880 = vmatpush.bf16.msra.mxu0 %v1861
        %1881 = vmatmul.bf16.gmra.mxu0 %v1871
        %v1882 = vpop.f32.mrf.mxu0
        %v1883 = vadd.f32 %v1843, %v1882
        %v1884 = vpop.f32.mrf.mxu0
        %v1885 = vadd.f32 %v1843, %v1884
        %1886 = vdwg.mxu0
        %v1887 = vadd.f32 %v1883, %v1774
        %v1888 = vadd.f32 %v1885, %v1775
        %v1889 = vld [vmem:[%s850] sm:$0x1]
        %v1890 = vld [vmem:[%s853] sm:$0x1]
        %v1891 = vsel %vm950, %v1887, 0.0
        %1892 = vadd.xlane.f32.xlu0 %v1891
        %v1893 = vpop.xlane.xlu0 %1892
        %v1894 = vsel %vm950, %v1888, 0.0
        %1895 = vadd.xlane.f32.xlu0 %v1894
        %v1896 = vpop.xlane.xlu0 %1895
        %v1897 = vmul.f32 %v1893, %v1727
        %v1898 = vmul.f32 %v1896, %v1727
        %v1899 = vsub.f32 %v1887, %v1897
        %v1900 = vsub.f32 %v1888, %v1898
        %v1901 = vmul.f32 %v1899, %v1899
        %v1902 = vmul.f32 %v1900, %v1900
        %v1903 = vsel %vm950, %v1901, 0.0
        %1904 = vadd.xlane.f32.xlu0 %v1903
        %v1905 = vpop.xlane.xlu0 %1904
        %v1906 = vsel %vm950, %v1902, 0.0
        %1907 = vadd.xlane.f32.xlu0 %v1906
        %v1908 = vpop.xlane.xlu0 %1907
        %v1909 = vmul.f32 %v1905, %v1727
        %v1910 = vmul.f32 %v1908, %v1727
        %v1911 = vadd.f32 %v1909, 1e-12
        %v1912 = vadd.f32 %v1910, 1e-12
        %v1913 = vrsqrt.pop %v1911
        %v1914 = vmul.f32 %v1913, %v1911
        %v1915 = vmul.f32 %v1914, %v1913
        %v1916 = vmul.f32 0.5, %v1915
        %v1917 = vsub.f32 1.5, %v1916
        %v1918 = vmul.f32 %v1913, %v1917
        %vm1919 = vweird.f32 %v1911
        %vm1920 = vweird.f32 %v1913
        %vm1921 = vmor %vm1919, %vm1920
        %v1922 = vsel %vm1921, %v1913, %v1918
        %v1923 = vrsqrt.pop %v1912
        %v1924 = vmul.f32 %v1923, %v1912
        %v1925 = vmul.f32 %v1924, %v1923
        %v1926 = vmul.f32 0.5, %v1925
        %v1927 = vsub.f32 1.5, %v1926
        %v1928 = vmul.f32 %v1923, %v1927
        %vm1929 = vweird.f32 %v1912
        %vm1930 = vweird.f32 %v1923
        %vm1931 = vmor %vm1929, %vm1930
        %v1932 = vsel %vm1931, %v1923, %v1928
        %v1933 = vmul.f32 %v1899, %v1922
        %v1934 = vmul.f32 %v1900, %v1932
        %v1936 = vperm.slane %v1889, 0
        %v1938 = vmul.f32 %v1933, %v1936
        %v1939 = vmul.f32 %v1934, %v1936
        %v1941 = vperm.slane %v1890, 0
        %v1943 = vadd.f32 %v1938, %v1941
        %v1944 = vadd.f32 %v1939, %v1941
        %1945 = vst.msk [vmem:[#allocation2] sm:$0xff] %vm950, %v1943
        %1946 = vst.msk [vmem:[#allocation2 + $0x8] sm:$0xff] %vm950, %v1944
        %p1947 = scmp.eq.s32.totalorder %s36, 1
        // Predicated region
        $region113: #{bert_linear_forward.1} parent=103 // pred_check
          %p1948 = pneg %p1947
        $region114: #{bert_linear_forward.1} parent=103 // pred_check_branch
          %1950 = sbr.rel (%p1948) target = $region116
        $region115: #{bert_linear_forward.1} parent=103 // pred_region
          %v1952 = vrot.slane %v1944, 7
          %vm1954 = vcmask 1040384
          %v1955 = vsel %vm1954, %v1943, %v1952
          %v1956 = vpack.c.bf16 %v1955, %v1955
          %v1957 = vld [vmem:[%s16] sm:$0xf]
          %v1958 = vld [vmem:[%s16 + $0x4] sm:$0xf]
          %v1959 = vld [vmem:[%s16 + $0x8] sm:$0xf]
          %v1960 = vld [vmem:[%s16 + $0xc] sm:$0xf]
          %v1961 = vld [vmem:[%s17] sm:$0x1]
          %v1963 = vperm.slane %v1961, 0
          %v1969 = vunpack.c.l.b16 %v1957
          %v1970 = vunpack.c.l.b16 %v1958
          %v1971 = vunpack.c.l.b16 %v1959
          %v1972 = vunpack.c.l.b16 %v1960
          %v1973 = vpack.c.b16 %v1970, %v1969
          %v1974 = vpack.c.b16 %v1972, %v1971
          %v1978 = vsel %vm950, %v1956, 0
          %1980 = vmatpush.bf16.msra.mxu0 0
          %1981 = vmatpush.bf16.msra.mxu0 0
          %1982 = vmatpush.bf16.msra.mxu0 0
          %1983 = vmatpush.bf16.msra.mxu0 0
          %1984 = vmatpush.bf16.msra.mxu0 0
          %1985 = vmatpush.bf16.msra.mxu0 0
          %1986 = vmatpush.bf16.msra.mxu0 %v1974
          %1987 = vmatpush.bf16.msra.mxu0 %v1973
          %1988 = vmatmul.bf16.gmra.mxu0 %v1978
          %v1989 = vpop.f32.mrf.mxu0
          %v1990 = vadd.f32 %v1963, %v1989
          %v1991 = vpop.f32.mrf.mxu0
          %1992 = vdwg.mxu0
          %v1993 = vtanh.pop %v1990
          %v1994 = vpack.c.bf16 %v1993, %v1993
          %v1995 = vld [vmem:[%s18] sm:$0xf]
          %v1996 = vld [vmem:[%s18 + $0x4] sm:$0xf]
          %v1997 = vld [vmem:[%s18 + $0x8] sm:$0xf]
          %v1998 = vld [vmem:[%s18 + $0xc] sm:$0xf]
          %v1999 = vld [vmem:[%s19] sm:$0x1]
          %v2001 = vperm.slane %v1999, 0
          %v2007 = vunpack.c.l.b16 %v1995
          %v2008 = vunpack.c.l.b16 %v1996
          %v2009 = vunpack.c.l.b16 %v1997
          %v2010 = vunpack.c.l.b16 %v1998
          %v2011 = vpack.c.b16 %v2008, %v2007
          %v2012 = vpack.c.b16 %v2010, %v2009
          %v2016 = vsel %vm950, %v1994, 0
          %2018 = vmatpush.bf16.msra.mxu0 0
          %2019 = vmatpush.bf16.msra.mxu0 0
          %2020 = vmatpush.bf16.msra.mxu0 0
          %2021 = vmatpush.bf16.msra.mxu0 0
          %2022 = vmatpush.bf16.msra.mxu0 0
          %2023 = vmatpush.bf16.msra.mxu0 0
          %2024 = vmatpush.bf16.msra.mxu0 %v2012
          %2025 = vmatpush.bf16.msra.mxu0 %v2011
          %2026 = vmatmul.bf16.gmra.mxu0 %v2016
          %v2027 = vpop.f32.mrf.mxu0
          %v2028 = vadd.f32 %v2001, %v2027
          %v2029 = vpop.f32.mrf.mxu0
          %2030 = vdwg.mxu0
          %vm2031 = vcmask 17408
          %v2032 = vsel %vm2031, %v2028, -inf
          %2033 = vmax.xlane.f32.xlu0 %v2032
          %v2034 = vpop.xlane.xlu0 %2033
          %v2035 = vsub.f32 %v2028, %v2034
          %v2036 = vmul.f32 %v2035, 1.442695
          %v2037 = vpow.pop %v2036
          %v2038 = vsel %vm2031, %v2037, 0.0
          %2039 = vadd.xlane.f32.xlu0 %v2038
          %v2040 = vpop.xlane.xlu0 %2039
          %v2041 = vlog2.pop %v2040
          %v2042 = vmul.f32 %v2041, 0.6931472
          %v2043 = vsub.f32 %v2035, %v2042
          %v2044 = vlaneseq
          %v2045 = vand.u32 %v2044, 127
          %s2046 = sld [smem:[#allocation3]]
          %v2047 = vstv %s2046
          %vm2048 = vcmp.eq.s32.totalorder %v2045, %v2047
          %v2049 = vsel %vm2048, 1, 0
          %v2050 = vcvt.s32.f32 %v2049
          %v2051 = vmul.f32 %v2050, %v2043
          %vm2052 = vcmask 16384
          %v2053 = vsel %vm2052, %v2051, 0.0
          %2054 = vadd.xlane.f32.xlu0 %v2053
          %v2055 = vpop.xlane.xlu0 %2054
          %v2056 = vrot.slane %v2055, 4
          %v2057 = vadd.f32 %v2055, %v2056
          %v2058 = vrot.slane %v2057, 2
          %v2059 = vadd.f32 %v2057, %v2058
          %v2060 = vrot.slane %v2059, 1
          %v2061 = vadd.f32 %v2059, %v2060
          %s2062 = vtos %v2061
          %s2063 = ssub.f32 0.0, %s2062
          %s2064 = sadd.f32 %s2063, 0.0
          %s2065 = sld [smem:[#allocation3 + $0x1]]
          %v2066 = vstv %s2065
          %vm2067 = vcmp.eq.s32.totalorder %v2045, %v2066
          %v2068 = vsel %vm2067, 1, 0
          %v2069 = vcvt.s32.f32 %v2068
          %v2070 = vmul.f32 %v2069, %v2043
          %v2072 = vrot.slane %v2070, 1
          %v2074 = vsel %vm2052, %v2072, 0.0
          %2075 = vadd.xlane.f32.xlu0 %v2074
          %v2076 = vpop.xlane.xlu0 %2075
          %v2077 = vrot.slane %v2076, 4
          %v2078 = vadd.f32 %v2076, %v2077
          %v2079 = vrot.slane %v2078, 2
          %v2080 = vadd.f32 %v2078, %v2079
          %v2081 = vrot.slane %v2080, 1
          %v2082 = vadd.f32 %v2080, %v2081
          %s2083 = vtos %v2082
          %s2084 = ssub.f32 0.0, %s2083
          %s2085 = sadd.f32 %s2064, %s2084
          %v2086 = vrcp.pop 2.0
          %v2087 = vmul.f32 2.0, %v2086
          %v2088 = vsub.f32 1.0, %v2087
          %v2089 = vmul.f32 %v2086, %v2088
          %v2090 = vadd.f32 %v2086, %v2089
          %vm2091 = vweird.f32 %v2086
          %v2092 = vsel %vm2091, %v2086, %v2090
          %s2093 = vtos %v2092
          %s2094 = smul.f32 %s2085, %s2093
          %s2095 = scalar_lea.smem [#allocation6], 0
          %2096 = sst [smem:[%s2095]] %s2094
          %vm2097 = vcmp.eq.f32.partialorder %v2028, %v2034
          %v2098 = vsel %vm2097, %v2045, 3
          %v2099 = vsel %vm2031, %v2098, 2147483647
          %v2100 = vand.u32 %v2099, 65535
          %v2101 = vshra.s32 %v2099, 16
          %v2102 = vcvt.s32.f32 %v2100
          %v2103 = vcvt.s32.f32 %v2101
          %2104 = vmin.xlane.f32.xlu0 %v2103
          %v2105 = vpop.xlane.xlu0 %2104
          %vm2106 = vcmp.eq.f32.partialorder %v2103, %v2105
          %v2107 = vsel %vm2106, %v2102, inf
          %2108 = vmin.xlane.f32.xlu0 %v2107
          %v2109 = vpop.xlane.xlu0 %2108
          %v2110 = vcvt.f32.s32 %v2109
          %v2111 = vcvt.f32.s32 %v2105
          %v2112 = vshll.u32 %v2111, 16
          %v2113 = vadd.s32 %v2112, %v2110
          %vm2114 = vcmask 1024
          %2115 = vst.msk [vmem:[%s22] sm:$0x3] %vm2114, %v2113
        $region116: #{bert_linear_forward.1} parent=103 // pred_fallthru
          _
        // Predicated region
        $region117: #{bert_linear_forward.1} parent=103 // pred_check
          %p2116 = pneg %p550
        $region118: #{bert_linear_forward.1} parent=103 // pred_check_branch
          %2118 = sbr.rel (%p2116) target = $region120
        $region119: #{bert_linear_forward.1} parent=103 // pred_region
          %2120 = vsyncadd [#allocation4], 0
          %s2122 = sshll.u32 %s21, 4
          %s2123 = int_to_ptr.hbm [resolvable:$true] %s2122
          %2125 = dma.smem_to_hbm [#allocation6], 16, %s2123, [#allocation4]
        $region120: #{bert_linear_forward.1} parent=103 // pred_fallthru
          _
        // Predicated region
        $region121: #{bert_linear_forward.1} parent=103 // pred_check
          %p2126 = pneg %p571
        $region122: #{bert_linear_forward.1} parent=103 // pred_check_branch
          %2128 = sbr.rel (%p2126) target = $region124
        $region123: #{bert_linear_forward.1} parent=103 // pred_region
          _
        $region124: #{bert_linear_forward.1} parent=103 // pred_fallthru
          _
        // Predicated region
        $region125: #{bert_linear_forward.1} parent=103 // pred_check
          %p2129 = pneg %p550
        $region126: #{bert_linear_forward.1} parent=103 // pred_check_branch
          %2131 = sbr.rel (%p2129) target = $region128
        $region127: #{bert_linear_forward.1} parent=103 // pred_region
          %2133 = dma.done [#allocation4], 16
        $region128: #{bert_linear_forward.1} parent=103 // pred_fallthru
          _
        // Predicated region
        $region129: #{bert_linear_forward.1} parent=103 // pred_check
          %p2134 = pneg %p571
        $region130: #{bert_linear_forward.1} parent=103 // pred_check_branch
          %2136 = sbr.rel (%p2134) target = $region132
        $region131: #{bert_linear_forward.1} parent=103 // pred_region
          _
        $region132: #{bert_linear_forward.1} parent=103 // pred_fallthru
          _
        %2137 = sfence
      $region104: #{bert_linear_forward.1} parent=5 // pred_fallthru
        _
      %p2138 = scmp.le.s32.totalorder 2, %s31
      // Predicated region
      $region133: #{bert_linear_forward.1} parent=5 // pred_check
        %p2139 = pneg %p2138
      $region134: #{bert_linear_forward.1} parent=5 // pred_check_branch
        %2141 = sbr.rel (%p2139) target = $region136
      $region135: #{bert_linear_forward.1} parent=5 // pred_region
        %s2142 = ssub.s32 %s31, 2
      $region136: #{bert_linear_forward.1} parent=5 // pred_fallthru
        _
    $region6: #{bert_linear_forward.1} parent=1 // loop_footer
      %s35 = sadd.s32 1, %s31
    $region7: #{bert_linear_forward.1} parent=1 // loop_footer_branch
      %30 = sbr.rel target = $region3
    $region8: #{bert_linear_forward.1} parent=1 // loop_exit
      _
    %2143 = vsyncpa [#allocation4], 1
    %s2144 = scalar_lea.sflag [#allocation4], 1
    %2145 = vsyncpa %s2144, 1
    %2146 = vsyncpa [#allocation5], 1
    %s2147 = scalar_lea.sflag [#allocation5], 1
    %2148 = vsyncpa %s2147, 1

</llo_original>
